<compile_context>
chip_gen: v6e
topology: v6e:2x2x1
jax: 0.10.0
libtpu: 0.0.40
codegen_flags: <defaults>
</compile_context>

<pallas_src>
import functools

import jax
import jax.numpy as jnp
from jax.experimental import pallas as pl
from jax.experimental.pallas import tpu as pltpu


# ---------------------------------------------------------------------------
# Model hyper-parameters (small, consistent with the module's constructor)
# ---------------------------------------------------------------------------
IN_FEATURES = 2
LATENT_DIM = 8
OUT_FEATURES = 3
HIDDEN_LAYERS = 2
HIDDEN_FEATURES = 32
FIRST_OMEGA_0 = 30.0
HIDDEN_OMEGA_0 = 30.0

N = 256  # number of points (batch)


# ---------------------------------------------------------------------------
# Device / tiling helpers
# ---------------------------------------------------------------------------
def _has_two_tensorcores():
    """True on 2-TensorCore chips (TPU7x); False on v5e/v6e (1 TC)."""
    # Prefer a structured hardware query over device_kind string matching.
    try:
        info = pltpu.get_tpu_info()
        for attr in ("num_cores", "num_tensorcores", "tensorcores_per_chip",
                     "cores_per_chip", "num_tensor_cores"):
            v = getattr(info, attr, None)
            if isinstance(v, int) and not isinstance(v, bool) and v >= 1:
                return v >= 2
    except Exception:
        pass
    try:
        kind = jax.devices()[0].device_kind.lower()
    except Exception:
        return False
    # v7x device_kind is reported without a leading "v" (e.g. "TPU7x").
    return ("v7" in kind) or ("tpu7" in kind) or ("7x" in kind)


def _pick_tile_n(n, two_cores):
    """Batch tile (lane axis).

    Cap at 512 lanes: keeps the hidden-loop live set (out/mod/skip/pre-acts,
    each (H, tile) f32) under the 64-vreg ceiling and leaves room for
    DMA/compute pipelining at large N, while a >=128-lane tile amortizes the
    ~0.35us per-grid-step overhead to noise.  On 2-TensorCore chips (TPU7x)
    make sure there are at least 2 grid steps so both cores get work.
    VMEM is never the constraint here (footprint ~100 KB).
    """
    CAP = 512
    if n % 128 != 0:
        return n  # irregular tiny batch: single grid step
    tile = 128
    t = 128
    while t <= min(n, CAP):
        if n % t == 0:
            tile = t
        t += 128
    if two_cores and (n // tile) < 2 and n % 256 == 0:
        tile = max(n // 2, 128)
    return tile


# ---------------------------------------------------------------------------
# Pallas kernel: whole ModSIREN forward for one batch tile (batch on lanes)
# ---------------------------------------------------------------------------
def modsiren_kernel(
    xl_ref,     # (IN+LAT, TILE_N)  stacked [x^T ; latent^T], batch on lanes
    w0_ref,     # (2H, IN+LAT)      fused first weight [[w0*fw^T, 0],[mxw^T, mlw^T]]
    b0_ref,     # (2H, 1)           fused first bias   [w0*fb^T ; mb^T]
    wa_ref,     # (L, H, H)         hidden sine-branch weights (omega folded)
    ba_ref,     # (L, H, 1)         hidden sine-branch biases  (omega folded)
    wb_ref,     # (L, H, H)         hidden mod-branch weights
    bb_ref,     # (L, H, 1)         hidden mod-branch biases
    finw_ref,   # (OUT, H)          final SineLayer weight (omega folded)
    finb_ref,   # (OUT, 1)          final SineLayer bias   (omega folded)
    o_ref,      # (OUT, TILE_N)
    *,
    hidden_layers,
    hidden_features,
):
    H = hidden_features
    xl = xl_ref[...].astype(jnp.float32)                     # (IN+LAT, T)

    # --- first SineLayer + mod_first in a single MXU dot (K = IN+LAT = 10).
    p0 = jnp.dot(w0_ref[...], xl, preferred_element_type=jnp.float32) + b0_ref[...]
    out_t = jnp.sin(p0[:H, :])                                # sin(omega0*(x@fw+fb))^T
    mod_t = jnp.maximum(p0[H:, :], 0.0)                       # relu(lat@mlw + x@mxw + mb)^T
    skip = mod_t

    # --- hidden stack: two small (H,H) dots per layer (no concat, no
    # block-diag zero padding) — keeps the live vreg set small.
    for i in range(hidden_layers):
        pre_sine = jnp.dot(wa_ref[i], out_t,
                           preferred_element_type=jnp.float32) + ba_ref[i]
        pre_mod = jnp.dot(wb_ref[i], mod_t,
                          preferred_element_type=jnp.float32) + bb_ref[i]
        sine = jnp.sin(pre_sine)                              # omega folded into wa/ba
        mod_t = jnp.maximum(pre_mod, 0.0) + skip
        out_t = mod_t * sine

    # --- final SineLayer (outermost_linear=False); omega folded into finw/finb.
    fin = jnp.dot(finw_ref[...], out_t,
                  preferred_element_type=jnp.float32) + finb_ref[...]
    o_ref[...] = jnp.sin(fin).astype(o_ref.dtype)             # lane-dense store


# ---------------------------------------------------------------------------
# Parameter prep: ONE-TIME weight transform (transpose, fold omega, fuse).
# Call once and reuse the result across forward calls.
# ---------------------------------------------------------------------------
def prepare_params(p):
    w0, wh = FIRST_OMEGA_0, HIDDEN_OMEGA_0
    H = HIDDEN_FEATURES

    # Fused first weight acting on stacked input [x ; latent]:
    #   rows 0:H   -> omega0 * fw^T on x, 0 on latent   (sine pre-activation)
    #   rows H:2H  -> mxw^T on x, mlw^T on latent        (mod pre-activation)
    top = jnp.concatenate(
        [w0 * p["fw"].T, jnp.zeros((H, LATENT_DIM), jnp.float32)], axis=1)
    bot = jnp.concatenate([p["mxw"].T, p["mlw"].T], axis=1)
    w0f = jnp.concatenate([top, bot], axis=0)                 # (2H, IN+LAT)
    b0f = jnp.concatenate([(w0 * p["fb"]).T, p["mb"].T], axis=0)  # (2H, 1)

    wa = jnp.transpose(wh * p["hw"], (0, 2, 1))               # (L, H, H)
    ba = jnp.transpose(wh * p["hb"], (0, 2, 1))               # (L, H, 1)
    wb = jnp.transpose(p["mhw"], (0, 2, 1))                   # (L, H, H)
    bb = jnp.transpose(p["mhb"], (0, 2, 1))                   # (L, H, 1)

    finw_t = (wh * p["finw"]).T                                # (OUT, H)
    finb_t = (wh * p["finb"]).T                                # (OUT, 1)

    return dict(w0=w0f, b0=b0f, wa=wa, ba=ba, wb=wb, bb=bb,
                finw=finw_t, finb=finb_t)


# ---------------------------------------------------------------------------
# Forward wrappers
# ---------------------------------------------------------------------------
def modsiren_forward_fm(xl_t, packed):
    """Feature-major forward: xl_t is (IN+LAT, N) stacked [x^T ; latent^T];
    returns (OUT_FEATURES, N).  No HBM transposes — preferred for large N."""
    n = xl_t.shape[1]
    two_cores = _has_two_tensorcores()
    tile_n = _pick_tile_n(n, two_cores)
    assert n % tile_n == 0
    grid = (n // tile_n,)

    # On TPU7x actually shard the grid across the two TensorCores.
    if two_cores and grid[0] > 1:
        sem = (pltpu.CORE_PARALLEL,)
    else:
        sem = (pltpu.PARALLEL,)

    kernel = functools.partial(
        modsiren_kernel,
        hidden_layers=HIDDEN_LAYERS,
        hidden_features=HIDDEN_FEATURES,
    )

    def rep2(shape):
        return pl.BlockSpec(shape, lambda i: (0, 0))

    def rep3(shape):
        return pl.BlockSpec(shape, lambda i: (0, 0, 0))

    out_t = pl.pallas_call(
        kernel,
        out_shape=jax.ShapeDtypeStruct((OUT_FEATURES, n), jnp.float32),
        grid=grid,
        in_specs=[
            pl.BlockSpec((IN_FEATURES + LATENT_DIM, tile_n), lambda i: (0, i)),
            rep2(packed["w0"].shape),
            rep2(packed["b0"].shape),
            rep3(packed["wa"].shape),
            rep3(packed["ba"].shape),
            rep3(packed["wb"].shape),
            rep3(packed["bb"].shape),
            rep2(packed["finw"].shape),
            rep2(packed["finb"].shape),
        ],
        out_specs=pl.BlockSpec((OUT_FEATURES, tile_n), lambda i: (0, i)),
        compiler_params=pltpu.CompilerParams(dimension_semantics=sem),
    )(
        xl_t,
        packed["w0"], packed["b0"],
        packed["wa"], packed["ba"], packed["wb"], packed["bb"],
        packed["finw"], packed["finb"],
    )
    return out_t


@jax.jit
def modsiren_forward(x, latent_vec, packed):
    """Reference-compatible interface: x (N, IN), latent (N, LAT) -> (N, OUT).
    The transposes here are negligible at small N and fuse under jit; for
    large N prefer modsiren_forward_fm and feature-major I/O end-to-end."""
    xl_t = jnp.concatenate([x.T, latent_vec.T], axis=0)   # (IN+LAT, N)
    out_t = modsiren_forward_fm(xl_t, packed)
    return out_t.T                                         # (N, OUT)


# ---------------------------------------------------------------------------
# Deterministic parameter init (matches the shapes / init ranges of __init__)
# ---------------------------------------------------------------------------
def init_params(key):
    H = HIDDEN_FEATURES
    keys = jax.random.split(key, 16)
    k = iter(keys)

    def uni(kk, shape, bound):
        return jax.random.uniform(kk, shape, jnp.float32, -bound, bound)

    # first SineLayer: weight U(-1/in, 1/in); bias ~ PyTorch default
    fw = uni(next(k), (IN_FEATURES, H), 1.0 / IN_FEATURES)
    fb = uni(next(k), (1, H), 1.0 / jnp.sqrt(IN_FEATURES))

    # mod_first_layer: nn.Linear(latent_dim + in_features, H), default init
    mbound = 1.0 / jnp.sqrt(LATENT_DIM + IN_FEATURES)
    mlw = uni(next(k), (LATENT_DIM, H), mbound)
    mxw = uni(next(k), (IN_FEATURES, H), mbound)
    mb = uni(next(k), (1, H), mbound)

    # hidden SineLayers: U(-sqrt(6/H)/omega, sqrt(6/H)/omega)
    sbound = jnp.sqrt(6.0 / H) / HIDDEN_OMEGA_0
    hw = uni(next(k), (HIDDEN_LAYERS, H, H), sbound)
    hb = uni(next(k), (HIDDEN_LAYERS, 1, H), 1.0 / jnp.sqrt(H))

    # mod hidden layers: nn.Linear(H, H) default init
    hbound = 1.0 / jnp.sqrt(H)
    mhw = uni(next(k), (HIDDEN_LAYERS, H, H), hbound)
    mhb = uni(next(k), (HIDDEN_LAYERS, 1, H), hbound)

    # final SineLayer (outermost_linear=False)
    finw = uni(next(k), (H, OUT_FEATURES), sbound)
    finb = uni(next(k), (1, OUT_FEATURES), 1.0 / jnp.sqrt(H))

    return dict(
        fw=fw, fb=fb, mlw=mlw, mxw=mxw, mb=mb,
        hw=hw, hb=hb, mhw=mhw, mhb=mhb, finw=finw, finb=finb,
    )


# ---------------------------------------------------------------------------
# Pure-JAX reference (mirrors the PyTorch forward exactly; original layout)
# ---------------------------------------------------------------------------
def modsiren_ref(x, latent_vec, p):
    out = jnp.sin(FIRST_OMEGA_0 * (x @ p["fw"] + p["fb"]))
    x_latent = jnp.concatenate([latent_vec, x], axis=-1)
    w_cat = jnp.concatenate([p["mlw"], p["mxw"]], axis=0)
    mod = jax.nn.relu(x_latent @ w_cat + p["mb"])
    skip = mod
    for i in range(HIDDEN_LAYERS):
        mod = jax.nn.relu(mod @ p["mhw"][i] + p["mhb"][i]) + skip
        out = mod * jnp.sin(HIDDEN_OMEGA_0 * (out @ p["hw"][i] + p["hb"][i]))
    return jnp.sin(HIDDEN_OMEGA_0 * (out @ p["finw"] + p["finb"]))


if __name__ == "__main__":
    key = jax.random.PRNGKey(0)
    kx, kl, kp = jax.random.split(key, 3)

    x = jax.random.uniform(kx, (N, IN_FEATURES), jnp.float32, -1.0, 1.0)
    latent_vec = jax.random.normal(kl, (N, LATENT_DIM), jnp.float32)
    params = init_params(kp)

    # One-time parameter transform (hoisted out of the per-call path).
    packed = prepare_params(params)
    packed = {k: jax.block_until_ready(v) for k, v in packed.items()}

    out = modsiren_forward(x, latent_vec, packed)
    out = jax.block_until_ready(out)

    ref = modsiren_ref(x, latent_vec, params)
    assert out.shape == (N, OUT_FEATURES)
    max_err = float(jnp.max(jnp.abs(out - ref)))
    assert jnp.allclose(out, ref, atol=2e-4, rtol=2e-4), max_err

    print("KERNEL_OK")
</pallas_src>

<mosaic_0001>
module attributes {stable_mosaic.version = 11 : i64} {
  func.func @modsiren_kernel(%arg0: i32, %arg1: memref<10x256xf32, #tpu.memory_space<vmem>>, %arg2: memref<64x10xf32, #tpu.memory_space<vmem>>, %arg3: memref<64x1xf32, #tpu.memory_space<vmem>>, %arg4: memref<2x32x32xf32, #tpu.memory_space<vmem>>, %arg5: memref<2x32x1xf32, #tpu.memory_space<vmem>>, %arg6: memref<2x32x32xf32, #tpu.memory_space<vmem>>, %arg7: memref<2x32x1xf32, #tpu.memory_space<vmem>>, %arg8: memref<3x32xf32, #tpu.memory_space<vmem>>, %arg9: memref<3x1xf32, #tpu.memory_space<vmem>>, %arg10: memref<3x256xf32, #tpu.memory_space<vmem>>) attributes {dimension_semantics = [#tpu.dimension_semantics<parallel>], iteration_bounds = array<i64: 1>, scalar_prefetch = 0 : i64, scratch_operands = 0 : i64, tpu.core_type = #tpu.core_type<tc>, window_params = [{transform_indices = @transform_0, window_bounds = array<i64: 10, 256>}, {pipeline_mode = #tpu.pipeline_mode<synchronous>, transform_indices = @transform_1, window_bounds = array<i64: 64, 10>}, {pipeline_mode = #tpu.pipeline_mode<synchronous>, transform_indices = @transform_2, window_bounds = array<i64: 64, 1>}, {pipeline_mode = #tpu.pipeline_mode<synchronous>, transform_indices = @transform_3, window_bounds = array<i64: 2, 32, 32>}, {pipeline_mode = #tpu.pipeline_mode<synchronous>, transform_indices = @transform_4, window_bounds = array<i64: 2, 32, 1>}, {pipeline_mode = #tpu.pipeline_mode<synchronous>, transform_indices = @transform_5, window_bounds = array<i64: 2, 32, 32>}, {pipeline_mode = #tpu.pipeline_mode<synchronous>, transform_indices = @transform_6, window_bounds = array<i64: 2, 32, 1>}, {pipeline_mode = #tpu.pipeline_mode<synchronous>, transform_indices = @transform_7, window_bounds = array<i64: 3, 32>}, {pipeline_mode = #tpu.pipeline_mode<synchronous>, transform_indices = @transform_8, window_bounds = array<i64: 3, 1>}, {transform_indices = @transform_9, window_bounds = array<i64: 3, 256>}]} {
    %c0 = arith.constant 0 : index
    %c0_0 = arith.constant 0 : index
    %0 = vector.load %arg1[%c0, %c0_0] : memref<10x256xf32, #tpu.memory_space<vmem>>, vector<10x256xf32>
    %c0_1 = arith.constant 0 : index
    %c0_2 = arith.constant 0 : index
    %1 = vector.load %arg2[%c0_1, %c0_2] : memref<64x10xf32, #tpu.memory_space<vmem>>, vector<64x10xf32>
    %cst = arith.constant dense<0.000000e+00> : vector<64x256xf32>
    %2 = tpu.matmul %1, %0, %cst {dimension_numbers = #tpu.dot_dimension_numbers<[1], [0], [0], [1], [0, 0, 1, 1], [], []>} : vector<64x10xf32>, vector<10x256xf32>, vector<64x256xf32> -> vector<64x256xf32>
    %c0_3 = arith.constant 0 : index
    %c0_4 = arith.constant 0 : index
    %3 = vector.load %arg3[%c0_3, %c0_4] : memref<64x1xf32, #tpu.memory_space<vmem>>, vector<64x1xf32>
    %4 = vector.broadcast %3 : vector<64x1xf32> to vector<64x256xf32>
    %5 = arith.addf %2, %4 : vector<64x256xf32>
    %6 = vector.extract_strided_slice %5 {offsets = [0, 0], sizes = [32, 256], strides = [1, 1]} : vector<64x256xf32> to vector<32x256xf32>
    %7 = math.sin %6 : vector<32x256xf32>
    %8 = vector.extract_strided_slice %5 {offsets = [32, 0], sizes = [32, 256], strides = [1, 1]} : vector<64x256xf32> to vector<32x256xf32>
    %cst_5 = arith.constant 0.000000e+00 : f32
    %9 = vector.broadcast %cst_5 : f32 to vector<32x256xf32>
    %10 = arith.maximumf %8, %9 : vector<32x256xf32>
    %c0_6 = arith.constant 0 : index
    %c0_7 = arith.constant 0 : index
    %c0_8 = arith.constant 0 : index
    %11 = vector.load %arg4[%c0_6, %c0_7, %c0_8] : memref<2x32x32xf32, #tpu.memory_space<vmem>>, vector<1x32x32xf32>
    %12 = vector.shape_cast %11 : vector<1x32x32xf32> to vector<32x32xf32>
    %cst_9 = arith.constant dense<0.000000e+00> : vector<32x256xf32>
    %13 = tpu.matmul %12, %7, %cst_9 {dimension_numbers = #tpu.dot_dimension_numbers<[1], [0], [0], [1], [0, 0, 1, 1], [], []>} : vector<32x32xf32>, vector<32x256xf32>, vector<32x256xf32> -> vector<32x256xf32>
    %c0_10 = arith.constant 0 : index
    %c0_11 = arith.constant 0 : index
    %c0_12 = arith.constant 0 : index
    %14 = vector.load %arg5[%c0_10, %c0_11, %c0_12] : memref<2x32x1xf32, #tpu.memory_space<vmem>>, vector<1x32x1xf32>
    %15 = vector.shape_cast %14 : vector<1x32x1xf32> to vector<32x1xf32>
    %16 = vector.broadcast %15 : vector<32x1xf32> to vector<32x256xf32>
    %17 = arith.addf %13, %16 : vector<32x256xf32>
    %c0_13 = arith.constant 0 : index
    %c0_14 = arith.constant 0 : index
    %c0_15 = arith.constant 0 : index
    %18 = vector.load %arg6[%c0_13, %c0_14, %c0_15] : memref<2x32x32xf32, #tpu.memory_space<vmem>>, vector<1x32x32xf32>
    %19 = vector.shape_cast %18 : vector<1x32x32xf32> to vector<32x32xf32>
    %cst_16 = arith.constant dense<0.000000e+00> : vector<32x256xf32>
    %20 = tpu.matmul %19, %10, %cst_16 {dimension_numbers = #tpu.dot_dimension_numbers<[1], [0], [0], [1], [0, 0, 1, 1], [], []>} : vector<32x32xf32>, vector<32x256xf32>, vector<32x256xf32> -> vector<32x256xf32>
    %c0_17 = arith.constant 0 : index
    %c0_18 = arith.constant 0 : index
    %c0_19 = arith.constant 0 : index
    %21 = vector.load %arg7[%c0_17, %c0_18, %c0_19] : memref<2x32x1xf32, #tpu.memory_space<vmem>>, vector<1x32x1xf32>
    %22 = vector.shape_cast %21 : vector<1x32x1xf32> to vector<32x1xf32>
    %23 = vector.broadcast %22 : vector<32x1xf32> to vector<32x256xf32>
    %24 = arith.addf %20, %23 : vector<32x256xf32>
    %25 = math.sin %17 : vector<32x256xf32>
    %cst_20 = arith.constant 0.000000e+00 : f32
    %26 = vector.broadcast %cst_20 : f32 to vector<32x256xf32>
    %27 = arith.maximumf %24, %26 : vector<32x256xf32>
    %28 = arith.addf %27, %10 : vector<32x256xf32>
    %29 = arith.mulf %28, %25 : vector<32x256xf32>
    %c1 = arith.constant 1 : index
    %c0_21 = arith.constant 0 : index
    %c0_22 = arith.constant 0 : index
    %30 = vector.load %arg4[%c1, %c0_21, %c0_22] : memref<2x32x32xf32, #tpu.memory_space<vmem>>, vector<1x32x32xf32>
    %31 = vector.shape_cast %30 : vector<1x32x32xf32> to vector<32x32xf32>
    %cst_23 = arith.constant dense<0.000000e+00> : vector<32x256xf32>
    %32 = tpu.matmul %31, %29, %cst_23 {dimension_numbers = #tpu.dot_dimension_numbers<[1], [0], [0], [1], [0, 0, 1, 1], [], []>} : vector<32x32xf32>, vector<32x256xf32>, vector<32x256xf32> -> vector<32x256xf32>
    %c1_24 = arith.constant 1 : index
    %c0_25 = arith.constant 0 : index
    %c0_26 = arith.constant 0 : index
    %33 = vector.load %arg5[%c1_24, %c0_25, %c0_26] : memref<2x32x1xf32, #tpu.memory_space<vmem>>, vector<1x32x1xf32>
    %34 = vector.shape_cast %33 : vector<1x32x1xf32> to vector<32x1xf32>
    %35 = vector.broadcast %34 : vector<32x1xf32> to vector<32x256xf32>
    %36 = arith.addf %32, %35 : vector<32x256xf32>
    %c1_27 = arith.constant 1 : index
    %c0_28 = arith.constant 0 : index
    %c0_29 = arith.constant 0 : index
    %37 = vector.load %arg6[%c1_27, %c0_28, %c0_29] : memref<2x32x32xf32, #tpu.memory_space<vmem>>, vector<1x32x32xf32>
    %38 = vector.shape_cast %37 : vector<1x32x32xf32> to vector<32x32xf32>
    %cst_30 = arith.constant dense<0.000000e+00> : vector<32x256xf32>
    %39 = tpu.matmul %38, %28, %cst_30 {dimension_numbers = #tpu.dot_dimension_numbers<[1], [0], [0], [1], [0, 0, 1, 1], [], []>} : vector<32x32xf32>, vector<32x256xf32>, vector<32x256xf32> -> vector<32x256xf32>
    %c1_31 = arith.constant 1 : index
    %c0_32 = arith.constant 0 : index
    %c0_33 = arith.constant 0 : index
    %40 = vector.load %arg7[%c1_31, %c0_32, %c0_33] : memref<2x32x1xf32, #tpu.memory_space<vmem>>, vector<1x32x1xf32>
    %41 = vector.shape_cast %40 : vector<1x32x1xf32> to vector<32x1xf32>
    %42 = vector.broadcast %41 : vector<32x1xf32> to vector<32x256xf32>
    %43 = arith.addf %39, %42 : vector<32x256xf32>
    %44 = math.sin %36 : vector<32x256xf32>
    %cst_34 = arith.constant 0.000000e+00 : f32
    %45 = vector.broadcast %cst_34 : f32 to vector<32x256xf32>
    %46 = arith.maximumf %43, %45 : vector<32x256xf32>
    %47 = arith.addf %46, %10 : vector<32x256xf32>
    %48 = arith.mulf %47, %44 : vector<32x256xf32>
    %c0_35 = arith.constant 0 : index
    %c0_36 = arith.constant 0 : index
    %49 = vector.load %arg8[%c0_35, %c0_36] : memref<3x32xf32, #tpu.memory_space<vmem>>, vector<3x32xf32>
    %cst_37 = arith.constant dense<0.000000e+00> : vector<3x256xf32>
    %50 = tpu.matmul %49, %48, %cst_37 {dimension_numbers = #tpu.dot_dimension_numbers<[1], [0], [0], [1], [0, 0, 1, 1], [], []>} : vector<3x32xf32>, vector<32x256xf32>, vector<3x256xf32> -> vector<3x256xf32>
    %c0_38 = arith.constant 0 : index
    %c0_39 = arith.constant 0 : index
    %51 = vector.load %arg9[%c0_38, %c0_39] : memref<3x1xf32, #tpu.memory_space<vmem>>, vector<3x1xf32>
    %52 = vector.broadcast %51 : vector<3x1xf32> to vector<3x256xf32>
    %53 = arith.addf %50, %52 : vector<3x256xf32>
    %54 = math.sin %53 : vector<3x256xf32>
    %c0_40 = arith.constant 0 : index
    %c0_41 = arith.constant 0 : index
    %55 = vector.load %arg10[%c0_40, %c0_41] : memref<3x256xf32, #tpu.memory_space<vmem>>, vector<3x256xf32>
    tpu.vector_store %arg10[%c0_40, %c0_41], %54 {strides = array<i32>} : memref<3x256xf32, #tpu.memory_space<vmem>>, vector<3x256xf32>,
    return
  }
  func.func @transform_0(%arg0: i32) -> (i32, i32) {
    %c0_i32 = arith.constant 0 : i32
    %c0_i32_0 = arith.constant 0 : i32
    return %c0_i32, %arg0 : i32, i32
  }
  func.func @transform_1(%arg0: i32) -> (i32, i32) {
    %c0_i32 = arith.constant 0 : i32
    %c0_i32_0 = arith.constant 0 : i32
    %c0_i32_1 = arith.constant 0 : i32
    return %c0_i32, %c0_i32_0 : i32, i32
  }
  func.func @transform_2(%arg0: i32) -> (i32, i32) {
    %c0_i32 = arith.constant 0 : i32
    %c0_i32_0 = arith.constant 0 : i32
    %c0_i32_1 = arith.constant 0 : i32
    return %c0_i32, %c0_i32_0 : i32, i32
  }
  func.func @transform_3(%arg0: i32) -> (i32, i32, i32) {
    %c0_i32 = arith.constant 0 : i32
    %c0_i32_0 = arith.constant 0 : i32
    %c0_i32_1 = arith.constant 0 : i32
    %c0_i32_2 = arith.constant 0 : i32
    return %c0_i32, %c0_i32_0, %c0_i32_1 : i32, i32, i32
  }
  func.func @transform_4(%arg0: i32) -> (i32, i32, i32) {
    %c0_i32 = arith.constant 0 : i32
    %c0_i32_0 = arith.constant 0 : i32
    %c0_i32_1 = arith.constant 0 : i32
    %c0_i32_2 = arith.constant 0 : i32
    return %c0_i32, %c0_i32_0, %c0_i32_1 : i32, i32, i32
  }
  func.func @transform_5(%arg0: i32) -> (i32, i32, i32) {
    %c0_i32 = arith.constant 0 : i32
    %c0_i32_0 = arith.constant 0 : i32
    %c0_i32_1 = arith.constant 0 : i32
    %c0_i32_2 = arith.constant 0 : i32
    return %c0_i32, %c0_i32_0, %c0_i32_1 : i32, i32, i32
  }
  func.func @transform_6(%arg0: i32) -> (i32, i32, i32) {
    %c0_i32 = arith.constant 0 : i32
    %c0_i32_0 = arith.constant 0 : i32
    %c0_i32_1 = arith.constant 0 : i32
    %c0_i32_2 = arith.constant 0 : i32
    return %c0_i32, %c0_i32_0, %c0_i32_1 : i32, i32, i32
  }
  func.func @transform_7(%arg0: i32) -> (i32, i32) {
    %c0_i32 = arith.constant 0 : i32
    %c0_i32_0 = arith.constant 0 : i32
    %c0_i32_1 = arith.constant 0 : i32
    return %c0_i32, %c0_i32_0 : i32, i32
  }
  func.func @transform_8(%arg0: i32) -> (i32, i32) {
    %c0_i32 = arith.constant 0 : i32
    %c0_i32_0 = arith.constant 0 : i32
    %c0_i32_1 = arith.constant 0 : i32
    return %c0_i32, %c0_i32_0 : i32, i32
  }
  func.func @transform_9(%arg0: i32) -> (i32, i32) {
    %c0_i32 = arith.constant 0 : i32
    %c0_i32_0 = arith.constant 0 : i32
    return %c0_i32, %arg0 : i32, i32
  }
}

</mosaic_0001>

<llo_original>
// kernel: modsiren_forward.1
$region0: #{modsiren_forward.1}
  #allocation0 [shape = 'u32[]', space=smem, size = 0x4, offset = 0x4, fixed_abs, tag = 'smem constant byte address 0x4 - core index']
  #allocation1 [shape = 'u32[144,128]{1,0:T(1,128)}', space=vmem, size = 0x12000, scoped, tag = 'internal scratch']
  %s0 = inlined_call_operand.vmem [shape: f32[10,256], index: 0, kind: input, shape index: {}]
  %s1 = inlined_call_operand.vmem [shape: f32[64,10], index: 1, kind: input, shape index: {}]
  %s2 = inlined_call_operand.vmem [shape: f32[64,1], index: 2, kind: input, shape index: {}]
  %s3 = inlined_call_operand.vmem [shape: f32[2,32,32], index: 3, kind: input, shape index: {}]
  %s4 = inlined_call_operand.vmem [shape: f32[2,32,1], index: 4, kind: input, shape index: {}]
  %s5 = inlined_call_operand.vmem [shape: f32[2,32,32], index: 5, kind: input, shape index: {}]
  %s6 = inlined_call_operand.vmem [shape: f32[2,32,1], index: 6, kind: input, shape index: {}]
  %s7 = inlined_call_operand.vmem [shape: f32[3,32], index: 7, kind: input, shape index: {}]
  %s8 = inlined_call_operand.vmem [shape: f32[3,1], index: 8, kind: input, shape index: {}]
  %s9 = inlined_call_operand.hbm [shape: f32[3,256], index: 9, kind: output, shape index: {}]
  %s10 = sld [smem:[#allocation0]]
  $region46: #{modsiren_forward.1} parent=0
    _
  %s12 = ssub.s32 1, %s10
  %s13 = scalar_select 0, %s12, %s10
  $region1: #{modsiren_forward.1} parent=0
    #allocation2 [shape = 'u8[4096]{0}', space=vmem, size = 0x1000, scoped, tag = 'output window, operand 0, single buffered']
    #allocation3 [shape = 's32[1]{0}', space=sflag, size = 0x4, scoped, tag = 'scoped memory for modsiren_forward.1']
    %14 = vsyncpa [#allocation3], 0
    // Predicated region
    $region2: #{modsiren_forward.1} parent=1 // pred_check
      _
    $region3: #{modsiren_forward.1} parent=1 // pred_check_branch
      %16 = sbr.rel (0) target = $region5
    $region4: #{modsiren_forward.1} parent=1 // pred_region
      _
    $region5: #{modsiren_forward.1} parent=1 // pred_fallthru
      _
    // Predicated region
    $region6: #{modsiren_forward.1} parent=1 // pred_check
      _
    $region7: #{modsiren_forward.1} parent=1 // pred_check_branch
      %18 = sbr.rel (0) target = $region9
    $region8: #{modsiren_forward.1} parent=1 // pred_region
      _
    $region9: #{modsiren_forward.1} parent=1 // pred_fallthru
      _
    // Predicated region
    $region10: #{modsiren_forward.1} parent=1 // pred_check
      _
    $region11: #{modsiren_forward.1} parent=1 // pred_check_branch
      %20 = sbr.rel (0) target = $region13
    $region12: #{modsiren_forward.1} parent=1 // pred_region
      _
    $region13: #{modsiren_forward.1} parent=1 // pred_fallthru
      _
    // Predicated region
    $region14: #{modsiren_forward.1} parent=1 // pred_check
      _
    $region15: #{modsiren_forward.1} parent=1 // pred_check_branch
      %22 = sbr.rel (0) target = $region17
    $region16: #{modsiren_forward.1} parent=1 // pred_region
      _
    $region17: #{modsiren_forward.1} parent=1 // pred_fallthru
      _
    // Predicated region
    $region18: #{modsiren_forward.1} parent=1 // pred_check
      _
    $region19: #{modsiren_forward.1} parent=1 // pred_check_branch
      %24 = sbr.rel (0) target = $region21
    $region20: #{modsiren_forward.1} parent=1 // pred_region
      _
    $region21: #{modsiren_forward.1} parent=1 // pred_fallthru
      _
    // Predicated region
    $region22: #{modsiren_forward.1} parent=1 // pred_check
      _
    $region23: #{modsiren_forward.1} parent=1 // pred_check_branch
      %26 = sbr.rel (0) target = $region25
    $region24: #{modsiren_forward.1} parent=1 // pred_region
      _
    $region25: #{modsiren_forward.1} parent=1 // pred_fallthru
      _
    // Predicated region
    $region26: #{modsiren_forward.1} parent=1 // pred_check
      _
    $region27: #{modsiren_forward.1} parent=1 // pred_check_branch
      %28 = sbr.rel (0) target = $region29
    $region28: #{modsiren_forward.1} parent=1 // pred_region
      _
    $region29: #{modsiren_forward.1} parent=1 // pred_fallthru
      _
    // Predicated region
    $region30: #{modsiren_forward.1} parent=1 // pred_check
      _
    $region31: #{modsiren_forward.1} parent=1 // pred_check_branch
      %30 = sbr.rel (0) target = $region33
    $region32: #{modsiren_forward.1} parent=1 // pred_region
      _
    $region33: #{modsiren_forward.1} parent=1 // pred_fallthru
      _
    // Predicated region
    $region34: #{modsiren_forward.1} parent=1 // pred_check
      _
    $region35: #{modsiren_forward.1} parent=1 // pred_check_branch
      %32 = sbr.rel (0) target = $region37
    $region36: #{modsiren_forward.1} parent=1 // pred_region
      _
    $region37: #{modsiren_forward.1} parent=1 // pred_fallthru
      _
    %v33 = vld [vmem:[%s0] sm:$0xff]
    %v34 = vld [vmem:[%s0 + $0x8] sm:$0xff]
    %v35 = vld [vmem:[%s0 + $0x10] sm:$0x3]
    %v36 = vld [vmem:[%s0 + $0x18] sm:$0x3]
    %v37 = vld [vmem:[%s1] sm:$0xff]
    %v38 = vld [vmem:[%s1 + $0x8] sm:$0xff]
    %v39 = vld [vmem:[%s1 + $0x10] sm:$0xff]
    %v40 = vld [vmem:[%s1 + $0x18] sm:$0xff]
    %v41 = vld [vmem:[%s1 + $0x20] sm:$0xff]
    %v42 = vld [vmem:[%s1 + $0x28] sm:$0xff]
    %v43 = vld [vmem:[%s1 + $0x30] sm:$0xff]
    %v44 = vld [vmem:[%s1 + $0x38] sm:$0xff]
    %v45 = vld [vmem:[%s2] sm:$0xff]
    %v46 = vld [vmem:[%s2 + $0x8] sm:$0xff]
    %v47 = vld [vmem:[%s2 + $0x10] sm:$0xff]
    %v48 = vld [vmem:[%s2 + $0x18] sm:$0xff]
    %v49 = vld [vmem:[%s2 + $0x20] sm:$0xff]
    %v50 = vld [vmem:[%s2 + $0x28] sm:$0xff]
    %v51 = vld [vmem:[%s2 + $0x30] sm:$0xff]
    %v52 = vld [vmem:[%s2 + $0x38] sm:$0xff]
    %54 = vset.pattern.permute.xlu0 0
    %55 = vperm.xlu0 %54, %v45
    %v56 = vpop.permute.xlu0 %55
    %59 = vset.pattern.permute.xlu0 0
    %60 = vperm.xlu0 %59, %v46
    %v61 = vpop.permute.xlu0 %60
    %64 = vset.pattern.permute.xlu0 0
    %65 = vperm.xlu0 %64, %v47
    %v66 = vpop.permute.xlu0 %65
    %69 = vset.pattern.permute.xlu0 0
    %70 = vperm.xlu0 %69, %v48
    %v71 = vpop.permute.xlu0 %70
    %74 = vset.pattern.permute.xlu0 0
    %75 = vperm.xlu0 %74, %v49
    %v76 = vpop.permute.xlu0 %75
    %79 = vset.pattern.permute.xlu0 0
    %80 = vperm.xlu0 %79, %v50
    %v81 = vpop.permute.xlu0 %80
    %84 = vset.pattern.permute.xlu0 0
    %85 = vperm.xlu0 %84, %v51
    %v86 = vpop.permute.xlu0 %85
    %89 = vset.pattern.permute.xlu0 0
    %90 = vperm.xlu0 %89, %v52
    %v91 = vpop.permute.xlu0 %90
    %vm93 = vcmask 80896
    %v95 = vsel %vm93, %v37, 0
    %v98 = vsel %vm93, %v38, 0
    %v101 = vsel %vm93, %v39, 0
    %v104 = vsel %vm93, %v40, 0
    %v107 = vsel %vm93, %v41, 0
    %v110 = vsel %vm93, %v42, 0
    %v113 = vsel %vm93, %v43, 0
    %v116 = vsel %vm93, %v44, 0
    %vm118 = vcmask 1041408
    %v120 = vsel %vm118, %v35, 0
    %v123 = vsel %vm118, %v36, 0
    %125 = vmatprep.subr.mxu0 0.0
    %126 = vmatpush1.msra.mxu0 0.0
    %127 = vmatprep.subr.mxu0 0.0
    %128 = vmatpush1.msra.mxu0 0.0
    %129 = vmatprep.subr.mxu0 0.0
    %130 = vmatpush1.msra.mxu0 0.0
    %131 = vmatprep.subr.mxu0 0.0
    %132 = vmatpush1.msra.mxu0 0.0
    %133 = vmatprep.subr.mxu0 0.0
    %134 = vmatpush1.msra.mxu0 0.0
    %135 = vmatprep.subr.mxu0 0.0
    %136 = vmatpush1.msra.mxu0 0.0
    %137 = vmatprep.subr.mxu0 0.0
    %138 = vmatpush1.msra.mxu0 0.0
    %139 = vmatprep.subr.mxu0 0.0
    %140 = vmatpush1.msra.mxu0 0.0
    %141 = vmatprep.subr.mxu0 0.0
    %142 = vmatpush1.msra.mxu0 0.0
    %143 = vmatprep.subr.mxu0 0.0
    %144 = vmatpush1.msra.mxu0 0.0
    %145 = vmatprep.subr.mxu0 0.0
    %146 = vmatpush1.msra.mxu0 0.0
    %147 = vmatprep.subr.mxu0 0.0
    %148 = vmatpush1.msra.mxu0 0.0
    %149 = vmatprep.subr.mxu0 0.0
    %150 = vmatpush1.msra.mxu0 0.0
    %151 = vmatprep.subr.mxu0 0.0
    %152 = vmatpush1.msra.mxu0 0.0
    %153 = vmatprep.subr.mxu0 %v123
    %154 = vmatpush1.msra.mxu0 %v120
    %155 = vmatprep.subr.mxu0 %v34
    %156 = vmatpush1.msra.mxu0 %v33
    %157 = vmatprep.subr.mxu0 0.0
    %158 = vmatpush2.msra.mxu0 0.0
    %159 = vmatprep.subr.mxu0 0.0
    %160 = vmatpush2.msra.mxu0 0.0
    %161 = vmatprep.subr.mxu0 0.0
    %162 = vmatpush2.msra.mxu0 0.0
    %163 = vmatprep.subr.mxu0 0.0
    %164 = vmatpush2.msra.mxu0 0.0
    %165 = vmatprep.subr.mxu0 0.0
    %166 = vmatpush2.msra.mxu0 0.0
    %167 = vmatprep.subr.mxu0 0.0
    %168 = vmatpush2.msra.mxu0 0.0
    %169 = vmatprep.subr.mxu0 0.0
    %170 = vmatpush2.msra.mxu0 0.0
    %171 = vmatprep.subr.mxu0 0.0
    %172 = vmatpush2.msra.mxu0 0.0
    %173 = vmatprep.subr.mxu0 0.0
    %174 = vmatpush2.msra.mxu0 0.0
    %175 = vmatprep.subr.mxu0 0.0
    %176 = vmatpush2.msra.mxu0 0.0
    %177 = vmatprep.subr.mxu0 0.0
    %178 = vmatpush2.msra.mxu0 0.0
    %179 = vmatprep.subr.mxu0 0.0
    %180 = vmatpush2.msra.mxu0 0.0
    %181 = vmatprep.subr.mxu0 0.0
    %182 = vmatpush2.msra.mxu0 0.0
    %183 = vmatprep.subr.mxu0 0.0
    %184 = vmatpush2.msra.mxu0 0.0
    %185 = vmatprep.subr.mxu0 0.0
    %186 = vmatpush2.msra.mxu0 0.0
    %187 = vmatprep.subr.mxu0 0.0
    %188 = vmatpush2.msra.mxu0 0.0
    %189 = vmatprep.mubr.f32.mxu0 0.0
    %190 = vmatmul.mubr.f32.gmra.mxu0 %v95
    %v191 = vpop.f32.mrf.mxu0
    %v192 = vadd.f32 %v56, %v191
    %v193 = vpop.f32.mrf.mxu0
    %v194 = vadd.f32 %v56, %v193
    %195 = vmatprep.mubr.f32.mxu0 0.0
    %196 = vmatmul.mubr.f32.gmra.mxu0 %v98
    %v197 = vpop.f32.mrf.mxu0
    %v198 = vadd.f32 %v61, %v197
    %v199 = vpop.f32.mrf.mxu0
    %v200 = vadd.f32 %v61, %v199
    %201 = vmatprep.mubr.f32.mxu0 0.0
    %202 = vmatmul.mubr.f32.gmra.mxu0 %v101
    %v203 = vpop.f32.mrf.mxu0
    %v204 = vadd.f32 %v66, %v203
    %v205 = vpop.f32.mrf.mxu0
    %v206 = vadd.f32 %v66, %v205
    %207 = vmatprep.mubr.f32.mxu0 0.0
    %208 = vmatmul.mubr.f32.gmra.mxu0 %v104
    %v209 = vpop.f32.mrf.mxu0
    %v210 = vadd.f32 %v71, %v209
    %v211 = vpop.f32.mrf.mxu0
    %v212 = vadd.f32 %v71, %v211
    %213 = vmatprep.mubr.f32.mxu0 0.0
    %214 = vmatmul.mubr.f32.gmra.mxu0 %v107
    %v215 = vpop.f32.mrf.mxu0
    %v216 = vadd.f32 %v76, %v215
    %v217 = vpop.f32.mrf.mxu0
    %v218 = vadd.f32 %v76, %v217
    %219 = vmatprep.mubr.f32.mxu0 0.0
    %220 = vmatmul.mubr.f32.gmra.mxu0 %v110
    %v221 = vpop.f32.mrf.mxu0
    %v222 = vadd.f32 %v81, %v221
    %v223 = vpop.f32.mrf.mxu0
    %v224 = vadd.f32 %v81, %v223
    %225 = vmatprep.mubr.f32.mxu0 0.0
    %226 = vmatmul.mubr.f32.gmra.mxu0 %v113
    %v227 = vpop.f32.mrf.mxu0
    %v228 = vadd.f32 %v86, %v227
    %v229 = vpop.f32.mrf.mxu0
    %v230 = vadd.f32 %v86, %v229
    %231 = vmatprep.mubr.f32.mxu0 0.0
    %232 = vmatmul.mubr.f32.gmra.mxu0 %v116
    %v233 = vpop.f32.mrf.mxu0
    %v234 = vadd.f32 %v91, %v233
    %v235 = vpop.f32.mrf.mxu0
    %v236 = vadd.f32 %v91, %v235
    %237 = vdwg.mxu0
    %v238 = vand.u32 2147483647, %v192
    %vm239 = vcmp.le.f32.partialorder %v238, 0.7853982
    %vm240 = vcmp.lt.s32.totalorder %v192, 0
    %v241 = vand.u32 %v192, 2139095040
    %v242 = vshrl.u32 %v241, 23
    %v243 = vsub.s32 %v242, 127
    %v244 = vand.u32 2147483647, %v192
    %v245 = vand.u32 %v244, 8388607
    %v246 = vor.u32 %v245, 8388608
    %v247 = vsub.s32 0, %v246
    %v248 = vadd.s32 %v243, 1
    %vm249 = vcmp.gt.s32.totalorder %v248, 0
    %v250 = vsel %vm249, %v248, 0
    %v251 = vshrl.u32 %v250, 5
    %v252 = vand.u32 %v250, 31
    %v253 = vsub.s32 32, %v252
    %v254 = vshrl.u32 683565275, %v253
    %v255 = vshll.u32 683565275, %v252
    %v256 = vshrl.u32 2475754826, %v253
    %v257 = vor.u32 %v255, %v256
    %v258 = vshll.u32 2475754826, %v252
    %v259 = vshrl.u32 2131351028, %v253
    %v260 = vor.u32 %v258, %v259
    %v261 = vshll.u32 2131351028, %v252
    %v262 = vshrl.u32 2102212464, %v253
    %v263 = vor.u32 %v261, %v262
    %v264 = vshll.u32 2102212464, %v252
    %v265 = vshrl.u32 920167782, %v253
    %v266 = vor.u32 %v264, %v265
    %v267 = vshll.u32 920167782, %v252
    %v268 = vshrl.u32 1326507024, %v253
    %v269 = vor.u32 %v267, %v268
    %vm270 = vcmp.lt.s32.totalorder %v251, 1
    %vm271 = vcmp.lt.s32.totalorder %v251, 2
    %vm272 = vcmp.lt.s32.totalorder %v251, 3
    %vm273 = vcmp.lt.s32.totalorder %v251, 4
    %v274 = vsel %vm270, %v254, %v257
    %v275 = vsel %vm273, %v263, 2102212464
    %v276 = vsel %vm272, %v260, %v275
    %v277 = vsel %vm271, %v274, %v276
    %v278 = vsel %vm270, %v257, %v260
    %v279 = vsel %vm273, %v266, 920167782
    %v280 = vsel %vm272, %v263, %v279
    %v281 = vsel %vm271, %v278, %v280
    %v282 = vsel %vm270, %v260, %v263
    %v283 = vsel %vm273, %v269, 1326507024
    %v284 = vsel %vm272, %v266, %v283
    %v285 = vsel %vm271, %v282, %v284
    %v286 = vshll.u32 %v246, 8
    %v287 = vmul.u32.u64.compose %v286, %v285
    %v288 = vextract.low.u32 %v287
    %v289 = vextract.high.u32 %v287
    %v290 = vmul.u32.u64.compose %v286, %v281
    %v291 = vextract.low.u32 %v290
    %v292 = vextract.high.u32 %v290
    %v293 = vmul.u32 %v286, %v277
    %v294 = vadd.s32 %v289, %v291
    %vm295 = vc.u32 %v289, %v291
    %v296 = vadd.s32 %v292, 1
    %v297 = vsel %vm295, %v296, %v292
    %v298 = vadd.s32 %v293, %v297
    %v299 = vadd.s32 %v298, 536870912
    %v300 = vshrl.u32 %v299, 30
    %v301 = vshll.u32 %v300, 30
    %v302 = vsub.s32 %v298, %v301
    %vm303 = vcmp.lt.s32.totalorder %v302, 0
    %v304 = vsub.s32 0, %v302
    %v305 = vsel %vm303, %v304, %v302
    %v306 = vclz %v305
    %v307 = vsub.s32 %v306, 2
    %vm308 = vcmp.gt.s32.totalorder 0, %v307
    %v309 = vsel %vm308, 0, %v307
    %v310 = vsub.s32 32, %v309
    %v311 = vshll.u32 %v302, %v309
    %v312 = vshrl.u32 %v294, %v310
    %v313 = vor.u32 %v311, %v312
    %v314 = vsub.s32 4294967266, %v309
    %v315 = vadd.s32 %v314, 127
    %v316 = vshll.u32 %v315, 23
    %v317 = vor.u32 4788187, %v316
    %v318 = vand.u32 2147483647, %v317
    %v320 = vcvt.s32.f32 %v313
    %v321 = vmul.f32 %v320, %v318
    %v322 = vxor.u32 %v321, 2147483648
    %v323 = vsel %vm240, %v322, %v321
    %v324 = vsub.s32 4, %v300
    %v325 = vsel %vm240, %v324, %v300
    %v326 = vsel %vm239, %v192, %v323
    %v327 = vsel %vm239, 0, %v325
    %v328 = vcosq.f32.pop %v326
    %v329 = vsinq.f32.pop %v326
    %vm330 = vweird.f32 %v192
    %v331 = vadd.s32 %v327, 3
    %v332 = vand.u32 %v331, 3
    %vm333 = vcmp.lt.s32.totalorder %v332, 2
    %vm334 = vcmp.eq.s32.totalorder %v332, 0
    %v335 = vxor.u32 %v329, 2147483648
    %v336 = vsel %vm334, %v328, %v335
    %vm337 = vcmp.eq.s32.totalorder %v332, 2
    %v338 = vxor.u32 %v328, 2147483648
    %v339 = vsel %vm337, %v338, %v329
    %v340 = vsel %vm333, %v336, %v339
    %v341 = vsel %vm330, nan, %v340
    %v342 = vand.u32 2147483647, %v194
    %vm343 = vcmp.le.f32.partialorder %v342, 0.7853982
    %vm344 = vcmp.lt.s32.totalorder %v194, 0
    %v345 = vand.u32 %v194, 2139095040
    %v346 = vshrl.u32 %v345, 23
    %v347 = vsub.s32 %v346, 127
    %v348 = vand.u32 2147483647, %v194
    %v349 = vand.u32 %v348, 8388607
    %v350 = vor.u32 %v349, 8388608
    %v351 = vsub.s32 0, %v350
    %v352 = vadd.s32 %v347, 1
    %vm353 = vcmp.gt.s32.totalorder %v352, 0
    %v354 = vsel %vm353, %v352, 0
    %v355 = vshrl.u32 %v354, 5
    %v356 = vand.u32 %v354, 31
    %v357 = vsub.s32 32, %v356
    %v358 = vshrl.u32 683565275, %v357
    %v359 = vshll.u32 683565275, %v356
    %v360 = vshrl.u32 2475754826, %v357
    %v361 = vor.u32 %v359, %v360
    %v362 = vshll.u32 2475754826, %v356
    %v363 = vshrl.u32 2131351028, %v357
    %v364 = vor.u32 %v362, %v363
    %v365 = vshll.u32 2131351028, %v356
    %v366 = vshrl.u32 2102212464, %v357
    %v367 = vor.u32 %v365, %v366
    %v368 = vshll.u32 2102212464, %v356
    %v369 = vshrl.u32 920167782, %v357
    %v370 = vor.u32 %v368, %v369
    %v371 = vshll.u32 920167782, %v356
    %v372 = vshrl.u32 1326507024, %v357
    %v373 = vor.u32 %v371, %v372
    %vm374 = vcmp.lt.s32.totalorder %v355, 1
    %vm375 = vcmp.lt.s32.totalorder %v355, 2
    %vm376 = vcmp.lt.s32.totalorder %v355, 3
    %vm377 = vcmp.lt.s32.totalorder %v355, 4
    %v378 = vsel %vm374, %v358, %v361
    %v379 = vsel %vm377, %v367, 2102212464
    %v380 = vsel %vm376, %v364, %v379
    %v381 = vsel %vm375, %v378, %v380
    %v382 = vsel %vm374, %v361, %v364
    %v383 = vsel %vm377, %v370, 920167782
    %v384 = vsel %vm376, %v367, %v383
    %v385 = vsel %vm375, %v382, %v384
    %v386 = vsel %vm374, %v364, %v367
    %v387 = vsel %vm377, %v373, 1326507024
    %v388 = vsel %vm376, %v370, %v387
    %v389 = vsel %vm375, %v386, %v388
    %v390 = vshll.u32 %v350, 8
    %v391 = vmul.u32.u64.compose %v390, %v389
    %v392 = vextract.low.u32 %v391
    %v393 = vextract.high.u32 %v391
    %v394 = vmul.u32.u64.compose %v390, %v385
    %v395 = vextract.low.u32 %v394
    %v396 = vextract.high.u32 %v394
    %v397 = vmul.u32 %v390, %v381
    %v398 = vadd.s32 %v393, %v395
    %vm399 = vc.u32 %v393, %v395
    %v400 = vadd.s32 %v396, 1
    %v401 = vsel %vm399, %v400, %v396
    %v402 = vadd.s32 %v397, %v401
    %v403 = vadd.s32 %v402, 536870912
    %v404 = vshrl.u32 %v403, 30
    %v405 = vshll.u32 %v404, 30
    %v406 = vsub.s32 %v402, %v405
    %vm407 = vcmp.lt.s32.totalorder %v406, 0
    %v408 = vsub.s32 0, %v406
    %v409 = vsel %vm407, %v408, %v406
    %v410 = vclz %v409
    %v411 = vsub.s32 %v410, 2
    %vm412 = vcmp.gt.s32.totalorder 0, %v411
    %v413 = vsel %vm412, 0, %v411
    %v414 = vsub.s32 32, %v413
    %v415 = vshll.u32 %v406, %v413
    %v416 = vshrl.u32 %v398, %v414
    %v417 = vor.u32 %v415, %v416
    %v418 = vsub.s32 4294967266, %v413
    %v419 = vadd.s32 %v418, 127
    %v420 = vshll.u32 %v419, 23
    %v421 = vor.u32 4788187, %v420
    %v422 = vand.u32 2147483647, %v421
    %v424 = vcvt.s32.f32 %v417
    %v425 = vmul.f32 %v424, %v422
    %v426 = vxor.u32 %v425, 2147483648
    %v427 = vsel %vm344, %v426, %v425
    %v428 = vsub.s32 4, %v404
    %v429 = vsel %vm344, %v428, %v404
    %v430 = vsel %vm343, %v194, %v427
    %v431 = vsel %vm343, 0, %v429
    %v432 = vcosq.f32.pop %v430
    %v433 = vsinq.f32.pop %v430
    %vm434 = vweird.f32 %v194
    %v435 = vadd.s32 %v431, 3
    %v436 = vand.u32 %v435, 3
    %vm437 = vcmp.lt.s32.totalorder %v436, 2
    %vm438 = vcmp.eq.s32.totalorder %v436, 0
    %v439 = vxor.u32 %v433, 2147483648
    %v440 = vsel %vm438, %v432, %v439
    %vm441 = vcmp.eq.s32.totalorder %v436, 2
    %v442 = vxor.u32 %v432, 2147483648
    %v443 = vsel %vm441, %v442, %v433
    %v444 = vsel %vm437, %v440, %v443
    %v445 = vsel %vm434, nan, %v444
    %v446 = vand.u32 2147483647, %v198
    %vm447 = vcmp.le.f32.partialorder %v446, 0.7853982
    %vm448 = vcmp.lt.s32.totalorder %v198, 0
    %v449 = vand.u32 %v198, 2139095040
    %v450 = vshrl.u32 %v449, 23
    %v451 = vsub.s32 %v450, 127
    %v452 = vand.u32 2147483647, %v198
    %v453 = vand.u32 %v452, 8388607
    %v454 = vor.u32 %v453, 8388608
    %v455 = vsub.s32 0, %v454
    %v456 = vadd.s32 %v451, 1
    %vm457 = vcmp.gt.s32.totalorder %v456, 0
    %v458 = vsel %vm457, %v456, 0
    %v459 = vshrl.u32 %v458, 5
    %v460 = vand.u32 %v458, 31
    %v461 = vsub.s32 32, %v460
    %v462 = vshrl.u32 683565275, %v461
    %v463 = vshll.u32 683565275, %v460
    %v464 = vshrl.u32 2475754826, %v461
    %v465 = vor.u32 %v463, %v464
    %v466 = vshll.u32 2475754826, %v460
    %v467 = vshrl.u32 2131351028, %v461
    %v468 = vor.u32 %v466, %v467
    %v469 = vshll.u32 2131351028, %v460
    %v470 = vshrl.u32 2102212464, %v461
    %v471 = vor.u32 %v469, %v470
    %v472 = vshll.u32 2102212464, %v460
    %v473 = vshrl.u32 920167782, %v461
    %v474 = vor.u32 %v472, %v473
    %v475 = vshll.u32 920167782, %v460
    %v476 = vshrl.u32 1326507024, %v461
    %v477 = vor.u32 %v475, %v476
    %vm478 = vcmp.lt.s32.totalorder %v459, 1
    %vm479 = vcmp.lt.s32.totalorder %v459, 2
    %vm480 = vcmp.lt.s32.totalorder %v459, 3
    %vm481 = vcmp.lt.s32.totalorder %v459, 4
    %v482 = vsel %vm478, %v462, %v465
    %v483 = vsel %vm481, %v471, 2102212464
    %v484 = vsel %vm480, %v468, %v483
    %v485 = vsel %vm479, %v482, %v484
    %v486 = vsel %vm478, %v465, %v468
    %v487 = vsel %vm481, %v474, 920167782
    %v488 = vsel %vm480, %v471, %v487
    %v489 = vsel %vm479, %v486, %v488
    %v490 = vsel %vm478, %v468, %v471
    %v491 = vsel %vm481, %v477, 1326507024
    %v492 = vsel %vm480, %v474, %v491
    %v493 = vsel %vm479, %v490, %v492
    %v494 = vshll.u32 %v454, 8
    %v495 = vmul.u32.u64.compose %v494, %v493
    %v496 = vextract.low.u32 %v495
    %v497 = vextract.high.u32 %v495
    %v498 = vmul.u32.u64.compose %v494, %v489
    %v499 = vextract.low.u32 %v498
    %v500 = vextract.high.u32 %v498
    %v501 = vmul.u32 %v494, %v485
    %v502 = vadd.s32 %v497, %v499
    %vm503 = vc.u32 %v497, %v499
    %v504 = vadd.s32 %v500, 1
    %v505 = vsel %vm503, %v504, %v500
    %v506 = vadd.s32 %v501, %v505
    %v507 = vadd.s32 %v506, 536870912
    %v508 = vshrl.u32 %v507, 30
    %v509 = vshll.u32 %v508, 30
    %v510 = vsub.s32 %v506, %v509
    %vm511 = vcmp.lt.s32.totalorder %v510, 0
    %v512 = vsub.s32 0, %v510
    %v513 = vsel %vm511, %v512, %v510
    %v514 = vclz %v513
    %v515 = vsub.s32 %v514, 2
    %vm516 = vcmp.gt.s32.totalorder 0, %v515
    %v517 = vsel %vm516, 0, %v515
    %v518 = vsub.s32 32, %v517
    %v519 = vshll.u32 %v510, %v517
    %v520 = vshrl.u32 %v502, %v518
    %v521 = vor.u32 %v519, %v520
    %v522 = vsub.s32 4294967266, %v517
    %v523 = vadd.s32 %v522, 127
    %v524 = vshll.u32 %v523, 23
    %v525 = vor.u32 4788187, %v524
    %v526 = vand.u32 2147483647, %v525
    %v528 = vcvt.s32.f32 %v521
    %v529 = vmul.f32 %v528, %v526
    %v530 = vxor.u32 %v529, 2147483648
    %v531 = vsel %vm448, %v530, %v529
    %v532 = vsub.s32 4, %v508
    %v533 = vsel %vm448, %v532, %v508
    %v534 = vsel %vm447, %v198, %v531
    %v535 = vsel %vm447, 0, %v533
    %v536 = vcosq.f32.pop %v534
    %v537 = vsinq.f32.pop %v534
    %vm538 = vweird.f32 %v198
    %v539 = vadd.s32 %v535, 3
    %v540 = vand.u32 %v539, 3
    %vm541 = vcmp.lt.s32.totalorder %v540, 2
    %vm542 = vcmp.eq.s32.totalorder %v540, 0
    %v543 = vxor.u32 %v537, 2147483648
    %v544 = vsel %vm542, %v536, %v543
    %vm545 = vcmp.eq.s32.totalorder %v540, 2
    %v546 = vxor.u32 %v536, 2147483648
    %v547 = vsel %vm545, %v546, %v537
    %v548 = vsel %vm541, %v544, %v547
    %v549 = vsel %vm538, nan, %v548
    %v550 = vand.u32 2147483647, %v200
    %vm551 = vcmp.le.f32.partialorder %v550, 0.7853982
    %vm552 = vcmp.lt.s32.totalorder %v200, 0
    %v553 = vand.u32 %v200, 2139095040
    %v554 = vshrl.u32 %v553, 23
    %v555 = vsub.s32 %v554, 127
    %v556 = vand.u32 2147483647, %v200
    %v557 = vand.u32 %v556, 8388607
    %v558 = vor.u32 %v557, 8388608
    %v559 = vsub.s32 0, %v558
    %v560 = vadd.s32 %v555, 1
    %vm561 = vcmp.gt.s32.totalorder %v560, 0
    %v562 = vsel %vm561, %v560, 0
    %v563 = vshrl.u32 %v562, 5
    %v564 = vand.u32 %v562, 31
    %v565 = vsub.s32 32, %v564
    %v566 = vshrl.u32 683565275, %v565
    %v567 = vshll.u32 683565275, %v564
    %v568 = vshrl.u32 2475754826, %v565
    %v569 = vor.u32 %v567, %v568
    %v570 = vshll.u32 2475754826, %v564
    %v571 = vshrl.u32 2131351028, %v565
    %v572 = vor.u32 %v570, %v571
    %v573 = vshll.u32 2131351028, %v564
    %v574 = vshrl.u32 2102212464, %v565
    %v575 = vor.u32 %v573, %v574
    %v576 = vshll.u32 2102212464, %v564
    %v577 = vshrl.u32 920167782, %v565
    %v578 = vor.u32 %v576, %v577
    %v579 = vshll.u32 920167782, %v564
    %v580 = vshrl.u32 1326507024, %v565
    %v581 = vor.u32 %v579, %v580
    %vm582 = vcmp.lt.s32.totalorder %v563, 1
    %vm583 = vcmp.lt.s32.totalorder %v563, 2
    %vm584 = vcmp.lt.s32.totalorder %v563, 3
    %vm585 = vcmp.lt.s32.totalorder %v563, 4
    %v586 = vsel %vm582, %v566, %v569
    %v587 = vsel %vm585, %v575, 2102212464
    %v588 = vsel %vm584, %v572, %v587
    %v589 = vsel %vm583, %v586, %v588
    %v590 = vsel %vm582, %v569, %v572
    %v591 = vsel %vm585, %v578, 920167782
    %v592 = vsel %vm584, %v575, %v591
    %v593 = vsel %vm583, %v590, %v592
    %v594 = vsel %vm582, %v572, %v575
    %v595 = vsel %vm585, %v581, 1326507024
    %v596 = vsel %vm584, %v578, %v595
    %v597 = vsel %vm583, %v594, %v596
    %v598 = vshll.u32 %v558, 8
    %v599 = vmul.u32.u64.compose %v598, %v597
    %v600 = vextract.low.u32 %v599
    %v601 = vextract.high.u32 %v599
    %v602 = vmul.u32.u64.compose %v598, %v593
    %v603 = vextract.low.u32 %v602
    %v604 = vextract.high.u32 %v602
    %v605 = vmul.u32 %v598, %v589
    %v606 = vadd.s32 %v601, %v603
    %vm607 = vc.u32 %v601, %v603
    %v608 = vadd.s32 %v604, 1
    %v609 = vsel %vm607, %v608, %v604
    %v610 = vadd.s32 %v605, %v609
    %v611 = vadd.s32 %v610, 536870912
    %v612 = vshrl.u32 %v611, 30
    %v613 = vshll.u32 %v612, 30
    %v614 = vsub.s32 %v610, %v613
    %vm615 = vcmp.lt.s32.totalorder %v614, 0
    %v616 = vsub.s32 0, %v614
    %v617 = vsel %vm615, %v616, %v614
    %v618 = vclz %v617
    %v619 = vsub.s32 %v618, 2
    %vm620 = vcmp.gt.s32.totalorder 0, %v619
    %v621 = vsel %vm620, 0, %v619
    %v622 = vsub.s32 32, %v621
    %v623 = vshll.u32 %v614, %v621
    %v624 = vshrl.u32 %v606, %v622
    %v625 = vor.u32 %v623, %v624
    %v626 = vsub.s32 4294967266, %v621
    %v627 = vadd.s32 %v626, 127
    %v628 = vshll.u32 %v627, 23
    %v629 = vor.u32 4788187, %v628
    %v630 = vand.u32 2147483647, %v629
    %v632 = vcvt.s32.f32 %v625
    %v633 = vmul.f32 %v632, %v630
    %v634 = vxor.u32 %v633, 2147483648
    %v635 = vsel %vm552, %v634, %v633
    %v636 = vsub.s32 4, %v612
    %v637 = vsel %vm552, %v636, %v612
    %v638 = vsel %vm551, %v200, %v635
    %v639 = vsel %vm551, 0, %v637
    %v640 = vcosq.f32.pop %v638
    %v641 = vsinq.f32.pop %v638
    %vm642 = vweird.f32 %v200
    %v643 = vadd.s32 %v639, 3
    %v644 = vand.u32 %v643, 3
    %vm645 = vcmp.lt.s32.totalorder %v644, 2
    %vm646 = vcmp.eq.s32.totalorder %v644, 0
    %v647 = vxor.u32 %v641, 2147483648
    %v648 = vsel %vm646, %v640, %v647
    %vm649 = vcmp.eq.s32.totalorder %v644, 2
    %v650 = vxor.u32 %v640, 2147483648
    %v651 = vsel %vm649, %v650, %v641
    %v652 = vsel %vm645, %v648, %v651
    %v653 = vsel %vm642, nan, %v652
    %v654 = vand.u32 2147483647, %v204
    %vm655 = vcmp.le.f32.partialorder %v654, 0.7853982
    %vm656 = vcmp.lt.s32.totalorder %v204, 0
    %v657 = vand.u32 %v204, 2139095040
    %v658 = vshrl.u32 %v657, 23
    %v659 = vsub.s32 %v658, 127
    %v660 = vand.u32 2147483647, %v204
    %v661 = vand.u32 %v660, 8388607
    %v662 = vor.u32 %v661, 8388608
    %v663 = vsub.s32 0, %v662
    %v664 = vadd.s32 %v659, 1
    %vm665 = vcmp.gt.s32.totalorder %v664, 0
    %v666 = vsel %vm665, %v664, 0
    %v667 = vshrl.u32 %v666, 5
    %v668 = vand.u32 %v666, 31
    %v669 = vsub.s32 32, %v668
    %v670 = vshrl.u32 683565275, %v669
    %v671 = vshll.u32 683565275, %v668
    %v672 = vshrl.u32 2475754826, %v669
    %v673 = vor.u32 %v671, %v672
    %v674 = vshll.u32 2475754826, %v668
    %v675 = vshrl.u32 2131351028, %v669
    %v676 = vor.u32 %v674, %v675
    %v677 = vshll.u32 2131351028, %v668
    %v678 = vshrl.u32 2102212464, %v669
    %v679 = vor.u32 %v677, %v678
    %v680 = vshll.u32 2102212464, %v668
    %v681 = vshrl.u32 920167782, %v669
    %v682 = vor.u32 %v680, %v681
    %v683 = vshll.u32 920167782, %v668
    %v684 = vshrl.u32 1326507024, %v669
    %v685 = vor.u32 %v683, %v684
    %vm686 = vcmp.lt.s32.totalorder %v667, 1
    %vm687 = vcmp.lt.s32.totalorder %v667, 2
    %vm688 = vcmp.lt.s32.totalorder %v667, 3
    %vm689 = vcmp.lt.s32.totalorder %v667, 4
    %v690 = vsel %vm686, %v670, %v673
    %v691 = vsel %vm689, %v679, 2102212464
    %v692 = vsel %vm688, %v676, %v691
    %v693 = vsel %vm687, %v690, %v692
    %v694 = vsel %vm686, %v673, %v676
    %v695 = vsel %vm689, %v682, 920167782
    %v696 = vsel %vm688, %v679, %v695
    %v697 = vsel %vm687, %v694, %v696
    %v698 = vsel %vm686, %v676, %v679
    %v699 = vsel %vm689, %v685, 1326507024
    %v700 = vsel %vm688, %v682, %v699
    %v701 = vsel %vm687, %v698, %v700
    %v702 = vshll.u32 %v662, 8
    %v703 = vmul.u32.u64.compose %v702, %v701
    %v704 = vextract.low.u32 %v703
    %v705 = vextract.high.u32 %v703
    %v706 = vmul.u32.u64.compose %v702, %v697
    %v707 = vextract.low.u32 %v706
    %v708 = vextract.high.u32 %v706
    %v709 = vmul.u32 %v702, %v693
    %v710 = vadd.s32 %v705, %v707
    %vm711 = vc.u32 %v705, %v707
    %v712 = vadd.s32 %v708, 1
    %v713 = vsel %vm711, %v712, %v708
    %v714 = vadd.s32 %v709, %v713
    %v715 = vadd.s32 %v714, 536870912
    %v716 = vshrl.u32 %v715, 30
    %v717 = vshll.u32 %v716, 30
    %v718 = vsub.s32 %v714, %v717
    %vm719 = vcmp.lt.s32.totalorder %v718, 0
    %v720 = vsub.s32 0, %v718
    %v721 = vsel %vm719, %v720, %v718
    %v722 = vclz %v721
    %v723 = vsub.s32 %v722, 2
    %vm724 = vcmp.gt.s32.totalorder 0, %v723
    %v725 = vsel %vm724, 0, %v723
    %v726 = vsub.s32 32, %v725
    %v727 = vshll.u32 %v718, %v725
    %v728 = vshrl.u32 %v710, %v726
    %v729 = vor.u32 %v727, %v728
    %v730 = vsub.s32 4294967266, %v725
    %v731 = vadd.s32 %v730, 127
    %v732 = vshll.u32 %v731, 23
    %v733 = vor.u32 4788187, %v732
    %v734 = vand.u32 2147483647, %v733
    %v736 = vcvt.s32.f32 %v729
    %v737 = vmul.f32 %v736, %v734
    %v738 = vxor.u32 %v737, 2147483648
    %v739 = vsel %vm656, %v738, %v737
    %v740 = vsub.s32 4, %v716
    %v741 = vsel %vm656, %v740, %v716
    %v742 = vsel %vm655, %v204, %v739
    %v743 = vsel %vm655, 0, %v741
    %v744 = vcosq.f32.pop %v742
    %v745 = vsinq.f32.pop %v742
    %vm746 = vweird.f32 %v204
    %v747 = vadd.s32 %v743, 3
    %v748 = vand.u32 %v747, 3
    %vm749 = vcmp.lt.s32.totalorder %v748, 2
    %vm750 = vcmp.eq.s32.totalorder %v748, 0
    %v751 = vxor.u32 %v745, 2147483648
    %v752 = vsel %vm750, %v744, %v751
    %vm753 = vcmp.eq.s32.totalorder %v748, 2
    %v754 = vxor.u32 %v744, 2147483648
    %v755 = vsel %vm753, %v754, %v745
    %v756 = vsel %vm749, %v752, %v755
    %v757 = vsel %vm746, nan, %v756
    %v758 = vand.u32 2147483647, %v206
    %vm759 = vcmp.le.f32.partialorder %v758, 0.7853982
    %vm760 = vcmp.lt.s32.totalorder %v206, 0
    %v761 = vand.u32 %v206, 2139095040
    %v762 = vshrl.u32 %v761, 23
    %v763 = vsub.s32 %v762, 127
    %v764 = vand.u32 2147483647, %v206
    %v765 = vand.u32 %v764, 8388607
    %v766 = vor.u32 %v765, 8388608
    %v767 = vsub.s32 0, %v766
    %v768 = vadd.s32 %v763, 1
    %vm769 = vcmp.gt.s32.totalorder %v768, 0
    %v770 = vsel %vm769, %v768, 0
    %v771 = vshrl.u32 %v770, 5
    %v772 = vand.u32 %v770, 31
    %v773 = vsub.s32 32, %v772
    %v774 = vshrl.u32 683565275, %v773
    %v775 = vshll.u32 683565275, %v772
    %v776 = vshrl.u32 2475754826, %v773
    %v777 = vor.u32 %v775, %v776
    %v778 = vshll.u32 2475754826, %v772
    %v779 = vshrl.u32 2131351028, %v773
    %v780 = vor.u32 %v778, %v779
    %v781 = vshll.u32 2131351028, %v772
    %v782 = vshrl.u32 2102212464, %v773
    %v783 = vor.u32 %v781, %v782
    %v784 = vshll.u32 2102212464, %v772
    %v785 = vshrl.u32 920167782, %v773
    %v786 = vor.u32 %v784, %v785
    %v787 = vshll.u32 920167782, %v772
    %v788 = vshrl.u32 1326507024, %v773
    %v789 = vor.u32 %v787, %v788
    %vm790 = vcmp.lt.s32.totalorder %v771, 1
    %vm791 = vcmp.lt.s32.totalorder %v771, 2
    %vm792 = vcmp.lt.s32.totalorder %v771, 3
    %vm793 = vcmp.lt.s32.totalorder %v771, 4
    %v794 = vsel %vm790, %v774, %v777
    %v795 = vsel %vm793, %v783, 2102212464
    %v796 = vsel %vm792, %v780, %v795
    %v797 = vsel %vm791, %v794, %v796
    %v798 = vsel %vm790, %v777, %v780
    %v799 = vsel %vm793, %v786, 920167782
    %v800 = vsel %vm792, %v783, %v799
    %v801 = vsel %vm791, %v798, %v800
    %v802 = vsel %vm790, %v780, %v783
    %v803 = vsel %vm793, %v789, 1326507024
    %v804 = vsel %vm792, %v786, %v803
    %v805 = vsel %vm791, %v802, %v804
    %v806 = vshll.u32 %v766, 8
    %v807 = vmul.u32.u64.compose %v806, %v805
    %v808 = vextract.low.u32 %v807
    %v809 = vextract.high.u32 %v807
    %v810 = vmul.u32.u64.compose %v806, %v801
    %v811 = vextract.low.u32 %v810
    %v812 = vextract.high.u32 %v810
    %v813 = vmul.u32 %v806, %v797
    %v814 = vadd.s32 %v809, %v811
    %vm815 = vc.u32 %v809, %v811
    %v816 = vadd.s32 %v812, 1
    %v817 = vsel %vm815, %v816, %v812
    %v818 = vadd.s32 %v813, %v817
    %v819 = vadd.s32 %v818, 536870912
    %v820 = vshrl.u32 %v819, 30
    %v821 = vshll.u32 %v820, 30
    %v822 = vsub.s32 %v818, %v821
    %vm823 = vcmp.lt.s32.totalorder %v822, 0
    %v824 = vsub.s32 0, %v822
    %v825 = vsel %vm823, %v824, %v822
    %v826 = vclz %v825
    %v827 = vsub.s32 %v826, 2
    %vm828 = vcmp.gt.s32.totalorder 0, %v827
    %v829 = vsel %vm828, 0, %v827
    %v830 = vsub.s32 32, %v829
    %v831 = vshll.u32 %v822, %v829
    %v832 = vshrl.u32 %v814, %v830
    %v833 = vor.u32 %v831, %v832
    %v834 = vsub.s32 4294967266, %v829
    %v835 = vadd.s32 %v834, 127
    %v836 = vshll.u32 %v835, 23
    %v837 = vor.u32 4788187, %v836
    %v838 = vand.u32 2147483647, %v837
    %v840 = vcvt.s32.f32 %v833
    %v841 = vmul.f32 %v840, %v838
    %v842 = vxor.u32 %v841, 2147483648
    %v843 = vsel %vm760, %v842, %v841
    %v844 = vsub.s32 4, %v820
    %v845 = vsel %vm760, %v844, %v820
    %v846 = vsel %vm759, %v206, %v843
    %v847 = vsel %vm759, 0, %v845
    %v848 = vcosq.f32.pop %v846
    %v849 = vsinq.f32.pop %v846
    %vm850 = vweird.f32 %v206
    %v851 = vadd.s32 %v847, 3
    %v852 = vand.u32 %v851, 3
    %vm853 = vcmp.lt.s32.totalorder %v852, 2
    %vm854 = vcmp.eq.s32.totalorder %v852, 0
    %v855 = vxor.u32 %v849, 2147483648
    %v856 = vsel %vm854, %v848, %v855
    %vm857 = vcmp.eq.s32.totalorder %v852, 2
    %v858 = vxor.u32 %v848, 2147483648
    %v859 = vsel %vm857, %v858, %v849
    %v860 = vsel %vm853, %v856, %v859
    %v861 = vsel %vm850, nan, %v860
    %v862 = vand.u32 2147483647, %v210
    %vm863 = vcmp.le.f32.partialorder %v862, 0.7853982
    %vm864 = vcmp.lt.s32.totalorder %v210, 0
    %v865 = vand.u32 %v210, 2139095040
    %v866 = vshrl.u32 %v865, 23
    %v867 = vsub.s32 %v866, 127
    %v868 = vand.u32 2147483647, %v210
    %v869 = vand.u32 %v868, 8388607
    %v870 = vor.u32 %v869, 8388608
    %v871 = vsub.s32 0, %v870
    %v872 = vadd.s32 %v867, 1
    %vm873 = vcmp.gt.s32.totalorder %v872, 0
    %v874 = vsel %vm873, %v872, 0
    %v875 = vshrl.u32 %v874, 5
    %v876 = vand.u32 %v874, 31
    %v877 = vsub.s32 32, %v876
    %v878 = vshrl.u32 683565275, %v877
    %v879 = vshll.u32 683565275, %v876
    %v880 = vshrl.u32 2475754826, %v877
    %v881 = vor.u32 %v879, %v880
    %v882 = vshll.u32 2475754826, %v876
    %v883 = vshrl.u32 2131351028, %v877
    %v884 = vor.u32 %v882, %v883
    %v885 = vshll.u32 2131351028, %v876
    %v886 = vshrl.u32 2102212464, %v877
    %v887 = vor.u32 %v885, %v886
    %v888 = vshll.u32 2102212464, %v876
    %v889 = vshrl.u32 920167782, %v877
    %v890 = vor.u32 %v888, %v889
    %v891 = vshll.u32 920167782, %v876
    %v892 = vshrl.u32 1326507024, %v877
    %v893 = vor.u32 %v891, %v892
    %vm894 = vcmp.lt.s32.totalorder %v875, 1
    %vm895 = vcmp.lt.s32.totalorder %v875, 2
    %vm896 = vcmp.lt.s32.totalorder %v875, 3
    %vm897 = vcmp.lt.s32.totalorder %v875, 4
    %v898 = vsel %vm894, %v878, %v881
    %v899 = vsel %vm897, %v887, 2102212464
    %v900 = vsel %vm896, %v884, %v899
    %v901 = vsel %vm895, %v898, %v900
    %v902 = vsel %vm894, %v881, %v884
    %v903 = vsel %vm897, %v890, 920167782
    %v904 = vsel %vm896, %v887, %v903
    %v905 = vsel %vm895, %v902, %v904
    %v906 = vsel %vm894, %v884, %v887
    %v907 = vsel %vm897, %v893, 1326507024
    %v908 = vsel %vm896, %v890, %v907
    %v909 = vsel %vm895, %v906, %v908
    %v910 = vshll.u32 %v870, 8
    %v911 = vmul.u32.u64.compose %v910, %v909
    %v912 = vextract.low.u32 %v911
    %v913 = vextract.high.u32 %v911
    %v914 = vmul.u32.u64.compose %v910, %v905
    %v915 = vextract.low.u32 %v914
    %v916 = vextract.high.u32 %v914
    %v917 = vmul.u32 %v910, %v901
    %v918 = vadd.s32 %v913, %v915
    %vm919 = vc.u32 %v913, %v915
    %v920 = vadd.s32 %v916, 1
    %v921 = vsel %vm919, %v920, %v916
    %v922 = vadd.s32 %v917, %v921
    %v923 = vadd.s32 %v922, 536870912
    %v924 = vshrl.u32 %v923, 30
    %v925 = vshll.u32 %v924, 30
    %v926 = vsub.s32 %v922, %v925
    %vm927 = vcmp.lt.s32.totalorder %v926, 0
    %v928 = vsub.s32 0, %v926
    %v929 = vsel %vm927, %v928, %v926
    %v930 = vclz %v929
    %v931 = vsub.s32 %v930, 2
    %vm932 = vcmp.gt.s32.totalorder 0, %v931
    %v933 = vsel %vm932, 0, %v931
    %v934 = vsub.s32 32, %v933
    %v935 = vshll.u32 %v926, %v933
    %v936 = vshrl.u32 %v918, %v934
    %v937 = vor.u32 %v935, %v936
    %v938 = vsub.s32 4294967266, %v933
    %v939 = vadd.s32 %v938, 127
    %v940 = vshll.u32 %v939, 23
    %v941 = vor.u32 4788187, %v940
    %v942 = vand.u32 2147483647, %v941
    %v944 = vcvt.s32.f32 %v937
    %v945 = vmul.f32 %v944, %v942
    %v946 = vxor.u32 %v945, 2147483648
    %v947 = vsel %vm864, %v946, %v945
    %v948 = vsub.s32 4, %v924
    %v949 = vsel %vm864, %v948, %v924
    %v950 = vsel %vm863, %v210, %v947
    %v951 = vsel %vm863, 0, %v949
    %v952 = vcosq.f32.pop %v950
    %v953 = vsinq.f32.pop %v950
    %vm954 = vweird.f32 %v210
    %v955 = vadd.s32 %v951, 3
    %v956 = vand.u32 %v955, 3
    %vm957 = vcmp.lt.s32.totalorder %v956, 2
    %vm958 = vcmp.eq.s32.totalorder %v956, 0
    %v959 = vxor.u32 %v953, 2147483648
    %v960 = vsel %vm958, %v952, %v959
    %vm961 = vcmp.eq.s32.totalorder %v956, 2
    %v962 = vxor.u32 %v952, 2147483648
    %v963 = vsel %vm961, %v962, %v953
    %v964 = vsel %vm957, %v960, %v963
    %v965 = vsel %vm954, nan, %v964
    %v966 = vand.u32 2147483647, %v212
    %vm967 = vcmp.le.f32.partialorder %v966, 0.7853982
    %vm968 = vcmp.lt.s32.totalorder %v212, 0
    %v969 = vand.u32 %v212, 2139095040
    %v970 = vshrl.u32 %v969, 23
    %v971 = vsub.s32 %v970, 127
    %v972 = vand.u32 2147483647, %v212
    %v973 = vand.u32 %v972, 8388607
    %v974 = vor.u32 %v973, 8388608
    %v975 = vsub.s32 0, %v974
    %v976 = vadd.s32 %v971, 1
    %vm977 = vcmp.gt.s32.totalorder %v976, 0
    %v978 = vsel %vm977, %v976, 0
    %v979 = vshrl.u32 %v978, 5
    %v980 = vand.u32 %v978, 31
    %v981 = vsub.s32 32, %v980
    %v982 = vshrl.u32 683565275, %v981
    %v983 = vshll.u32 683565275, %v980
    %v984 = vshrl.u32 2475754826, %v981
    %v985 = vor.u32 %v983, %v984
    %v986 = vshll.u32 2475754826, %v980
    %v987 = vshrl.u32 2131351028, %v981
    %v988 = vor.u32 %v986, %v987
    %v989 = vshll.u32 2131351028, %v980
    %v990 = vshrl.u32 2102212464, %v981
    %v991 = vor.u32 %v989, %v990
    %v992 = vshll.u32 2102212464, %v980
    %v993 = vshrl.u32 920167782, %v981
    %v994 = vor.u32 %v992, %v993
    %v995 = vshll.u32 920167782, %v980
    %v996 = vshrl.u32 1326507024, %v981
    %v997 = vor.u32 %v995, %v996
    %vm998 = vcmp.lt.s32.totalorder %v979, 1
    %vm999 = vcmp.lt.s32.totalorder %v979, 2
    %vm1000 = vcmp.lt.s32.totalorder %v979, 3
    %vm1001 = vcmp.lt.s32.totalorder %v979, 4
    %v1002 = vsel %vm998, %v982, %v985
    %v1003 = vsel %vm1001, %v991, 2102212464
    %v1004 = vsel %vm1000, %v988, %v1003
    %v1005 = vsel %vm999, %v1002, %v1004
    %v1006 = vsel %vm998, %v985, %v988
    %v1007 = vsel %vm1001, %v994, 920167782
    %v1008 = vsel %vm1000, %v991, %v1007
    %v1009 = vsel %vm999, %v1006, %v1008
    %v1010 = vsel %vm998, %v988, %v991
    %v1011 = vsel %vm1001, %v997, 1326507024
    %v1012 = vsel %vm1000, %v994, %v1011
    %v1013 = vsel %vm999, %v1010, %v1012
    %v1014 = vshll.u32 %v974, 8
    %v1015 = vmul.u32.u64.compose %v1014, %v1013
    %v1016 = vextract.low.u32 %v1015
    %v1017 = vextract.high.u32 %v1015
    %v1018 = vmul.u32.u64.compose %v1014, %v1009
    %v1019 = vextract.low.u32 %v1018
    %v1020 = vextract.high.u32 %v1018
    %v1021 = vmul.u32 %v1014, %v1005
    %v1022 = vadd.s32 %v1017, %v1019
    %vm1023 = vc.u32 %v1017, %v1019
    %v1024 = vadd.s32 %v1020, 1
    %v1025 = vsel %vm1023, %v1024, %v1020
    %v1026 = vadd.s32 %v1021, %v1025
    %v1027 = vadd.s32 %v1026, 536870912
    %v1028 = vshrl.u32 %v1027, 30
    %v1029 = vshll.u32 %v1028, 30
    %v1030 = vsub.s32 %v1026, %v1029
    %vm1031 = vcmp.lt.s32.totalorder %v1030, 0
    %v1032 = vsub.s32 0, %v1030
    %v1033 = vsel %vm1031, %v1032, %v1030
    %v1034 = vclz %v1033
    %v1035 = vsub.s32 %v1034, 2
    %vm1036 = vcmp.gt.s32.totalorder 0, %v1035
    %v1037 = vsel %vm1036, 0, %v1035
    %v1038 = vsub.s32 32, %v1037
    %v1039 = vshll.u32 %v1030, %v1037
    %v1040 = vshrl.u32 %v1022, %v1038
    %v1041 = vor.u32 %v1039, %v1040
    %v1042 = vsub.s32 4294967266, %v1037
    %v1043 = vadd.s32 %v1042, 127
    %v1044 = vshll.u32 %v1043, 23
    %v1045 = vor.u32 4788187, %v1044
    %v1046 = vand.u32 2147483647, %v1045
    %v1048 = vcvt.s32.f32 %v1041
    %v1049 = vmul.f32 %v1048, %v1046
    %v1050 = vxor.u32 %v1049, 2147483648
    %v1051 = vsel %vm968, %v1050, %v1049
    %v1052 = vsub.s32 4, %v1028
    %v1053 = vsel %vm968, %v1052, %v1028
    %v1054 = vsel %vm967, %v212, %v1051
    %v1055 = vsel %vm967, 0, %v1053
    %v1056 = vcosq.f32.pop %v1054
    %v1057 = vsinq.f32.pop %v1054
    %vm1058 = vweird.f32 %v212
    %v1059 = vadd.s32 %v1055, 3
    %v1060 = vand.u32 %v1059, 3
    %vm1061 = vcmp.lt.s32.totalorder %v1060, 2
    %vm1062 = vcmp.eq.s32.totalorder %v1060, 0
    %v1063 = vxor.u32 %v1057, 2147483648
    %v1064 = vsel %vm1062, %v1056, %v1063
    %vm1065 = vcmp.eq.s32.totalorder %v1060, 2
    %v1066 = vxor.u32 %v1056, 2147483648
    %v1067 = vsel %vm1065, %v1066, %v1057
    %v1068 = vsel %vm1061, %v1064, %v1067
    %v1069 = vsel %vm1058, nan, %v1068
    %v1070 = vmax.f32 %v216, 0.0
    %v1071 = vmax.f32 %v218, 0.0
    %v1072 = vmax.f32 %v222, 0.0
    %v1073 = vmax.f32 %v224, 0.0
    %v1074 = vmax.f32 %v228, 0.0
    %v1075 = vmax.f32 %v230, 0.0
    %v1076 = vmax.f32 %v234, 0.0
    %v1077 = vmax.f32 %v236, 0.0
    %v1078 = vld [vmem:[%s3] sm:$0xff]
    %v1079 = vld [vmem:[%s3 + $0x8] sm:$0xff]
    %v1080 = vld [vmem:[%s3 + $0x10] sm:$0xff]
    %v1081 = vld [vmem:[%s3 + $0x18] sm:$0xff]
    %v1082 = vld [vmem:[%s4] sm:$0xff]
    %v1083 = vld [vmem:[%s4 + $0x8] sm:$0xff]
    %v1084 = vld [vmem:[%s4 + $0x10] sm:$0xff]
    %v1085 = vld [vmem:[%s4 + $0x18] sm:$0xff]
    %1087 = vset.pattern.permute.xlu0 0
    %1088 = vperm.xlu0 %1087, %v1082
    %v1089 = vpop.permute.xlu0 %1088
    %1092 = vset.pattern.permute.xlu0 0
    %1093 = vperm.xlu0 %1092, %v1083
    %v1094 = vpop.permute.xlu0 %1093
    %1097 = vset.pattern.permute.xlu0 0
    %1098 = vperm.xlu0 %1097, %v1084
    %v1099 = vpop.permute.xlu0 %1098
    %1102 = vset.pattern.permute.xlu0 0
    %1103 = vperm.xlu0 %1102, %v1085
    %v1104 = vpop.permute.xlu0 %1103
    %vm1106 = vcmask 261120
    %v1108 = vsel %vm1106, %v1078, 0
    %v1111 = vsel %vm1106, %v1079, 0
    %v1114 = vsel %vm1106, %v1080, 0
    %v1117 = vsel %vm1106, %v1081, 0
    %1119 = vmatprep.subr.mxu0 0.0
    %1120 = vmatpush1.msra.mxu0 0.0
    %1121 = vmatprep.subr.mxu0 0.0
    %1122 = vmatpush1.msra.mxu0 0.0
    %1123 = vmatprep.subr.mxu0 0.0
    %1124 = vmatpush1.msra.mxu0 0.0
    %1125 = vmatprep.subr.mxu0 0.0
    %1126 = vmatpush1.msra.mxu0 0.0
    %1127 = vmatprep.subr.mxu0 0.0
    %1128 = vmatpush1.msra.mxu0 0.0
    %1129 = vmatprep.subr.mxu0 0.0
    %1130 = vmatpush1.msra.mxu0 0.0
    %1131 = vmatprep.subr.mxu0 0.0
    %1132 = vmatpush1.msra.mxu0 0.0
    %1133 = vmatprep.subr.mxu0 0.0
    %1134 = vmatpush1.msra.mxu0 0.0
    %1135 = vmatprep.subr.mxu0 0.0
    %1136 = vmatpush1.msra.mxu0 0.0
    %1137 = vmatprep.subr.mxu0 0.0
    %1138 = vmatpush1.msra.mxu0 0.0
    %1139 = vmatprep.subr.mxu0 0.0
    %1140 = vmatpush1.msra.mxu0 0.0
    %1141 = vmatprep.subr.mxu0 0.0
    %1142 = vmatpush1.msra.mxu0 0.0
    %1143 = vmatprep.subr.mxu0 %v1069
    %1144 = vmatpush1.msra.mxu0 %v965
    %1145 = vmatprep.subr.mxu0 %v861
    %1146 = vmatpush1.msra.mxu0 %v757
    %1147 = vmatprep.subr.mxu0 %v653
    %1148 = vmatpush1.msra.mxu0 %v549
    %1149 = vmatprep.subr.mxu0 %v445
    %1150 = vmatpush1.msra.mxu0 %v341
    %1151 = vmatprep.subr.mxu0 0.0
    %1152 = vmatpush2.msra.mxu0 0.0
    %1153 = vmatprep.subr.mxu0 0.0
    %1154 = vmatpush2.msra.mxu0 0.0
    %1155 = vmatprep.subr.mxu0 0.0
    %1156 = vmatpush2.msra.mxu0 0.0
    %1157 = vmatprep.subr.mxu0 0.0
    %1158 = vmatpush2.msra.mxu0 0.0
    %1159 = vmatprep.subr.mxu0 0.0
    %1160 = vmatpush2.msra.mxu0 0.0
    %1161 = vmatprep.subr.mxu0 0.0
    %1162 = vmatpush2.msra.mxu0 0.0
    %1163 = vmatprep.subr.mxu0 0.0
    %1164 = vmatpush2.msra.mxu0 0.0
    %1165 = vmatprep.subr.mxu0 0.0
    %1166 = vmatpush2.msra.mxu0 0.0
    %1167 = vmatprep.subr.mxu0 0.0
    %1168 = vmatpush2.msra.mxu0 0.0
    %1169 = vmatprep.subr.mxu0 0.0
    %1170 = vmatpush2.msra.mxu0 0.0
    %1171 = vmatprep.subr.mxu0 0.0
    %1172 = vmatpush2.msra.mxu0 0.0
    %1173 = vmatprep.subr.mxu0 0.0
    %1174 = vmatpush2.msra.mxu0 0.0
    %1175 = vmatprep.subr.mxu0 0.0
    %1176 = vmatpush2.msra.mxu0 0.0
    %1177 = vmatprep.subr.mxu0 0.0
    %1178 = vmatpush2.msra.mxu0 0.0
    %1179 = vmatprep.subr.mxu0 0.0
    %1180 = vmatpush2.msra.mxu0 0.0
    %1181 = vmatprep.subr.mxu0 0.0
    %1182 = vmatpush2.msra.mxu0 0.0
    %1183 = vmatprep.mubr.f32.mxu0 0.0
    %1184 = vmatmul.mubr.f32.gmra.mxu0 %v1108
    %v1185 = vpop.f32.mrf.mxu0
    %v1186 = vadd.f32 %v1089, %v1185
    %v1187 = vpop.f32.mrf.mxu0
    %v1188 = vadd.f32 %v1089, %v1187
    %1189 = vmatprep.mubr.f32.mxu0 0.0
    %1190 = vmatmul.mubr.f32.gmra.mxu0 %v1111
    %v1191 = vpop.f32.mrf.mxu0
    %v1192 = vadd.f32 %v1094, %v1191
    %v1193 = vpop.f32.mrf.mxu0
    %v1194 = vadd.f32 %v1094, %v1193
    %1195 = vmatprep.mubr.f32.mxu0 0.0
    %1196 = vmatmul.mubr.f32.gmra.mxu0 %v1114
    %v1197 = vpop.f32.mrf.mxu0
    %v1198 = vadd.f32 %v1099, %v1197
    %v1199 = vpop.f32.mrf.mxu0
    %v1200 = vadd.f32 %v1099, %v1199
    %1201 = vmatprep.mubr.f32.mxu0 0.0
    %1202 = vmatmul.mubr.f32.gmra.mxu0 %v1117
    %v1203 = vpop.f32.mrf.mxu0
    %v1204 = vadd.f32 %v1104, %v1203
    %v1205 = vpop.f32.mrf.mxu0
    %v1206 = vadd.f32 %v1104, %v1205
    %1207 = vdwg.mxu0
    %v1208 = vld [vmem:[%s5] sm:$0xff]
    %v1209 = vld [vmem:[%s5 + $0x8] sm:$0xff]
    %v1210 = vld [vmem:[%s5 + $0x10] sm:$0xff]
    %v1211 = vld [vmem:[%s5 + $0x18] sm:$0xff]
    %v1212 = vld [vmem:[%s6] sm:$0xff]
    %v1213 = vld [vmem:[%s6 + $0x8] sm:$0xff]
    %v1214 = vld [vmem:[%s6 + $0x10] sm:$0xff]
    %v1215 = vld [vmem:[%s6 + $0x18] sm:$0xff]
    %1217 = vset.pattern.permute.xlu0 0
    %1218 = vperm.xlu0 %1217, %v1212
    %v1219 = vpop.permute.xlu0 %1218
    %1222 = vset.pattern.permute.xlu0 0
    %1223 = vperm.xlu0 %1222, %v1213
    %v1224 = vpop.permute.xlu0 %1223
    %1227 = vset.pattern.permute.xlu0 0
    %1228 = vperm.xlu0 %1227, %v1214
    %v1229 = vpop.permute.xlu0 %1228
    %1232 = vset.pattern.permute.xlu0 0
    %1233 = vperm.xlu0 %1232, %v1215
    %v1234 = vpop.permute.xlu0 %1233
    %v1237 = vsel %vm1106, %v1208, 0
    %v1240 = vsel %vm1106, %v1209, 0
    %v1243 = vsel %vm1106, %v1210, 0
    %v1246 = vsel %vm1106, %v1211, 0
    %1248 = vmatprep.subr.mxu0 0.0
    %1249 = vmatpush1.msra.mxu0 0.0
    %1250 = vmatprep.subr.mxu0 0.0
    %1251 = vmatpush1.msra.mxu0 0.0
    %1252 = vmatprep.subr.mxu0 0.0
    %1253 = vmatpush1.msra.mxu0 0.0
    %1254 = vmatprep.subr.mxu0 0.0
    %1255 = vmatpush1.msra.mxu0 0.0
    %1256 = vmatprep.subr.mxu0 0.0
    %1257 = vmatpush1.msra.mxu0 0.0
    %1258 = vmatprep.subr.mxu0 0.0
    %1259 = vmatpush1.msra.mxu0 0.0
    %1260 = vmatprep.subr.mxu0 0.0
    %1261 = vmatpush1.msra.mxu0 0.0
    %1262 = vmatprep.subr.mxu0 0.0
    %1263 = vmatpush1.msra.mxu0 0.0
    %1264 = vmatprep.subr.mxu0 0.0
    %1265 = vmatpush1.msra.mxu0 0.0
    %1266 = vmatprep.subr.mxu0 0.0
    %1267 = vmatpush1.msra.mxu0 0.0
    %1268 = vmatprep.subr.mxu0 0.0
    %1269 = vmatpush1.msra.mxu0 0.0
    %1270 = vmatprep.subr.mxu0 0.0
    %1271 = vmatpush1.msra.mxu0 0.0
    %1272 = vmatprep.subr.mxu0 %v1077
    %1273 = vmatpush1.msra.mxu0 %v1076
    %1274 = vmatprep.subr.mxu0 %v1075
    %1275 = vmatpush1.msra.mxu0 %v1074
    %1276 = vmatprep.subr.mxu0 %v1073
    %1277 = vmatpush1.msra.mxu0 %v1072
    %1278 = vmatprep.subr.mxu0 %v1071
    %1279 = vmatpush1.msra.mxu0 %v1070
    %1280 = vmatprep.subr.mxu0 0.0
    %1281 = vmatpush2.msra.mxu0 0.0
    %1282 = vmatprep.subr.mxu0 0.0
    %1283 = vmatpush2.msra.mxu0 0.0
    %1284 = vmatprep.subr.mxu0 0.0
    %1285 = vmatpush2.msra.mxu0 0.0
    %1286 = vmatprep.subr.mxu0 0.0
    %1287 = vmatpush2.msra.mxu0 0.0
    %1288 = vmatprep.subr.mxu0 0.0
    %1289 = vmatpush2.msra.mxu0 0.0
    %1290 = vmatprep.subr.mxu0 0.0
    %1291 = vmatpush2.msra.mxu0 0.0
    %1292 = vmatprep.subr.mxu0 0.0
    %1293 = vmatpush2.msra.mxu0 0.0
    %1294 = vmatprep.subr.mxu0 0.0
    %1295 = vmatpush2.msra.mxu0 0.0
    %1296 = vmatprep.subr.mxu0 0.0
    %1297 = vmatpush2.msra.mxu0 0.0
    %1298 = vmatprep.subr.mxu0 0.0
    %1299 = vmatpush2.msra.mxu0 0.0
    %1300 = vmatprep.subr.mxu0 0.0
    %1301 = vmatpush2.msra.mxu0 0.0
    %1302 = vmatprep.subr.mxu0 0.0
    %1303 = vmatpush2.msra.mxu0 0.0
    %1304 = vmatprep.subr.mxu0 0.0
    %1305 = vmatpush2.msra.mxu0 0.0
    %1306 = vmatprep.subr.mxu0 0.0
    %1307 = vmatpush2.msra.mxu0 0.0
    %1308 = vmatprep.subr.mxu0 0.0
    %1309 = vmatpush2.msra.mxu0 0.0
    %1310 = vmatprep.subr.mxu0 0.0
    %1311 = vmatpush2.msra.mxu0 0.0
    %1312 = vmatprep.mubr.f32.mxu0 0.0
    %1313 = vmatmul.mubr.f32.gmra.mxu0 %v1237
    %v1314 = vpop.f32.mrf.mxu0
    %v1315 = vadd.f32 %v1219, %v1314
    %v1316 = vpop.f32.mrf.mxu0
    %v1317 = vadd.f32 %v1219, %v1316
    %1318 = vmatprep.mubr.f32.mxu0 0.0
    %1319 = vmatmul.mubr.f32.gmra.mxu0 %v1240
    %v1320 = vpop.f32.mrf.mxu0
    %v1321 = vadd.f32 %v1224, %v1320
    %v1322 = vpop.f32.mrf.mxu0
    %v1323 = vadd.f32 %v1224, %v1322
    %1324 = vmatprep.mubr.f32.mxu0 0.0
    %1325 = vmatmul.mubr.f32.gmra.mxu0 %v1243
    %v1326 = vpop.f32.mrf.mxu0
    %v1327 = vadd.f32 %v1229, %v1326
    %v1328 = vpop.f32.mrf.mxu0
    %v1329 = vadd.f32 %v1229, %v1328
    %1330 = vmatprep.mubr.f32.mxu0 0.0
    %1331 = vmatmul.mubr.f32.gmra.mxu0 %v1246
    %v1332 = vpop.f32.mrf.mxu0
    %v1333 = vadd.f32 %v1234, %v1332
    %v1334 = vpop.f32.mrf.mxu0
    %v1335 = vadd.f32 %v1234, %v1334
    %1336 = vdwg.mxu0
    %v1337 = vand.u32 2147483647, %v1186
    %vm1338 = vcmp.le.f32.partialorder %v1337, 0.7853982
    %vm1339 = vcmp.lt.s32.totalorder %v1186, 0
    %v1340 = vand.u32 %v1186, 2139095040
    %v1341 = vshrl.u32 %v1340, 23
    %v1342 = vsub.s32 %v1341, 127
    %v1343 = vand.u32 2147483647, %v1186
    %v1344 = vand.u32 %v1343, 8388607
    %v1345 = vor.u32 %v1344, 8388608
    %v1346 = vsub.s32 0, %v1345
    %v1347 = vadd.s32 %v1342, 1
    %vm1348 = vcmp.gt.s32.totalorder %v1347, 0
    %v1349 = vsel %vm1348, %v1347, 0
    %v1350 = vshrl.u32 %v1349, 5
    %v1351 = vand.u32 %v1349, 31
    %v1352 = vsub.s32 32, %v1351
    %v1353 = vshrl.u32 683565275, %v1352
    %v1354 = vshll.u32 683565275, %v1351
    %v1355 = vshrl.u32 2475754826, %v1352
    %v1356 = vor.u32 %v1354, %v1355
    %v1357 = vshll.u32 2475754826, %v1351
    %v1358 = vshrl.u32 2131351028, %v1352
    %v1359 = vor.u32 %v1357, %v1358
    %v1360 = vshll.u32 2131351028, %v1351
    %v1361 = vshrl.u32 2102212464, %v1352
    %v1362 = vor.u32 %v1360, %v1361
    %v1363 = vshll.u32 2102212464, %v1351
    %v1364 = vshrl.u32 920167782, %v1352
    %v1365 = vor.u32 %v1363, %v1364
    %v1366 = vshll.u32 920167782, %v1351
    %v1367 = vshrl.u32 1326507024, %v1352
    %v1368 = vor.u32 %v1366, %v1367
    %vm1369 = vcmp.lt.s32.totalorder %v1350, 1
    %vm1370 = vcmp.lt.s32.totalorder %v1350, 2
    %vm1371 = vcmp.lt.s32.totalorder %v1350, 3
    %vm1372 = vcmp.lt.s32.totalorder %v1350, 4
    %v1373 = vsel %vm1369, %v1353, %v1356
    %v1374 = vsel %vm1372, %v1362, 2102212464
    %v1375 = vsel %vm1371, %v1359, %v1374
    %v1376 = vsel %vm1370, %v1373, %v1375
    %v1377 = vsel %vm1369, %v1356, %v1359
    %v1378 = vsel %vm1372, %v1365, 920167782
    %v1379 = vsel %vm1371, %v1362, %v1378
    %v1380 = vsel %vm1370, %v1377, %v1379
    %v1381 = vsel %vm1369, %v1359, %v1362
    %v1382 = vsel %vm1372, %v1368, 1326507024
    %v1383 = vsel %vm1371, %v1365, %v1382
    %v1384 = vsel %vm1370, %v1381, %v1383
    %v1385 = vshll.u32 %v1345, 8
    %v1386 = vmul.u32.u64.compose %v1385, %v1384
    %v1387 = vextract.low.u32 %v1386
    %v1388 = vextract.high.u32 %v1386
    %v1389 = vmul.u32.u64.compose %v1385, %v1380
    %v1390 = vextract.low.u32 %v1389
    %v1391 = vextract.high.u32 %v1389
    %v1392 = vmul.u32 %v1385, %v1376
    %v1393 = vadd.s32 %v1388, %v1390
    %vm1394 = vc.u32 %v1388, %v1390
    %v1395 = vadd.s32 %v1391, 1
    %v1396 = vsel %vm1394, %v1395, %v1391
    %v1397 = vadd.s32 %v1392, %v1396
    %v1398 = vadd.s32 %v1397, 536870912
    %v1399 = vshrl.u32 %v1398, 30
    %v1400 = vshll.u32 %v1399, 30
    %v1401 = vsub.s32 %v1397, %v1400
    %vm1402 = vcmp.lt.s32.totalorder %v1401, 0
    %v1403 = vsub.s32 0, %v1401
    %v1404 = vsel %vm1402, %v1403, %v1401
    %v1405 = vclz %v1404
    %v1406 = vsub.s32 %v1405, 2
    %vm1407 = vcmp.gt.s32.totalorder 0, %v1406
    %v1408 = vsel %vm1407, 0, %v1406
    %v1409 = vsub.s32 32, %v1408
    %v1410 = vshll.u32 %v1401, %v1408
    %v1411 = vshrl.u32 %v1393, %v1409
    %v1412 = vor.u32 %v1410, %v1411
    %v1413 = vsub.s32 4294967266, %v1408
    %v1414 = vadd.s32 %v1413, 127
    %v1415 = vshll.u32 %v1414, 23
    %v1416 = vor.u32 4788187, %v1415
    %v1417 = vand.u32 2147483647, %v1416
    %v1419 = vcvt.s32.f32 %v1412
    %v1420 = vmul.f32 %v1419, %v1417
    %v1421 = vxor.u32 %v1420, 2147483648
    %v1422 = vsel %vm1339, %v1421, %v1420
    %v1423 = vsub.s32 4, %v1399
    %v1424 = vsel %vm1339, %v1423, %v1399
    %v1425 = vsel %vm1338, %v1186, %v1422
    %v1426 = vsel %vm1338, 0, %v1424
    %v1427 = vcosq.f32.pop %v1425
    %v1428 = vsinq.f32.pop %v1425
    %vm1429 = vweird.f32 %v1186
    %v1430 = vadd.s32 %v1426, 3
    %v1431 = vand.u32 %v1430, 3
    %vm1432 = vcmp.lt.s32.totalorder %v1431, 2
    %vm1433 = vcmp.eq.s32.totalorder %v1431, 0
    %v1434 = vxor.u32 %v1428, 2147483648
    %v1435 = vsel %vm1433, %v1427, %v1434
    %vm1436 = vcmp.eq.s32.totalorder %v1431, 2
    %v1437 = vxor.u32 %v1427, 2147483648
    %v1438 = vsel %vm1436, %v1437, %v1428
    %v1439 = vsel %vm1432, %v1435, %v1438
    %v1440 = vsel %vm1429, nan, %v1439
    %v1441 = vand.u32 2147483647, %v1188
    %vm1442 = vcmp.le.f32.partialorder %v1441, 0.7853982
    %vm1443 = vcmp.lt.s32.totalorder %v1188, 0
    %v1444 = vand.u32 %v1188, 2139095040
    %v1445 = vshrl.u32 %v1444, 23
    %v1446 = vsub.s32 %v1445, 127
    %v1447 = vand.u32 2147483647, %v1188
    %v1448 = vand.u32 %v1447, 8388607
    %v1449 = vor.u32 %v1448, 8388608
    %v1450 = vsub.s32 0, %v1449
    %v1451 = vadd.s32 %v1446, 1
    %vm1452 = vcmp.gt.s32.totalorder %v1451, 0
    %v1453 = vsel %vm1452, %v1451, 0
    %v1454 = vshrl.u32 %v1453, 5
    %v1455 = vand.u32 %v1453, 31
    %v1456 = vsub.s32 32, %v1455
    %v1457 = vshrl.u32 683565275, %v1456
    %v1458 = vshll.u32 683565275, %v1455
    %v1459 = vshrl.u32 2475754826, %v1456
    %v1460 = vor.u32 %v1458, %v1459
    %v1461 = vshll.u32 2475754826, %v1455
    %v1462 = vshrl.u32 2131351028, %v1456
    %v1463 = vor.u32 %v1461, %v1462
    %v1464 = vshll.u32 2131351028, %v1455
    %v1465 = vshrl.u32 2102212464, %v1456
    %v1466 = vor.u32 %v1464, %v1465
    %v1467 = vshll.u32 2102212464, %v1455
    %v1468 = vshrl.u32 920167782, %v1456
    %v1469 = vor.u32 %v1467, %v1468
    %v1470 = vshll.u32 920167782, %v1455
    %v1471 = vshrl.u32 1326507024, %v1456
    %v1472 = vor.u32 %v1470, %v1471
    %vm1473 = vcmp.lt.s32.totalorder %v1454, 1
    %vm1474 = vcmp.lt.s32.totalorder %v1454, 2
    %vm1475 = vcmp.lt.s32.totalorder %v1454, 3
    %vm1476 = vcmp.lt.s32.totalorder %v1454, 4
    %v1477 = vsel %vm1473, %v1457, %v1460
    %v1478 = vsel %vm1476, %v1466, 2102212464
    %v1479 = vsel %vm1475, %v1463, %v1478
    %v1480 = vsel %vm1474, %v1477, %v1479
    %v1481 = vsel %vm1473, %v1460, %v1463
    %v1482 = vsel %vm1476, %v1469, 920167782
    %v1483 = vsel %vm1475, %v1466, %v1482
    %v1484 = vsel %vm1474, %v1481, %v1483
    %v1485 = vsel %vm1473, %v1463, %v1466
    %v1486 = vsel %vm1476, %v1472, 1326507024
    %v1487 = vsel %vm1475, %v1469, %v1486
    %v1488 = vsel %vm1474, %v1485, %v1487
    %v1489 = vshll.u32 %v1449, 8
    %v1490 = vmul.u32.u64.compose %v1489, %v1488
    %v1491 = vextract.low.u32 %v1490
    %v1492 = vextract.high.u32 %v1490
    %v1493 = vmul.u32.u64.compose %v1489, %v1484
    %v1494 = vextract.low.u32 %v1493
    %v1495 = vextract.high.u32 %v1493
    %v1496 = vmul.u32 %v1489, %v1480
    %v1497 = vadd.s32 %v1492, %v1494
    %vm1498 = vc.u32 %v1492, %v1494
    %v1499 = vadd.s32 %v1495, 1
    %v1500 = vsel %vm1498, %v1499, %v1495
    %v1501 = vadd.s32 %v1496, %v1500
    %v1502 = vadd.s32 %v1501, 536870912
    %v1503 = vshrl.u32 %v1502, 30
    %v1504 = vshll.u32 %v1503, 30
    %v1505 = vsub.s32 %v1501, %v1504
    %vm1506 = vcmp.lt.s32.totalorder %v1505, 0
    %v1507 = vsub.s32 0, %v1505
    %v1508 = vsel %vm1506, %v1507, %v1505
    %v1509 = vclz %v1508
    %v1510 = vsub.s32 %v1509, 2
    %vm1511 = vcmp.gt.s32.totalorder 0, %v1510
    %v1512 = vsel %vm1511, 0, %v1510
    %v1513 = vsub.s32 32, %v1512
    %v1514 = vshll.u32 %v1505, %v1512
    %v1515 = vshrl.u32 %v1497, %v1513
    %v1516 = vor.u32 %v1514, %v1515
    %v1517 = vsub.s32 4294967266, %v1512
    %v1518 = vadd.s32 %v1517, 127
    %v1519 = vshll.u32 %v1518, 23
    %v1520 = vor.u32 4788187, %v1519
    %v1521 = vand.u32 2147483647, %v1520
    %v1523 = vcvt.s32.f32 %v1516
    %v1524 = vmul.f32 %v1523, %v1521
    %v1525 = vxor.u32 %v1524, 2147483648
    %v1526 = vsel %vm1443, %v1525, %v1524
    %v1527 = vsub.s32 4, %v1503
    %v1528 = vsel %vm1443, %v1527, %v1503
    %v1529 = vsel %vm1442, %v1188, %v1526
    %v1530 = vsel %vm1442, 0, %v1528
    %v1531 = vcosq.f32.pop %v1529
    %v1532 = vsinq.f32.pop %v1529
    %vm1533 = vweird.f32 %v1188
    %v1534 = vadd.s32 %v1530, 3
    %v1535 = vand.u32 %v1534, 3
    %vm1536 = vcmp.lt.s32.totalorder %v1535, 2
    %vm1537 = vcmp.eq.s32.totalorder %v1535, 0
    %v1538 = vxor.u32 %v1532, 2147483648
    %v1539 = vsel %vm1537, %v1531, %v1538
    %vm1540 = vcmp.eq.s32.totalorder %v1535, 2
    %v1541 = vxor.u32 %v1531, 2147483648
    %v1542 = vsel %vm1540, %v1541, %v1532
    %v1543 = vsel %vm1536, %v1539, %v1542
    %v1544 = vsel %vm1533, nan, %v1543
    %v1545 = vand.u32 2147483647, %v1192
    %vm1546 = vcmp.le.f32.partialorder %v1545, 0.7853982
    %vm1547 = vcmp.lt.s32.totalorder %v1192, 0
    %v1548 = vand.u32 %v1192, 2139095040
    %v1549 = vshrl.u32 %v1548, 23
    %v1550 = vsub.s32 %v1549, 127
    %v1551 = vand.u32 2147483647, %v1192
    %v1552 = vand.u32 %v1551, 8388607
    %v1553 = vor.u32 %v1552, 8388608
    %v1554 = vsub.s32 0, %v1553
    %v1555 = vadd.s32 %v1550, 1
    %vm1556 = vcmp.gt.s32.totalorder %v1555, 0
    %v1557 = vsel %vm1556, %v1555, 0
    %v1558 = vshrl.u32 %v1557, 5
    %v1559 = vand.u32 %v1557, 31
    %v1560 = vsub.s32 32, %v1559
    %v1561 = vshrl.u32 683565275, %v1560
    %v1562 = vshll.u32 683565275, %v1559
    %v1563 = vshrl.u32 2475754826, %v1560
    %v1564 = vor.u32 %v1562, %v1563
    %v1565 = vshll.u32 2475754826, %v1559
    %v1566 = vshrl.u32 2131351028, %v1560
    %v1567 = vor.u32 %v1565, %v1566
    %v1568 = vshll.u32 2131351028, %v1559
    %v1569 = vshrl.u32 2102212464, %v1560
    %v1570 = vor.u32 %v1568, %v1569
    %v1571 = vshll.u32 2102212464, %v1559
    %v1572 = vshrl.u32 920167782, %v1560
    %v1573 = vor.u32 %v1571, %v1572
    %v1574 = vshll.u32 920167782, %v1559
    %v1575 = vshrl.u32 1326507024, %v1560
    %v1576 = vor.u32 %v1574, %v1575
    %vm1577 = vcmp.lt.s32.totalorder %v1558, 1
    %vm1578 = vcmp.lt.s32.totalorder %v1558, 2
    %vm1579 = vcmp.lt.s32.totalorder %v1558, 3
    %vm1580 = vcmp.lt.s32.totalorder %v1558, 4
    %v1581 = vsel %vm1577, %v1561, %v1564
    %v1582 = vsel %vm1580, %v1570, 2102212464
    %v1583 = vsel %vm1579, %v1567, %v1582
    %v1584 = vsel %vm1578, %v1581, %v1583
    %v1585 = vsel %vm1577, %v1564, %v1567
    %v1586 = vsel %vm1580, %v1573, 920167782
    %v1587 = vsel %vm1579, %v1570, %v1586
    %v1588 = vsel %vm1578, %v1585, %v1587
    %v1589 = vsel %vm1577, %v1567, %v1570
    %v1590 = vsel %vm1580, %v1576, 1326507024
    %v1591 = vsel %vm1579, %v1573, %v1590
    %v1592 = vsel %vm1578, %v1589, %v1591
    %v1593 = vshll.u32 %v1553, 8
    %v1594 = vmul.u32.u64.compose %v1593, %v1592
    %v1595 = vextract.low.u32 %v1594
    %v1596 = vextract.high.u32 %v1594
    %v1597 = vmul.u32.u64.compose %v1593, %v1588
    %v1598 = vextract.low.u32 %v1597
    %v1599 = vextract.high.u32 %v1597
    %v1600 = vmul.u32 %v1593, %v1584
    %v1601 = vadd.s32 %v1596, %v1598
    %vm1602 = vc.u32 %v1596, %v1598
    %v1603 = vadd.s32 %v1599, 1
    %v1604 = vsel %vm1602, %v1603, %v1599
    %v1605 = vadd.s32 %v1600, %v1604
    %v1606 = vadd.s32 %v1605, 536870912
    %v1607 = vshrl.u32 %v1606, 30
    %v1608 = vshll.u32 %v1607, 30
    %v1609 = vsub.s32 %v1605, %v1608
    %vm1610 = vcmp.lt.s32.totalorder %v1609, 0
    %v1611 = vsub.s32 0, %v1609
    %v1612 = vsel %vm1610, %v1611, %v1609
    %v1613 = vclz %v1612
    %v1614 = vsub.s32 %v1613, 2
    %vm1615 = vcmp.gt.s32.totalorder 0, %v1614
    %v1616 = vsel %vm1615, 0, %v1614
    %v1617 = vsub.s32 32, %v1616
    %v1618 = vshll.u32 %v1609, %v1616
    %v1619 = vshrl.u32 %v1601, %v1617
    %v1620 = vor.u32 %v1618, %v1619
    %v1621 = vsub.s32 4294967266, %v1616
    %v1622 = vadd.s32 %v1621, 127
    %v1623 = vshll.u32 %v1622, 23
    %v1624 = vor.u32 4788187, %v1623
    %v1625 = vand.u32 2147483647, %v1624
    %v1627 = vcvt.s32.f32 %v1620
    %v1628 = vmul.f32 %v1627, %v1625
    %v1629 = vxor.u32 %v1628, 2147483648
    %v1630 = vsel %vm1547, %v1629, %v1628
    %v1631 = vsub.s32 4, %v1607
    %v1632 = vsel %vm1547, %v1631, %v1607
    %v1633 = vsel %vm1546, %v1192, %v1630
    %v1634 = vsel %vm1546, 0, %v1632
    %v1635 = vcosq.f32.pop %v1633
    %v1636 = vsinq.f32.pop %v1633
    %vm1637 = vweird.f32 %v1192
    %v1638 = vadd.s32 %v1634, 3
    %v1639 = vand.u32 %v1638, 3
    %vm1640 = vcmp.lt.s32.totalorder %v1639, 2
    %vm1641 = vcmp.eq.s32.totalorder %v1639, 0
    %v1642 = vxor.u32 %v1636, 2147483648
    %v1643 = vsel %vm1641, %v1635, %v1642
    %vm1644 = vcmp.eq.s32.totalorder %v1639, 2
    %v1645 = vxor.u32 %v1635, 2147483648
    %v1646 = vsel %vm1644, %v1645, %v1636
    %v1647 = vsel %vm1640, %v1643, %v1646
    %v1648 = vsel %vm1637, nan, %v1647
    %v1649 = vand.u32 2147483647, %v1194
    %vm1650 = vcmp.le.f32.partialorder %v1649, 0.7853982
    %vm1651 = vcmp.lt.s32.totalorder %v1194, 0
    %v1652 = vand.u32 %v1194, 2139095040
    %v1653 = vshrl.u32 %v1652, 23
    %v1654 = vsub.s32 %v1653, 127
    %v1655 = vand.u32 2147483647, %v1194
    %v1656 = vand.u32 %v1655, 8388607
    %v1657 = vor.u32 %v1656, 8388608
    %v1658 = vsub.s32 0, %v1657
    %v1659 = vadd.s32 %v1654, 1
    %vm1660 = vcmp.gt.s32.totalorder %v1659, 0
    %v1661 = vsel %vm1660, %v1659, 0
    %v1662 = vshrl.u32 %v1661, 5
    %v1663 = vand.u32 %v1661, 31
    %v1664 = vsub.s32 32, %v1663
    %v1665 = vshrl.u32 683565275, %v1664
    %v1666 = vshll.u32 683565275, %v1663
    %v1667 = vshrl.u32 2475754826, %v1664
    %v1668 = vor.u32 %v1666, %v1667
    %v1669 = vshll.u32 2475754826, %v1663
    %v1670 = vshrl.u32 2131351028, %v1664
    %v1671 = vor.u32 %v1669, %v1670
    %v1672 = vshll.u32 2131351028, %v1663
    %v1673 = vshrl.u32 2102212464, %v1664
    %v1674 = vor.u32 %v1672, %v1673
    %v1675 = vshll.u32 2102212464, %v1663
    %v1676 = vshrl.u32 920167782, %v1664
    %v1677 = vor.u32 %v1675, %v1676
    %v1678 = vshll.u32 920167782, %v1663
    %v1679 = vshrl.u32 1326507024, %v1664
    %v1680 = vor.u32 %v1678, %v1679
    %vm1681 = vcmp.lt.s32.totalorder %v1662, 1
    %vm1682 = vcmp.lt.s32.totalorder %v1662, 2
    %vm1683 = vcmp.lt.s32.totalorder %v1662, 3
    %vm1684 = vcmp.lt.s32.totalorder %v1662, 4
    %v1685 = vsel %vm1681, %v1665, %v1668
    %v1686 = vsel %vm1684, %v1674, 2102212464
    %v1687 = vsel %vm1683, %v1671, %v1686
    %v1688 = vsel %vm1682, %v1685, %v1687
    %v1689 = vsel %vm1681, %v1668, %v1671
    %v1690 = vsel %vm1684, %v1677, 920167782
    %v1691 = vsel %vm1683, %v1674, %v1690
    %v1692 = vsel %vm1682, %v1689, %v1691
    %v1693 = vsel %vm1681, %v1671, %v1674
    %v1694 = vsel %vm1684, %v1680, 1326507024
    %v1695 = vsel %vm1683, %v1677, %v1694
    %v1696 = vsel %vm1682, %v1693, %v1695
    %v1697 = vshll.u32 %v1657, 8
    %v1698 = vmul.u32.u64.compose %v1697, %v1696
    %v1699 = vextract.low.u32 %v1698
    %v1700 = vextract.high.u32 %v1698
    %v1701 = vmul.u32.u64.compose %v1697, %v1692
    %v1702 = vextract.low.u32 %v1701
    %v1703 = vextract.high.u32 %v1701
    %v1704 = vmul.u32 %v1697, %v1688
    %v1705 = vadd.s32 %v1700, %v1702
    %vm1706 = vc.u32 %v1700, %v1702
    %v1707 = vadd.s32 %v1703, 1
    %v1708 = vsel %vm1706, %v1707, %v1703
    %v1709 = vadd.s32 %v1704, %v1708
    %v1710 = vadd.s32 %v1709, 536870912
    %v1711 = vshrl.u32 %v1710, 30
    %v1712 = vshll.u32 %v1711, 30
    %v1713 = vsub.s32 %v1709, %v1712
    %vm1714 = vcmp.lt.s32.totalorder %v1713, 0
    %v1715 = vsub.s32 0, %v1713
    %v1716 = vsel %vm1714, %v1715, %v1713
    %v1717 = vclz %v1716
    %v1718 = vsub.s32 %v1717, 2
    %vm1719 = vcmp.gt.s32.totalorder 0, %v1718
    %v1720 = vsel %vm1719, 0, %v1718
    %v1721 = vsub.s32 32, %v1720
    %v1722 = vshll.u32 %v1713, %v1720
    %v1723 = vshrl.u32 %v1705, %v1721
    %v1724 = vor.u32 %v1722, %v1723
    %v1725 = vsub.s32 4294967266, %v1720
    %v1726 = vadd.s32 %v1725, 127
    %v1727 = vshll.u32 %v1726, 23
    %v1728 = vor.u32 4788187, %v1727
    %v1729 = vand.u32 2147483647, %v1728
    %v1731 = vcvt.s32.f32 %v1724
    %v1732 = vmul.f32 %v1731, %v1729
    %v1733 = vxor.u32 %v1732, 2147483648
    %v1734 = vsel %vm1651, %v1733, %v1732
    %v1735 = vsub.s32 4, %v1711
    %v1736 = vsel %vm1651, %v1735, %v1711
    %v1737 = vsel %vm1650, %v1194, %v1734
    %v1738 = vsel %vm1650, 0, %v1736
    %v1739 = vcosq.f32.pop %v1737
    %v1740 = vsinq.f32.pop %v1737
    %vm1741 = vweird.f32 %v1194
    %v1742 = vadd.s32 %v1738, 3
    %v1743 = vand.u32 %v1742, 3
    %vm1744 = vcmp.lt.s32.totalorder %v1743, 2
    %vm1745 = vcmp.eq.s32.totalorder %v1743, 0
    %v1746 = vxor.u32 %v1740, 2147483648
    %v1747 = vsel %vm1745, %v1739, %v1746
    %vm1748 = vcmp.eq.s32.totalorder %v1743, 2
    %v1749 = vxor.u32 %v1739, 2147483648
    %v1750 = vsel %vm1748, %v1749, %v1740
    %v1751 = vsel %vm1744, %v1747, %v1750
    %v1752 = vsel %vm1741, nan, %v1751
    %v1753 = vand.u32 2147483647, %v1198
    %vm1754 = vcmp.le.f32.partialorder %v1753, 0.7853982
    %vm1755 = vcmp.lt.s32.totalorder %v1198, 0
    %v1756 = vand.u32 %v1198, 2139095040
    %v1757 = vshrl.u32 %v1756, 23
    %v1758 = vsub.s32 %v1757, 127
    %v1759 = vand.u32 2147483647, %v1198
    %v1760 = vand.u32 %v1759, 8388607
    %v1761 = vor.u32 %v1760, 8388608
    %v1762 = vsub.s32 0, %v1761
    %v1763 = vadd.s32 %v1758, 1
    %vm1764 = vcmp.gt.s32.totalorder %v1763, 0
    %v1765 = vsel %vm1764, %v1763, 0
    %v1766 = vshrl.u32 %v1765, 5
    %v1767 = vand.u32 %v1765, 31
    %v1768 = vsub.s32 32, %v1767
    %v1769 = vshrl.u32 683565275, %v1768
    %v1770 = vshll.u32 683565275, %v1767
    %v1771 = vshrl.u32 2475754826, %v1768
    %v1772 = vor.u32 %v1770, %v1771
    %v1773 = vshll.u32 2475754826, %v1767
    %v1774 = vshrl.u32 2131351028, %v1768
    %v1775 = vor.u32 %v1773, %v1774
    %v1776 = vshll.u32 2131351028, %v1767
    %v1777 = vshrl.u32 2102212464, %v1768
    %v1778 = vor.u32 %v1776, %v1777
    %v1779 = vshll.u32 2102212464, %v1767
    %v1780 = vshrl.u32 920167782, %v1768
    %v1781 = vor.u32 %v1779, %v1780
    %v1782 = vshll.u32 920167782, %v1767
    %v1783 = vshrl.u32 1326507024, %v1768
    %v1784 = vor.u32 %v1782, %v1783
    %vm1785 = vcmp.lt.s32.totalorder %v1766, 1
    %vm1786 = vcmp.lt.s32.totalorder %v1766, 2
    %vm1787 = vcmp.lt.s32.totalorder %v1766, 3
    %vm1788 = vcmp.lt.s32.totalorder %v1766, 4
    %v1789 = vsel %vm1785, %v1769, %v1772
    %v1790 = vsel %vm1788, %v1778, 2102212464
    %v1791 = vsel %vm1787, %v1775, %v1790
    %v1792 = vsel %vm1786, %v1789, %v1791
    %v1793 = vsel %vm1785, %v1772, %v1775
    %v1794 = vsel %vm1788, %v1781, 920167782
    %v1795 = vsel %vm1787, %v1778, %v1794
    %v1796 = vsel %vm1786, %v1793, %v1795
    %v1797 = vsel %vm1785, %v1775, %v1778
    %v1798 = vsel %vm1788, %v1784, 1326507024
    %v1799 = vsel %vm1787, %v1781, %v1798
    %v1800 = vsel %vm1786, %v1797, %v1799
    %v1801 = vshll.u32 %v1761, 8
    %v1802 = vmul.u32.u64.compose %v1801, %v1800
    %v1803 = vextract.low.u32 %v1802
    %v1804 = vextract.high.u32 %v1802
    %v1805 = vmul.u32.u64.compose %v1801, %v1796
    %v1806 = vextract.low.u32 %v1805
    %v1807 = vextract.high.u32 %v1805
    %v1808 = vmul.u32 %v1801, %v1792
    %v1809 = vadd.s32 %v1804, %v1806
    %vm1810 = vc.u32 %v1804, %v1806
    %v1811 = vadd.s32 %v1807, 1
    %v1812 = vsel %vm1810, %v1811, %v1807
    %v1813 = vadd.s32 %v1808, %v1812
    %v1814 = vadd.s32 %v1813, 536870912
    %v1815 = vshrl.u32 %v1814, 30
    %v1816 = vshll.u32 %v1815, 30
    %v1817 = vsub.s32 %v1813, %v1816
    %vm1818 = vcmp.lt.s32.totalorder %v1817, 0
    %v1819 = vsub.s32 0, %v1817
    %v1820 = vsel %vm1818, %v1819, %v1817
    %v1821 = vclz %v1820
    %v1822 = vsub.s32 %v1821, 2
    %vm1823 = vcmp.gt.s32.totalorder 0, %v1822
    %v1824 = vsel %vm1823, 0, %v1822
    %v1825 = vsub.s32 32, %v1824
    %v1826 = vshll.u32 %v1817, %v1824
    %v1827 = vshrl.u32 %v1809, %v1825
    %v1828 = vor.u32 %v1826, %v1827
    %v1829 = vsub.s32 4294967266, %v1824
    %v1830 = vadd.s32 %v1829, 127
    %v1831 = vshll.u32 %v1830, 23
    %v1832 = vor.u32 4788187, %v1831
    %v1833 = vand.u32 2147483647, %v1832
    %v1835 = vcvt.s32.f32 %v1828
    %v1836 = vmul.f32 %v1835, %v1833
    %v1837 = vxor.u32 %v1836, 2147483648
    %v1838 = vsel %vm1755, %v1837, %v1836
    %v1839 = vsub.s32 4, %v1815
    %v1840 = vsel %vm1755, %v1839, %v1815
    %v1841 = vsel %vm1754, %v1198, %v1838
    %v1842 = vsel %vm1754, 0, %v1840
    %v1843 = vcosq.f32.pop %v1841
    %v1844 = vsinq.f32.pop %v1841
    %vm1845 = vweird.f32 %v1198
    %v1846 = vadd.s32 %v1842, 3
    %v1847 = vand.u32 %v1846, 3
    %vm1848 = vcmp.lt.s32.totalorder %v1847, 2
    %vm1849 = vcmp.eq.s32.totalorder %v1847, 0
    %v1850 = vxor.u32 %v1844, 2147483648
    %v1851 = vsel %vm1849, %v1843, %v1850
    %vm1852 = vcmp.eq.s32.totalorder %v1847, 2
    %v1853 = vxor.u32 %v1843, 2147483648
    %v1854 = vsel %vm1852, %v1853, %v1844
    %v1855 = vsel %vm1848, %v1851, %v1854
    %v1856 = vsel %vm1845, nan, %v1855
    %v1857 = vand.u32 2147483647, %v1200
    %vm1858 = vcmp.le.f32.partialorder %v1857, 0.7853982
    %vm1859 = vcmp.lt.s32.totalorder %v1200, 0
    %v1860 = vand.u32 %v1200, 2139095040
    %v1861 = vshrl.u32 %v1860, 23
    %v1862 = vsub.s32 %v1861, 127
    %v1863 = vand.u32 2147483647, %v1200
    %v1864 = vand.u32 %v1863, 8388607
    %v1865 = vor.u32 %v1864, 8388608
    %v1866 = vsub.s32 0, %v1865
    %v1867 = vadd.s32 %v1862, 1
    %vm1868 = vcmp.gt.s32.totalorder %v1867, 0
    %v1869 = vsel %vm1868, %v1867, 0
    %v1870 = vshrl.u32 %v1869, 5
    %v1871 = vand.u32 %v1869, 31
    %v1872 = vsub.s32 32, %v1871
    %v1873 = vshrl.u32 683565275, %v1872
    %v1874 = vshll.u32 683565275, %v1871
    %v1875 = vshrl.u32 2475754826, %v1872
    %v1876 = vor.u32 %v1874, %v1875
    %v1877 = vshll.u32 2475754826, %v1871
    %v1878 = vshrl.u32 2131351028, %v1872
    %v1879 = vor.u32 %v1877, %v1878
    %v1880 = vshll.u32 2131351028, %v1871
    %v1881 = vshrl.u32 2102212464, %v1872
    %v1882 = vor.u32 %v1880, %v1881
    %v1883 = vshll.u32 2102212464, %v1871
    %v1884 = vshrl.u32 920167782, %v1872
    %v1885 = vor.u32 %v1883, %v1884
    %v1886 = vshll.u32 920167782, %v1871
    %v1887 = vshrl.u32 1326507024, %v1872
    %v1888 = vor.u32 %v1886, %v1887
    %vm1889 = vcmp.lt.s32.totalorder %v1870, 1
    %vm1890 = vcmp.lt.s32.totalorder %v1870, 2
    %vm1891 = vcmp.lt.s32.totalorder %v1870, 3
    %vm1892 = vcmp.lt.s32.totalorder %v1870, 4
    %v1893 = vsel %vm1889, %v1873, %v1876
    %v1894 = vsel %vm1892, %v1882, 2102212464
    %v1895 = vsel %vm1891, %v1879, %v1894
    %v1896 = vsel %vm1890, %v1893, %v1895
    %v1897 = vsel %vm1889, %v1876, %v1879
    %v1898 = vsel %vm1892, %v1885, 920167782
    %v1899 = vsel %vm1891, %v1882, %v1898
    %v1900 = vsel %vm1890, %v1897, %v1899
    %v1901 = vsel %vm1889, %v1879, %v1882
    %v1902 = vsel %vm1892, %v1888, 1326507024
    %v1903 = vsel %vm1891, %v1885, %v1902
    %v1904 = vsel %vm1890, %v1901, %v1903
    %v1905 = vshll.u32 %v1865, 8
    %v1906 = vmul.u32.u64.compose %v1905, %v1904
    %v1907 = vextract.low.u32 %v1906
    %v1908 = vextract.high.u32 %v1906
    %v1909 = vmul.u32.u64.compose %v1905, %v1900
    %v1910 = vextract.low.u32 %v1909
    %v1911 = vextract.high.u32 %v1909
    %v1912 = vmul.u32 %v1905, %v1896
    %v1913 = vadd.s32 %v1908, %v1910
    %vm1914 = vc.u32 %v1908, %v1910
    %v1915 = vadd.s32 %v1911, 1
    %v1916 = vsel %vm1914, %v1915, %v1911
    %v1917 = vadd.s32 %v1912, %v1916
    %v1918 = vadd.s32 %v1917, 536870912
    %v1919 = vshrl.u32 %v1918, 30
    %v1920 = vshll.u32 %v1919, 30
    %v1921 = vsub.s32 %v1917, %v1920
    %vm1922 = vcmp.lt.s32.totalorder %v1921, 0
    %v1923 = vsub.s32 0, %v1921
    %v1924 = vsel %vm1922, %v1923, %v1921
    %v1925 = vclz %v1924
    %v1926 = vsub.s32 %v1925, 2
    %vm1927 = vcmp.gt.s32.totalorder 0, %v1926
    %v1928 = vsel %vm1927, 0, %v1926
    %v1929 = vsub.s32 32, %v1928
    %v1930 = vshll.u32 %v1921, %v1928
    %v1931 = vshrl.u32 %v1913, %v1929
    %v1932 = vor.u32 %v1930, %v1931
    %v1933 = vsub.s32 4294967266, %v1928
    %v1934 = vadd.s32 %v1933, 127
    %v1935 = vshll.u32 %v1934, 23
    %v1936 = vor.u32 4788187, %v1935
    %v1937 = vand.u32 2147483647, %v1936
    %v1939 = vcvt.s32.f32 %v1932
    %v1940 = vmul.f32 %v1939, %v1937
    %v1941 = vxor.u32 %v1940, 2147483648
    %v1942 = vsel %vm1859, %v1941, %v1940
    %v1943 = vsub.s32 4, %v1919
    %v1944 = vsel %vm1859, %v1943, %v1919
    %v1945 = vsel %vm1858, %v1200, %v1942
    %v1946 = vsel %vm1858, 0, %v1944
    %v1947 = vcosq.f32.pop %v1945
    %v1948 = vsinq.f32.pop %v1945
    %vm1949 = vweird.f32 %v1200
    %v1950 = vadd.s32 %v1946, 3
    %v1951 = vand.u32 %v1950, 3
    %vm1952 = vcmp.lt.s32.totalorder %v1951, 2
    %vm1953 = vcmp.eq.s32.totalorder %v1951, 0
    %v1954 = vxor.u32 %v1948, 2147483648
    %v1955 = vsel %vm1953, %v1947, %v1954
    %vm1956 = vcmp.eq.s32.totalorder %v1951, 2
    %v1957 = vxor.u32 %v1947, 2147483648
    %v1958 = vsel %vm1956, %v1957, %v1948
    %v1959 = vsel %vm1952, %v1955, %v1958
    %v1960 = vsel %vm1949, nan, %v1959
    %v1961 = vand.u32 2147483647, %v1204
    %vm1962 = vcmp.le.f32.partialorder %v1961, 0.7853982
    %vm1963 = vcmp.lt.s32.totalorder %v1204, 0
    %v1964 = vand.u32 %v1204, 2139095040
    %v1965 = vshrl.u32 %v1964, 23
    %v1966 = vsub.s32 %v1965, 127
    %v1967 = vand.u32 2147483647, %v1204
    %v1968 = vand.u32 %v1967, 8388607
    %v1969 = vor.u32 %v1968, 8388608
    %v1970 = vsub.s32 0, %v1969
    %v1971 = vadd.s32 %v1966, 1
    %vm1972 = vcmp.gt.s32.totalorder %v1971, 0
    %v1973 = vsel %vm1972, %v1971, 0
    %v1974 = vshrl.u32 %v1973, 5
    %v1975 = vand.u32 %v1973, 31
    %v1976 = vsub.s32 32, %v1975
    %v1977 = vshrl.u32 683565275, %v1976
    %v1978 = vshll.u32 683565275, %v1975
    %v1979 = vshrl.u32 2475754826, %v1976
    %v1980 = vor.u32 %v1978, %v1979
    %v1981 = vshll.u32 2475754826, %v1975
    %v1982 = vshrl.u32 2131351028, %v1976
    %v1983 = vor.u32 %v1981, %v1982
    %v1984 = vshll.u32 2131351028, %v1975
    %v1985 = vshrl.u32 2102212464, %v1976
    %v1986 = vor.u32 %v1984, %v1985
    %v1987 = vshll.u32 2102212464, %v1975
    %v1988 = vshrl.u32 920167782, %v1976
    %v1989 = vor.u32 %v1987, %v1988
    %v1990 = vshll.u32 920167782, %v1975
    %v1991 = vshrl.u32 1326507024, %v1976
    %v1992 = vor.u32 %v1990, %v1991
    %vm1993 = vcmp.lt.s32.totalorder %v1974, 1
    %vm1994 = vcmp.lt.s32.totalorder %v1974, 2
    %vm1995 = vcmp.lt.s32.totalorder %v1974, 3
    %vm1996 = vcmp.lt.s32.totalorder %v1974, 4
    %v1997 = vsel %vm1993, %v1977, %v1980
    %v1998 = vsel %vm1996, %v1986, 2102212464
    %v1999 = vsel %vm1995, %v1983, %v1998
    %v2000 = vsel %vm1994, %v1997, %v1999
    %v2001 = vsel %vm1993, %v1980, %v1983
    %v2002 = vsel %vm1996, %v1989, 920167782
    %v2003 = vsel %vm1995, %v1986, %v2002
    %v2004 = vsel %vm1994, %v2001, %v2003
    %v2005 = vsel %vm1993, %v1983, %v1986
    %v2006 = vsel %vm1996, %v1992, 1326507024
    %v2007 = vsel %vm1995, %v1989, %v2006
    %v2008 = vsel %vm1994, %v2005, %v2007
    %v2009 = vshll.u32 %v1969, 8
    %v2010 = vmul.u32.u64.compose %v2009, %v2008
    %v2011 = vextract.low.u32 %v2010
    %v2012 = vextract.high.u32 %v2010
    %v2013 = vmul.u32.u64.compose %v2009, %v2004
    %v2014 = vextract.low.u32 %v2013
    %v2015 = vextract.high.u32 %v2013
    %v2016 = vmul.u32 %v2009, %v2000
    %v2017 = vadd.s32 %v2012, %v2014
    %vm2018 = vc.u32 %v2012, %v2014
    %v2019 = vadd.s32 %v2015, 1
    %v2020 = vsel %vm2018, %v2019, %v2015
    %v2021 = vadd.s32 %v2016, %v2020
    %v2022 = vadd.s32 %v2021, 536870912
    %v2023 = vshrl.u32 %v2022, 30
    %v2024 = vshll.u32 %v2023, 30
    %v2025 = vsub.s32 %v2021, %v2024
    %vm2026 = vcmp.lt.s32.totalorder %v2025, 0
    %v2027 = vsub.s32 0, %v2025
    %v2028 = vsel %vm2026, %v2027, %v2025
    %v2029 = vclz %v2028
    %v2030 = vsub.s32 %v2029, 2
    %vm2031 = vcmp.gt.s32.totalorder 0, %v2030
    %v2032 = vsel %vm2031, 0, %v2030
    %v2033 = vsub.s32 32, %v2032
    %v2034 = vshll.u32 %v2025, %v2032
    %v2035 = vshrl.u32 %v2017, %v2033
    %v2036 = vor.u32 %v2034, %v2035
    %v2037 = vsub.s32 4294967266, %v2032
    %v2038 = vadd.s32 %v2037, 127
    %v2039 = vshll.u32 %v2038, 23
    %v2040 = vor.u32 4788187, %v2039
    %v2041 = vand.u32 2147483647, %v2040
    %v2043 = vcvt.s32.f32 %v2036
    %v2044 = vmul.f32 %v2043, %v2041
    %v2045 = vxor.u32 %v2044, 2147483648
    %v2046 = vsel %vm1963, %v2045, %v2044
    %v2047 = vsub.s32 4, %v2023
    %v2048 = vsel %vm1963, %v2047, %v2023
    %v2049 = vsel %vm1962, %v1204, %v2046
    %v2050 = vsel %vm1962, 0, %v2048
    %v2051 = vcosq.f32.pop %v2049
    %v2052 = vsinq.f32.pop %v2049
    %vm2053 = vweird.f32 %v1204
    %v2054 = vadd.s32 %v2050, 3
    %v2055 = vand.u32 %v2054, 3
    %vm2056 = vcmp.lt.s32.totalorder %v2055, 2
    %vm2057 = vcmp.eq.s32.totalorder %v2055, 0
    %v2058 = vxor.u32 %v2052, 2147483648
    %v2059 = vsel %vm2057, %v2051, %v2058
    %vm2060 = vcmp.eq.s32.totalorder %v2055, 2
    %v2061 = vxor.u32 %v2051, 2147483648
    %v2062 = vsel %vm2060, %v2061, %v2052
    %v2063 = vsel %vm2056, %v2059, %v2062
    %v2064 = vsel %vm2053, nan, %v2063
    %v2065 = vand.u32 2147483647, %v1206
    %vm2066 = vcmp.le.f32.partialorder %v2065, 0.7853982
    %vm2067 = vcmp.lt.s32.totalorder %v1206, 0
    %v2068 = vand.u32 %v1206, 2139095040
    %v2069 = vshrl.u32 %v2068, 23
    %v2070 = vsub.s32 %v2069, 127
    %v2071 = vand.u32 2147483647, %v1206
    %v2072 = vand.u32 %v2071, 8388607
    %v2073 = vor.u32 %v2072, 8388608
    %v2074 = vsub.s32 0, %v2073
    %v2075 = vadd.s32 %v2070, 1
    %vm2076 = vcmp.gt.s32.totalorder %v2075, 0
    %v2077 = vsel %vm2076, %v2075, 0
    %v2078 = vshrl.u32 %v2077, 5
    %v2079 = vand.u32 %v2077, 31
    %v2080 = vsub.s32 32, %v2079
    %v2081 = vshrl.u32 683565275, %v2080
    %v2082 = vshll.u32 683565275, %v2079
    %v2083 = vshrl.u32 2475754826, %v2080
    %v2084 = vor.u32 %v2082, %v2083
    %v2085 = vshll.u32 2475754826, %v2079
    %v2086 = vshrl.u32 2131351028, %v2080
    %v2087 = vor.u32 %v2085, %v2086
    %v2088 = vshll.u32 2131351028, %v2079
    %v2089 = vshrl.u32 2102212464, %v2080
    %v2090 = vor.u32 %v2088, %v2089
    %v2091 = vshll.u32 2102212464, %v2079
    %v2092 = vshrl.u32 920167782, %v2080
    %v2093 = vor.u32 %v2091, %v2092
    %v2094 = vshll.u32 920167782, %v2079
    %v2095 = vshrl.u32 1326507024, %v2080
    %v2096 = vor.u32 %v2094, %v2095
    %vm2097 = vcmp.lt.s32.totalorder %v2078, 1
    %vm2098 = vcmp.lt.s32.totalorder %v2078, 2
    %vm2099 = vcmp.lt.s32.totalorder %v2078, 3
    %vm2100 = vcmp.lt.s32.totalorder %v2078, 4
    %v2101 = vsel %vm2097, %v2081, %v2084
    %v2102 = vsel %vm2100, %v2090, 2102212464
    %v2103 = vsel %vm2099, %v2087, %v2102
    %v2104 = vsel %vm2098, %v2101, %v2103
    %v2105 = vsel %vm2097, %v2084, %v2087
    %v2106 = vsel %vm2100, %v2093, 920167782
    %v2107 = vsel %vm2099, %v2090, %v2106
    %v2108 = vsel %vm2098, %v2105, %v2107
    %v2109 = vsel %vm2097, %v2087, %v2090
    %v2110 = vsel %vm2100, %v2096, 1326507024
    %v2111 = vsel %vm2099, %v2093, %v2110
    %v2112 = vsel %vm2098, %v2109, %v2111
    %v2113 = vshll.u32 %v2073, 8
    %v2114 = vmul.u32.u64.compose %v2113, %v2112
    %v2115 = vextract.low.u32 %v2114
    %v2116 = vextract.high.u32 %v2114
    %v2117 = vmul.u32.u64.compose %v2113, %v2108
    %v2118 = vextract.low.u32 %v2117
    %v2119 = vextract.high.u32 %v2117
    %v2120 = vmul.u32 %v2113, %v2104
    %v2121 = vadd.s32 %v2116, %v2118
    %vm2122 = vc.u32 %v2116, %v2118
    %v2123 = vadd.s32 %v2119, 1
    %v2124 = vsel %vm2122, %v2123, %v2119
    %v2125 = vadd.s32 %v2120, %v2124
    %v2126 = vadd.s32 %v2125, 536870912
    %v2127 = vshrl.u32 %v2126, 30
    %v2128 = vshll.u32 %v2127, 30
    %v2129 = vsub.s32 %v2125, %v2128
    %vm2130 = vcmp.lt.s32.totalorder %v2129, 0
    %v2131 = vsub.s32 0, %v2129
    %v2132 = vsel %vm2130, %v2131, %v2129
    %v2133 = vclz %v2132
    %v2134 = vsub.s32 %v2133, 2
    %vm2135 = vcmp.gt.s32.totalorder 0, %v2134
    %v2136 = vsel %vm2135, 0, %v2134
    %v2137 = vsub.s32 32, %v2136
    %v2138 = vshll.u32 %v2129, %v2136
    %v2139 = vshrl.u32 %v2121, %v2137
    %v2140 = vor.u32 %v2138, %v2139
    %v2141 = vsub.s32 4294967266, %v2136
    %v2142 = vadd.s32 %v2141, 127
    %v2143 = vshll.u32 %v2142, 23
    %v2144 = vor.u32 4788187, %v2143
    %v2145 = vand.u32 2147483647, %v2144
    %v2147 = vcvt.s32.f32 %v2140
    %v2148 = vmul.f32 %v2147, %v2145
    %v2149 = vxor.u32 %v2148, 2147483648
    %v2150 = vsel %vm2067, %v2149, %v2148
    %v2151 = vsub.s32 4, %v2127
    %v2152 = vsel %vm2067, %v2151, %v2127
    %v2153 = vsel %vm2066, %v1206, %v2150
    %v2154 = vsel %vm2066, 0, %v2152
    %v2155 = vcosq.f32.pop %v2153
    %v2156 = vsinq.f32.pop %v2153
    %vm2157 = vweird.f32 %v1206
    %v2158 = vadd.s32 %v2154, 3
    %v2159 = vand.u32 %v2158, 3
    %vm2160 = vcmp.lt.s32.totalorder %v2159, 2
    %vm2161 = vcmp.eq.s32.totalorder %v2159, 0
    %v2162 = vxor.u32 %v2156, 2147483648
    %v2163 = vsel %vm2161, %v2155, %v2162
    %vm2164 = vcmp.eq.s32.totalorder %v2159, 2
    %v2165 = vxor.u32 %v2155, 2147483648
    %v2166 = vsel %vm2164, %v2165, %v2156
    %v2167 = vsel %vm2160, %v2163, %v2166
    %v2168 = vsel %vm2157, nan, %v2167
    %v2169 = vmax.f32 %v1315, 0.0
    %v2170 = vmax.f32 %v1317, 0.0
    %v2171 = vmax.f32 %v1321, 0.0
    %v2172 = vmax.f32 %v1323, 0.0
    %v2173 = vmax.f32 %v1327, 0.0
    %v2174 = vmax.f32 %v1329, 0.0
    %v2175 = vmax.f32 %v1333, 0.0
    %v2176 = vmax.f32 %v1335, 0.0
    %v2177 = vadd.f32 %v2169, %v1070
    %v2178 = vadd.f32 %v2170, %v1071
    %v2179 = vadd.f32 %v2171, %v1072
    %v2180 = vadd.f32 %v2172, %v1073
    %v2181 = vadd.f32 %v2173, %v1074
    %v2182 = vadd.f32 %v2174, %v1075
    %v2183 = vadd.f32 %v2175, %v1076
    %v2184 = vadd.f32 %v2176, %v1077
    %v2185 = vmul.f32 %v2177, %v1440
    %v2186 = vmul.f32 %v2178, %v1544
    %v2187 = vmul.f32 %v2179, %v1648
    %v2188 = vmul.f32 %v2180, %v1752
    %v2189 = vmul.f32 %v2181, %v1856
    %v2190 = vmul.f32 %v2182, %v1960
    %v2191 = vmul.f32 %v2183, %v2064
    %v2192 = vmul.f32 %v2184, %v2168
    %s2193 = scalar_lea.vmem %s3, 32
    %v2194 = vld [vmem:[%s2193] sm:$0xff]
    %v2195 = vld [vmem:[%s2193 + $0x8] sm:$0xff]
    %v2196 = vld [vmem:[%s2193 + $0x10] sm:$0xff]
    %v2197 = vld [vmem:[%s2193 + $0x18] sm:$0xff]
    %s2198 = scalar_lea.vmem %s4, 32
    %v2199 = vld [vmem:[%s2198] sm:$0xff]
    %v2200 = vld [vmem:[%s2198 + $0x8] sm:$0xff]
    %v2201 = vld [vmem:[%s2198 + $0x10] sm:$0xff]
    %v2202 = vld [vmem:[%s2198 + $0x18] sm:$0xff]
    %2204 = vset.pattern.permute.xlu0 0
    %2205 = vperm.xlu0 %2204, %v2199
    %v2206 = vpop.permute.xlu0 %2205
    %2209 = vset.pattern.permute.xlu0 0
    %2210 = vperm.xlu0 %2209, %v2200
    %v2211 = vpop.permute.xlu0 %2210
    %2214 = vset.pattern.permute.xlu0 0
    %2215 = vperm.xlu0 %2214, %v2201
    %v2216 = vpop.permute.xlu0 %2215
    %2219 = vset.pattern.permute.xlu0 0
    %2220 = vperm.xlu0 %2219, %v2202
    %v2221 = vpop.permute.xlu0 %2220
    %v2224 = vsel %vm1106, %v2194, 0
    %v2227 = vsel %vm1106, %v2195, 0
    %v2230 = vsel %vm1106, %v2196, 0
    %v2233 = vsel %vm1106, %v2197, 0
    %2235 = vmatprep.subr.mxu0 0.0
    %2236 = vmatpush1.msra.mxu0 0.0
    %2237 = vmatprep.subr.mxu0 0.0
    %2238 = vmatpush1.msra.mxu0 0.0
    %2239 = vmatprep.subr.mxu0 0.0
    %2240 = vmatpush1.msra.mxu0 0.0
    %2241 = vmatprep.subr.mxu0 0.0
    %2242 = vmatpush1.msra.mxu0 0.0
    %2243 = vmatprep.subr.mxu0 0.0
    %2244 = vmatpush1.msra.mxu0 0.0
    %2245 = vmatprep.subr.mxu0 0.0
    %2246 = vmatpush1.msra.mxu0 0.0
    %2247 = vmatprep.subr.mxu0 0.0
    %2248 = vmatpush1.msra.mxu0 0.0
    %2249 = vmatprep.subr.mxu0 0.0
    %2250 = vmatpush1.msra.mxu0 0.0
    %2251 = vmatprep.subr.mxu0 0.0
    %2252 = vmatpush1.msra.mxu0 0.0
    %2253 = vmatprep.subr.mxu0 0.0
    %2254 = vmatpush1.msra.mxu0 0.0
    %2255 = vmatprep.subr.mxu0 0.0
    %2256 = vmatpush1.msra.mxu0 0.0
    %2257 = vmatprep.subr.mxu0 0.0
    %2258 = vmatpush1.msra.mxu0 0.0
    %2259 = vmatprep.subr.mxu0 %v2192
    %2260 = vmatpush1.msra.mxu0 %v2191
    %2261 = vmatprep.subr.mxu0 %v2190
    %2262 = vmatpush1.msra.mxu0 %v2189
    %2263 = vmatprep.subr.mxu0 %v2188
    %2264 = vmatpush1.msra.mxu0 %v2187
    %2265 = vmatprep.subr.mxu0 %v2186
    %2266 = vmatpush1.msra.mxu0 %v2185
    %2267 = vmatprep.subr.mxu0 0.0
    %2268 = vmatpush2.msra.mxu0 0.0
    %2269 = vmatprep.subr.mxu0 0.0
    %2270 = vmatpush2.msra.mxu0 0.0
    %2271 = vmatprep.subr.mxu0 0.0
    %2272 = vmatpush2.msra.mxu0 0.0
    %2273 = vmatprep.subr.mxu0 0.0
    %2274 = vmatpush2.msra.mxu0 0.0
    %2275 = vmatprep.subr.mxu0 0.0
    %2276 = vmatpush2.msra.mxu0 0.0
    %2277 = vmatprep.subr.mxu0 0.0
    %2278 = vmatpush2.msra.mxu0 0.0
    %2279 = vmatprep.subr.mxu0 0.0
    %2280 = vmatpush2.msra.mxu0 0.0
    %2281 = vmatprep.subr.mxu0 0.0
    %2282 = vmatpush2.msra.mxu0 0.0
    %2283 = vmatprep.subr.mxu0 0.0
    %2284 = vmatpush2.msra.mxu0 0.0
    %2285 = vmatprep.subr.mxu0 0.0
    %2286 = vmatpush2.msra.mxu0 0.0
    %2287 = vmatprep.subr.mxu0 0.0
    %2288 = vmatpush2.msra.mxu0 0.0
    %2289 = vmatprep.subr.mxu0 0.0
    %2290 = vmatpush2.msra.mxu0 0.0
    %2291 = vmatprep.subr.mxu0 0.0
    %2292 = vmatpush2.msra.mxu0 0.0
    %2293 = vmatprep.subr.mxu0 0.0
    %2294 = vmatpush2.msra.mxu0 0.0
    %2295 = vmatprep.subr.mxu0 0.0
    %2296 = vmatpush2.msra.mxu0 0.0
    %2297 = vmatprep.subr.mxu0 0.0
    %2298 = vmatpush2.msra.mxu0 0.0
    %2299 = vmatprep.mubr.f32.mxu0 0.0
    %2300 = vmatmul.mubr.f32.gmra.mxu0 %v2224
    %v2301 = vpop.f32.mrf.mxu0
    %v2302 = vadd.f32 %v2206, %v2301
    %v2303 = vpop.f32.mrf.mxu0
    %v2304 = vadd.f32 %v2206, %v2303
    %2305 = vmatprep.mubr.f32.mxu0 0.0
    %2306 = vmatmul.mubr.f32.gmra.mxu0 %v2227
    %v2307 = vpop.f32.mrf.mxu0
    %v2308 = vadd.f32 %v2211, %v2307
    %v2309 = vpop.f32.mrf.mxu0
    %v2310 = vadd.f32 %v2211, %v2309
    %2311 = vmatprep.mubr.f32.mxu0 0.0
    %2312 = vmatmul.mubr.f32.gmra.mxu0 %v2230
    %v2313 = vpop.f32.mrf.mxu0
    %v2314 = vadd.f32 %v2216, %v2313
    %v2315 = vpop.f32.mrf.mxu0
    %v2316 = vadd.f32 %v2216, %v2315
    %2317 = vmatprep.mubr.f32.mxu0 0.0
    %2318 = vmatmul.mubr.f32.gmra.mxu0 %v2233
    %v2319 = vpop.f32.mrf.mxu0
    %v2320 = vadd.f32 %v2221, %v2319
    %v2321 = vpop.f32.mrf.mxu0
    %v2322 = vadd.f32 %v2221, %v2321
    %2323 = vdwg.mxu0
    %s2324 = scalar_lea.vmem %s5, 32
    %v2325 = vld [vmem:[%s2324] sm:$0xff]
    %v2326 = vld [vmem:[%s2324 + $0x8] sm:$0xff]
    %v2327 = vld [vmem:[%s2324 + $0x10] sm:$0xff]
    %v2328 = vld [vmem:[%s2324 + $0x18] sm:$0xff]
    %s2329 = scalar_lea.vmem %s6, 32
    %v2330 = vld [vmem:[%s2329] sm:$0xff]
    %v2331 = vld [vmem:[%s2329 + $0x8] sm:$0xff]
    %v2332 = vld [vmem:[%s2329 + $0x10] sm:$0xff]
    %v2333 = vld [vmem:[%s2329 + $0x18] sm:$0xff]
    %2335 = vset.pattern.permute.xlu0 0
    %2336 = vperm.xlu0 %2335, %v2330
    %v2337 = vpop.permute.xlu0 %2336
    %2340 = vset.pattern.permute.xlu0 0
    %2341 = vperm.xlu0 %2340, %v2331
    %v2342 = vpop.permute.xlu0 %2341
    %2345 = vset.pattern.permute.xlu0 0
    %2346 = vperm.xlu0 %2345, %v2332
    %v2347 = vpop.permute.xlu0 %2346
    %2350 = vset.pattern.permute.xlu0 0
    %2351 = vperm.xlu0 %2350, %v2333
    %v2352 = vpop.permute.xlu0 %2351
    %v2355 = vsel %vm1106, %v2325, 0
    %v2358 = vsel %vm1106, %v2326, 0
    %v2361 = vsel %vm1106, %v2327, 0
    %v2364 = vsel %vm1106, %v2328, 0
    %2366 = vmatprep.subr.mxu0 0.0
    %2367 = vmatpush1.msra.mxu0 0.0
    %2368 = vmatprep.subr.mxu0 0.0
    %2369 = vmatpush1.msra.mxu0 0.0
    %2370 = vmatprep.subr.mxu0 0.0
    %2371 = vmatpush1.msra.mxu0 0.0
    %2372 = vmatprep.subr.mxu0 0.0
    %2373 = vmatpush1.msra.mxu0 0.0
    %2374 = vmatprep.subr.mxu0 0.0
    %2375 = vmatpush1.msra.mxu0 0.0
    %2376 = vmatprep.subr.mxu0 0.0
    %2377 = vmatpush1.msra.mxu0 0.0
    %2378 = vmatprep.subr.mxu0 0.0
    %2379 = vmatpush1.msra.mxu0 0.0
    %2380 = vmatprep.subr.mxu0 0.0
    %2381 = vmatpush1.msra.mxu0 0.0
    %2382 = vmatprep.subr.mxu0 0.0
    %2383 = vmatpush1.msra.mxu0 0.0
    %2384 = vmatprep.subr.mxu0 0.0
    %2385 = vmatpush1.msra.mxu0 0.0
    %2386 = vmatprep.subr.mxu0 0.0
    %2387 = vmatpush1.msra.mxu0 0.0
    %2388 = vmatprep.subr.mxu0 0.0
    %2389 = vmatpush1.msra.mxu0 0.0
    %2390 = vmatprep.subr.mxu0 %v2184
    %2391 = vmatpush1.msra.mxu0 %v2183
    %2392 = vmatprep.subr.mxu0 %v2182
    %2393 = vmatpush1.msra.mxu0 %v2181
    %2394 = vmatprep.subr.mxu0 %v2180
    %2395 = vmatpush1.msra.mxu0 %v2179
    %2396 = vmatprep.subr.mxu0 %v2178
    %2397 = vmatpush1.msra.mxu0 %v2177
    %2398 = vmatprep.subr.mxu0 0.0
    %2399 = vmatpush2.msra.mxu0 0.0
    %2400 = vmatprep.subr.mxu0 0.0
    %2401 = vmatpush2.msra.mxu0 0.0
    %2402 = vmatprep.subr.mxu0 0.0
    %2403 = vmatpush2.msra.mxu0 0.0
    %2404 = vmatprep.subr.mxu0 0.0
    %2405 = vmatpush2.msra.mxu0 0.0
    %2406 = vmatprep.subr.mxu0 0.0
    %2407 = vmatpush2.msra.mxu0 0.0
    %2408 = vmatprep.subr.mxu0 0.0
    %2409 = vmatpush2.msra.mxu0 0.0
    %2410 = vmatprep.subr.mxu0 0.0
    %2411 = vmatpush2.msra.mxu0 0.0
    %2412 = vmatprep.subr.mxu0 0.0
    %2413 = vmatpush2.msra.mxu0 0.0
    %2414 = vmatprep.subr.mxu0 0.0
    %2415 = vmatpush2.msra.mxu0 0.0
    %2416 = vmatprep.subr.mxu0 0.0
    %2417 = vmatpush2.msra.mxu0 0.0
    %2418 = vmatprep.subr.mxu0 0.0
    %2419 = vmatpush2.msra.mxu0 0.0
    %2420 = vmatprep.subr.mxu0 0.0
    %2421 = vmatpush2.msra.mxu0 0.0
    %2422 = vmatprep.subr.mxu0 0.0
    %2423 = vmatpush2.msra.mxu0 0.0
    %2424 = vmatprep.subr.mxu0 0.0
    %2425 = vmatpush2.msra.mxu0 0.0
    %2426 = vmatprep.subr.mxu0 0.0
    %2427 = vmatpush2.msra.mxu0 0.0
    %2428 = vmatprep.subr.mxu0 0.0
    %2429 = vmatpush2.msra.mxu0 0.0
    %2430 = vmatprep.mubr.f32.mxu0 0.0
    %2431 = vmatmul.mubr.f32.gmra.mxu0 %v2355
    %v2432 = vpop.f32.mrf.mxu0
    %v2433 = vadd.f32 %v2337, %v2432
    %v2434 = vpop.f32.mrf.mxu0
    %v2435 = vadd.f32 %v2337, %v2434
    %2436 = vmatprep.mubr.f32.mxu0 0.0
    %2437 = vmatmul.mubr.f32.gmra.mxu0 %v2358
    %v2438 = vpop.f32.mrf.mxu0
    %v2439 = vadd.f32 %v2342, %v2438
    %v2440 = vpop.f32.mrf.mxu0
    %v2441 = vadd.f32 %v2342, %v2440
    %2442 = vmatprep.mubr.f32.mxu0 0.0
    %2443 = vmatmul.mubr.f32.gmra.mxu0 %v2361
    %v2444 = vpop.f32.mrf.mxu0
    %v2445 = vadd.f32 %v2347, %v2444
    %v2446 = vpop.f32.mrf.mxu0
    %v2447 = vadd.f32 %v2347, %v2446
    %2448 = vmatprep.mubr.f32.mxu0 0.0
    %2449 = vmatmul.mubr.f32.gmra.mxu0 %v2364
    %v2450 = vpop.f32.mrf.mxu0
    %v2451 = vadd.f32 %v2352, %v2450
    %v2452 = vpop.f32.mrf.mxu0
    %v2453 = vadd.f32 %v2352, %v2452
    %2454 = vdwg.mxu0
    %v2455 = vand.u32 2147483647, %v2302
    %vm2456 = vcmp.le.f32.partialorder %v2455, 0.7853982
    %vm2457 = vcmp.lt.s32.totalorder %v2302, 0
    %v2458 = vand.u32 %v2302, 2139095040
    %v2459 = vshrl.u32 %v2458, 23
    %v2460 = vsub.s32 %v2459, 127
    %v2461 = vand.u32 2147483647, %v2302
    %v2462 = vand.u32 %v2461, 8388607
    %v2463 = vor.u32 %v2462, 8388608
    %v2464 = vsub.s32 0, %v2463
    %v2465 = vadd.s32 %v2460, 1
    %vm2466 = vcmp.gt.s32.totalorder %v2465, 0
    %v2467 = vsel %vm2466, %v2465, 0
    %v2468 = vshrl.u32 %v2467, 5
    %v2469 = vand.u32 %v2467, 31
    %v2470 = vsub.s32 32, %v2469
    %v2471 = vshrl.u32 683565275, %v2470
    %v2472 = vshll.u32 683565275, %v2469
    %v2473 = vshrl.u32 2475754826, %v2470
    %v2474 = vor.u32 %v2472, %v2473
    %v2475 = vshll.u32 2475754826, %v2469
    %v2476 = vshrl.u32 2131351028, %v2470
    %v2477 = vor.u32 %v2475, %v2476
    %v2478 = vshll.u32 2131351028, %v2469
    %v2479 = vshrl.u32 2102212464, %v2470
    %v2480 = vor.u32 %v2478, %v2479
    %v2481 = vshll.u32 2102212464, %v2469
    %v2482 = vshrl.u32 920167782, %v2470
    %v2483 = vor.u32 %v2481, %v2482
    %v2484 = vshll.u32 920167782, %v2469
    %v2485 = vshrl.u32 1326507024, %v2470
    %v2486 = vor.u32 %v2484, %v2485
    %vm2487 = vcmp.lt.s32.totalorder %v2468, 1
    %vm2488 = vcmp.lt.s32.totalorder %v2468, 2
    %vm2489 = vcmp.lt.s32.totalorder %v2468, 3
    %vm2490 = vcmp.lt.s32.totalorder %v2468, 4
    %v2491 = vsel %vm2487, %v2471, %v2474
    %v2492 = vsel %vm2490, %v2480, 2102212464
    %v2493 = vsel %vm2489, %v2477, %v2492
    %v2494 = vsel %vm2488, %v2491, %v2493
    %v2495 = vsel %vm2487, %v2474, %v2477
    %v2496 = vsel %vm2490, %v2483, 920167782
    %v2497 = vsel %vm2489, %v2480, %v2496
    %v2498 = vsel %vm2488, %v2495, %v2497
    %v2499 = vsel %vm2487, %v2477, %v2480
    %v2500 = vsel %vm2490, %v2486, 1326507024
    %v2501 = vsel %vm2489, %v2483, %v2500
    %v2502 = vsel %vm2488, %v2499, %v2501
    %v2503 = vshll.u32 %v2463, 8
    %v2504 = vmul.u32.u64.compose %v2503, %v2502
    %v2505 = vextract.low.u32 %v2504
    %v2506 = vextract.high.u32 %v2504
    %v2507 = vmul.u32.u64.compose %v2503, %v2498
    %v2508 = vextract.low.u32 %v2507
    %v2509 = vextract.high.u32 %v2507
    %v2510 = vmul.u32 %v2503, %v2494
    %v2511 = vadd.s32 %v2506, %v2508
    %vm2512 = vc.u32 %v2506, %v2508
    %v2513 = vadd.s32 %v2509, 1
    %v2514 = vsel %vm2512, %v2513, %v2509
    %v2515 = vadd.s32 %v2510, %v2514
    %v2516 = vadd.s32 %v2515, 536870912
    %v2517 = vshrl.u32 %v2516, 30
    %v2518 = vshll.u32 %v2517, 30
    %v2519 = vsub.s32 %v2515, %v2518
    %vm2520 = vcmp.lt.s32.totalorder %v2519, 0
    %v2521 = vsub.s32 0, %v2519
    %v2522 = vsel %vm2520, %v2521, %v2519
    %v2523 = vclz %v2522
    %v2524 = vsub.s32 %v2523, 2
    %vm2525 = vcmp.gt.s32.totalorder 0, %v2524
    %v2526 = vsel %vm2525, 0, %v2524
    %v2527 = vsub.s32 32, %v2526
    %v2528 = vshll.u32 %v2519, %v2526
    %v2529 = vshrl.u32 %v2511, %v2527
    %v2530 = vor.u32 %v2528, %v2529
    %v2531 = vsub.s32 4294967266, %v2526
    %v2532 = vadd.s32 %v2531, 127
    %v2533 = vshll.u32 %v2532, 23
    %v2534 = vor.u32 4788187, %v2533
    %v2535 = vand.u32 2147483647, %v2534
    %v2537 = vcvt.s32.f32 %v2530
    %v2538 = vmul.f32 %v2537, %v2535
    %v2539 = vxor.u32 %v2538, 2147483648
    %v2540 = vsel %vm2457, %v2539, %v2538
    %v2541 = vsub.s32 4, %v2517
    %v2542 = vsel %vm2457, %v2541, %v2517
    %v2543 = vsel %vm2456, %v2302, %v2540
    %v2544 = vsel %vm2456, 0, %v2542
    %v2545 = vcosq.f32.pop %v2543
    %v2546 = vsinq.f32.pop %v2543
    %vm2547 = vweird.f32 %v2302
    %v2548 = vadd.s32 %v2544, 3
    %v2549 = vand.u32 %v2548, 3
    %vm2550 = vcmp.lt.s32.totalorder %v2549, 2
    %vm2551 = vcmp.eq.s32.totalorder %v2549, 0
    %v2552 = vxor.u32 %v2546, 2147483648
    %v2553 = vsel %vm2551, %v2545, %v2552
    %vm2554 = vcmp.eq.s32.totalorder %v2549, 2
    %v2555 = vxor.u32 %v2545, 2147483648
    %v2556 = vsel %vm2554, %v2555, %v2546
    %v2557 = vsel %vm2550, %v2553, %v2556
    %v2558 = vsel %vm2547, nan, %v2557
    %v2559 = vand.u32 2147483647, %v2304
    %vm2560 = vcmp.le.f32.partialorder %v2559, 0.7853982
    %vm2561 = vcmp.lt.s32.totalorder %v2304, 0
    %v2562 = vand.u32 %v2304, 2139095040
    %v2563 = vshrl.u32 %v2562, 23
    %v2564 = vsub.s32 %v2563, 127
    %v2565 = vand.u32 2147483647, %v2304
    %v2566 = vand.u32 %v2565, 8388607
    %v2567 = vor.u32 %v2566, 8388608
    %v2568 = vsub.s32 0, %v2567
    %v2569 = vadd.s32 %v2564, 1
    %vm2570 = vcmp.gt.s32.totalorder %v2569, 0
    %v2571 = vsel %vm2570, %v2569, 0
    %v2572 = vshrl.u32 %v2571, 5
    %v2573 = vand.u32 %v2571, 31
    %v2574 = vsub.s32 32, %v2573
    %v2575 = vshrl.u32 683565275, %v2574
    %v2576 = vshll.u32 683565275, %v2573
    %v2577 = vshrl.u32 2475754826, %v2574
    %v2578 = vor.u32 %v2576, %v2577
    %v2579 = vshll.u32 2475754826, %v2573
    %v2580 = vshrl.u32 2131351028, %v2574
    %v2581 = vor.u32 %v2579, %v2580
    %v2582 = vshll.u32 2131351028, %v2573
    %v2583 = vshrl.u32 2102212464, %v2574
    %v2584 = vor.u32 %v2582, %v2583
    %v2585 = vshll.u32 2102212464, %v2573
    %v2586 = vshrl.u32 920167782, %v2574
    %v2587 = vor.u32 %v2585, %v2586
    %v2588 = vshll.u32 920167782, %v2573
    %v2589 = vshrl.u32 1326507024, %v2574
    %v2590 = vor.u32 %v2588, %v2589
    %vm2591 = vcmp.lt.s32.totalorder %v2572, 1
    %vm2592 = vcmp.lt.s32.totalorder %v2572, 2
    %vm2593 = vcmp.lt.s32.totalorder %v2572, 3
    %vm2594 = vcmp.lt.s32.totalorder %v2572, 4
    %v2595 = vsel %vm2591, %v2575, %v2578
    %v2596 = vsel %vm2594, %v2584, 2102212464
    %v2597 = vsel %vm2593, %v2581, %v2596
    %v2598 = vsel %vm2592, %v2595, %v2597
    %v2599 = vsel %vm2591, %v2578, %v2581
    %v2600 = vsel %vm2594, %v2587, 920167782
    %v2601 = vsel %vm2593, %v2584, %v2600
    %v2602 = vsel %vm2592, %v2599, %v2601
    %v2603 = vsel %vm2591, %v2581, %v2584
    %v2604 = vsel %vm2594, %v2590, 1326507024
    %v2605 = vsel %vm2593, %v2587, %v2604
    %v2606 = vsel %vm2592, %v2603, %v2605
    %v2607 = vshll.u32 %v2567, 8
    %v2608 = vmul.u32.u64.compose %v2607, %v2606
    %v2609 = vextract.low.u32 %v2608
    %v2610 = vextract.high.u32 %v2608
    %v2611 = vmul.u32.u64.compose %v2607, %v2602
    %v2612 = vextract.low.u32 %v2611
    %v2613 = vextract.high.u32 %v2611
    %v2614 = vmul.u32 %v2607, %v2598
    %v2615 = vadd.s32 %v2610, %v2612
    %vm2616 = vc.u32 %v2610, %v2612
    %v2617 = vadd.s32 %v2613, 1
    %v2618 = vsel %vm2616, %v2617, %v2613
    %v2619 = vadd.s32 %v2614, %v2618
    %v2620 = vadd.s32 %v2619, 536870912
    %v2621 = vshrl.u32 %v2620, 30
    %v2622 = vshll.u32 %v2621, 30
    %v2623 = vsub.s32 %v2619, %v2622
    %vm2624 = vcmp.lt.s32.totalorder %v2623, 0
    %v2625 = vsub.s32 0, %v2623
    %v2626 = vsel %vm2624, %v2625, %v2623
    %v2627 = vclz %v2626
    %v2628 = vsub.s32 %v2627, 2
    %vm2629 = vcmp.gt.s32.totalorder 0, %v2628
    %v2630 = vsel %vm2629, 0, %v2628
    %v2631 = vsub.s32 32, %v2630
    %v2632 = vshll.u32 %v2623, %v2630
    %v2633 = vshrl.u32 %v2615, %v2631
    %v2634 = vor.u32 %v2632, %v2633
    %v2635 = vsub.s32 4294967266, %v2630
    %v2636 = vadd.s32 %v2635, 127
    %v2637 = vshll.u32 %v2636, 23
    %v2638 = vor.u32 4788187, %v2637
    %v2639 = vand.u32 2147483647, %v2638
    %v2641 = vcvt.s32.f32 %v2634
    %v2642 = vmul.f32 %v2641, %v2639
    %v2643 = vxor.u32 %v2642, 2147483648
    %v2644 = vsel %vm2561, %v2643, %v2642
    %v2645 = vsub.s32 4, %v2621
    %v2646 = vsel %vm2561, %v2645, %v2621
    %v2647 = vsel %vm2560, %v2304, %v2644
    %v2648 = vsel %vm2560, 0, %v2646
    %v2649 = vcosq.f32.pop %v2647
    %v2650 = vsinq.f32.pop %v2647
    %vm2651 = vweird.f32 %v2304
    %v2652 = vadd.s32 %v2648, 3
    %v2653 = vand.u32 %v2652, 3
    %vm2654 = vcmp.lt.s32.totalorder %v2653, 2
    %vm2655 = vcmp.eq.s32.totalorder %v2653, 0
    %v2656 = vxor.u32 %v2650, 2147483648
    %v2657 = vsel %vm2655, %v2649, %v2656
    %vm2658 = vcmp.eq.s32.totalorder %v2653, 2
    %v2659 = vxor.u32 %v2649, 2147483648
    %v2660 = vsel %vm2658, %v2659, %v2650
    %v2661 = vsel %vm2654, %v2657, %v2660
    %v2662 = vsel %vm2651, nan, %v2661
    %v2663 = vand.u32 2147483647, %v2308
    %vm2664 = vcmp.le.f32.partialorder %v2663, 0.7853982
    %vm2665 = vcmp.lt.s32.totalorder %v2308, 0
    %v2666 = vand.u32 %v2308, 2139095040
    %v2667 = vshrl.u32 %v2666, 23
    %v2668 = vsub.s32 %v2667, 127
    %v2669 = vand.u32 2147483647, %v2308
    %v2670 = vand.u32 %v2669, 8388607
    %v2671 = vor.u32 %v2670, 8388608
    %v2672 = vsub.s32 0, %v2671
    %v2673 = vadd.s32 %v2668, 1
    %vm2674 = vcmp.gt.s32.totalorder %v2673, 0
    %v2675 = vsel %vm2674, %v2673, 0
    %v2676 = vshrl.u32 %v2675, 5
    %v2677 = vand.u32 %v2675, 31
    %v2678 = vsub.s32 32, %v2677
    %v2679 = vshrl.u32 683565275, %v2678
    %v2680 = vshll.u32 683565275, %v2677
    %v2681 = vshrl.u32 2475754826, %v2678
    %v2682 = vor.u32 %v2680, %v2681
    %v2683 = vshll.u32 2475754826, %v2677
    %v2684 = vshrl.u32 2131351028, %v2678
    %v2685 = vor.u32 %v2683, %v2684
    %v2686 = vshll.u32 2131351028, %v2677
    %v2687 = vshrl.u32 2102212464, %v2678
    %v2688 = vor.u32 %v2686, %v2687
    %v2689 = vshll.u32 2102212464, %v2677
    %v2690 = vshrl.u32 920167782, %v2678
    %v2691 = vor.u32 %v2689, %v2690
    %v2692 = vshll.u32 920167782, %v2677
    %v2693 = vshrl.u32 1326507024, %v2678
    %v2694 = vor.u32 %v2692, %v2693
    %vm2695 = vcmp.lt.s32.totalorder %v2676, 1
    %vm2696 = vcmp.lt.s32.totalorder %v2676, 2
    %vm2697 = vcmp.lt.s32.totalorder %v2676, 3
    %vm2698 = vcmp.lt.s32.totalorder %v2676, 4
    %v2699 = vsel %vm2695, %v2679, %v2682
    %v2700 = vsel %vm2698, %v2688, 2102212464
    %v2701 = vsel %vm2697, %v2685, %v2700
    %v2702 = vsel %vm2696, %v2699, %v2701
    %v2703 = vsel %vm2695, %v2682, %v2685
    %v2704 = vsel %vm2698, %v2691, 920167782
    %v2705 = vsel %vm2697, %v2688, %v2704
    %v2706 = vsel %vm2696, %v2703, %v2705
    %v2707 = vsel %vm2695, %v2685, %v2688
    %v2708 = vsel %vm2698, %v2694, 1326507024
    %v2709 = vsel %vm2697, %v2691, %v2708
    %v2710 = vsel %vm2696, %v2707, %v2709
    %v2711 = vshll.u32 %v2671, 8
    %v2712 = vmul.u32.u64.compose %v2711, %v2710
    %v2713 = vextract.low.u32 %v2712
    %v2714 = vextract.high.u32 %v2712
    %v2715 = vmul.u32.u64.compose %v2711, %v2706
    %v2716 = vextract.low.u32 %v2715
    %v2717 = vextract.high.u32 %v2715
    %v2718 = vmul.u32 %v2711, %v2702
    %v2719 = vadd.s32 %v2714, %v2716
    %vm2720 = vc.u32 %v2714, %v2716
    %v2721 = vadd.s32 %v2717, 1
    %v2722 = vsel %vm2720, %v2721, %v2717
    %v2723 = vadd.s32 %v2718, %v2722
    %v2724 = vadd.s32 %v2723, 536870912
    %v2725 = vshrl.u32 %v2724, 30
    %v2726 = vshll.u32 %v2725, 30
    %v2727 = vsub.s32 %v2723, %v2726
    %vm2728 = vcmp.lt.s32.totalorder %v2727, 0
    %v2729 = vsub.s32 0, %v2727
    %v2730 = vsel %vm2728, %v2729, %v2727
    %v2731 = vclz %v2730
    %v2732 = vsub.s32 %v2731, 2
    %vm2733 = vcmp.gt.s32.totalorder 0, %v2732
    %v2734 = vsel %vm2733, 0, %v2732
    %v2735 = vsub.s32 32, %v2734
    %v2736 = vshll.u32 %v2727, %v2734
    %v2737 = vshrl.u32 %v2719, %v2735
    %v2738 = vor.u32 %v2736, %v2737
    %v2739 = vsub.s32 4294967266, %v2734
    %v2740 = vadd.s32 %v2739, 127
    %v2741 = vshll.u32 %v2740, 23
    %v2742 = vor.u32 4788187, %v2741
    %v2743 = vand.u32 2147483647, %v2742
    %v2745 = vcvt.s32.f32 %v2738
    %v2746 = vmul.f32 %v2745, %v2743
    %v2747 = vxor.u32 %v2746, 2147483648
    %v2748 = vsel %vm2665, %v2747, %v2746
    %v2749 = vsub.s32 4, %v2725
    %v2750 = vsel %vm2665, %v2749, %v2725
    %v2751 = vsel %vm2664, %v2308, %v2748
    %v2752 = vsel %vm2664, 0, %v2750
    %v2753 = vcosq.f32.pop %v2751
    %v2754 = vsinq.f32.pop %v2751
    %vm2755 = vweird.f32 %v2308
    %v2756 = vadd.s32 %v2752, 3
    %v2757 = vand.u32 %v2756, 3
    %vm2758 = vcmp.lt.s32.totalorder %v2757, 2
    %vm2759 = vcmp.eq.s32.totalorder %v2757, 0
    %v2760 = vxor.u32 %v2754, 2147483648
    %v2761 = vsel %vm2759, %v2753, %v2760
    %vm2762 = vcmp.eq.s32.totalorder %v2757, 2
    %v2763 = vxor.u32 %v2753, 2147483648
    %v2764 = vsel %vm2762, %v2763, %v2754
    %v2765 = vsel %vm2758, %v2761, %v2764
    %v2766 = vsel %vm2755, nan, %v2765
    %v2767 = vand.u32 2147483647, %v2310
    %vm2768 = vcmp.le.f32.partialorder %v2767, 0.7853982
    %vm2769 = vcmp.lt.s32.totalorder %v2310, 0
    %v2770 = vand.u32 %v2310, 2139095040
    %v2771 = vshrl.u32 %v2770, 23
    %v2772 = vsub.s32 %v2771, 127
    %v2773 = vand.u32 2147483647, %v2310
    %v2774 = vand.u32 %v2773, 8388607
    %v2775 = vor.u32 %v2774, 8388608
    %v2776 = vsub.s32 0, %v2775
    %v2777 = vadd.s32 %v2772, 1
    %vm2778 = vcmp.gt.s32.totalorder %v2777, 0
    %v2779 = vsel %vm2778, %v2777, 0
    %v2780 = vshrl.u32 %v2779, 5
    %v2781 = vand.u32 %v2779, 31
    %v2782 = vsub.s32 32, %v2781
    %v2783 = vshrl.u32 683565275, %v2782
    %v2784 = vshll.u32 683565275, %v2781
    %v2785 = vshrl.u32 2475754826, %v2782
    %v2786 = vor.u32 %v2784, %v2785
    %v2787 = vshll.u32 2475754826, %v2781
    %v2788 = vshrl.u32 2131351028, %v2782
    %v2789 = vor.u32 %v2787, %v2788
    %v2790 = vshll.u32 2131351028, %v2781
    %v2791 = vshrl.u32 2102212464, %v2782
    %v2792 = vor.u32 %v2790, %v2791
    %v2793 = vshll.u32 2102212464, %v2781
    %v2794 = vshrl.u32 920167782, %v2782
    %v2795 = vor.u32 %v2793, %v2794
    %v2796 = vshll.u32 920167782, %v2781
    %v2797 = vshrl.u32 1326507024, %v2782
    %v2798 = vor.u32 %v2796, %v2797
    %vm2799 = vcmp.lt.s32.totalorder %v2780, 1
    %vm2800 = vcmp.lt.s32.totalorder %v2780, 2
    %vm2801 = vcmp.lt.s32.totalorder %v2780, 3
    %vm2802 = vcmp.lt.s32.totalorder %v2780, 4
    %v2803 = vsel %vm2799, %v2783, %v2786
    %v2804 = vsel %vm2802, %v2792, 2102212464
    %v2805 = vsel %vm2801, %v2789, %v2804
    %v2806 = vsel %vm2800, %v2803, %v2805
    %v2807 = vsel %vm2799, %v2786, %v2789
    %v2808 = vsel %vm2802, %v2795, 920167782
    %v2809 = vsel %vm2801, %v2792, %v2808
    %v2810 = vsel %vm2800, %v2807, %v2809
    %v2811 = vsel %vm2799, %v2789, %v2792
    %v2812 = vsel %vm2802, %v2798, 1326507024
    %v2813 = vsel %vm2801, %v2795, %v2812
    %v2814 = vsel %vm2800, %v2811, %v2813
    %v2815 = vshll.u32 %v2775, 8
    %v2816 = vmul.u32.u64.compose %v2815, %v2814
    %v2817 = vextract.low.u32 %v2816
    %v2818 = vextract.high.u32 %v2816
    %v2819 = vmul.u32.u64.compose %v2815, %v2810
    %v2820 = vextract.low.u32 %v2819
    %v2821 = vextract.high.u32 %v2819
    %v2822 = vmul.u32 %v2815, %v2806
    %v2823 = vadd.s32 %v2818, %v2820
    %vm2824 = vc.u32 %v2818, %v2820
    %v2825 = vadd.s32 %v2821, 1
    %v2826 = vsel %vm2824, %v2825, %v2821
    %v2827 = vadd.s32 %v2822, %v2826
    %v2828 = vadd.s32 %v2827, 536870912
    %v2829 = vshrl.u32 %v2828, 30
    %v2830 = vshll.u32 %v2829, 30
    %v2831 = vsub.s32 %v2827, %v2830
    %vm2832 = vcmp.lt.s32.totalorder %v2831, 0
    %v2833 = vsub.s32 0, %v2831
    %v2834 = vsel %vm2832, %v2833, %v2831
    %v2835 = vclz %v2834
    %v2836 = vsub.s32 %v2835, 2
    %vm2837 = vcmp.gt.s32.totalorder 0, %v2836
    %v2838 = vsel %vm2837, 0, %v2836
    %v2839 = vsub.s32 32, %v2838
    %v2840 = vshll.u32 %v2831, %v2838
    %v2841 = vshrl.u32 %v2823, %v2839
    %v2842 = vor.u32 %v2840, %v2841
    %v2843 = vsub.s32 4294967266, %v2838
    %v2844 = vadd.s32 %v2843, 127
    %v2845 = vshll.u32 %v2844, 23
    %v2846 = vor.u32 4788187, %v2845
    %v2847 = vand.u32 2147483647, %v2846
    %v2849 = vcvt.s32.f32 %v2842
    %v2850 = vmul.f32 %v2849, %v2847
    %v2851 = vxor.u32 %v2850, 2147483648
    %v2852 = vsel %vm2769, %v2851, %v2850
    %v2853 = vsub.s32 4, %v2829
    %v2854 = vsel %vm2769, %v2853, %v2829
    %v2855 = vsel %vm2768, %v2310, %v2852
    %v2856 = vsel %vm2768, 0, %v2854
    %v2857 = vcosq.f32.pop %v2855
    %v2858 = vsinq.f32.pop %v2855
    %vm2859 = vweird.f32 %v2310
    %v2860 = vadd.s32 %v2856, 3
    %v2861 = vand.u32 %v2860, 3
    %vm2862 = vcmp.lt.s32.totalorder %v2861, 2
    %vm2863 = vcmp.eq.s32.totalorder %v2861, 0
    %v2864 = vxor.u32 %v2858, 2147483648
    %v2865 = vsel %vm2863, %v2857, %v2864
    %vm2866 = vcmp.eq.s32.totalorder %v2861, 2
    %v2867 = vxor.u32 %v2857, 2147483648
    %v2868 = vsel %vm2866, %v2867, %v2858
    %v2869 = vsel %vm2862, %v2865, %v2868
    %v2870 = vsel %vm2859, nan, %v2869
    %v2871 = vand.u32 2147483647, %v2314
    %vm2872 = vcmp.le.f32.partialorder %v2871, 0.7853982
    %vm2873 = vcmp.lt.s32.totalorder %v2314, 0
    %v2874 = vand.u32 %v2314, 2139095040
    %v2875 = vshrl.u32 %v2874, 23
    %v2876 = vsub.s32 %v2875, 127
    %v2877 = vand.u32 2147483647, %v2314
    %v2878 = vand.u32 %v2877, 8388607
    %v2879 = vor.u32 %v2878, 8388608
    %v2880 = vsub.s32 0, %v2879
    %v2881 = vadd.s32 %v2876, 1
    %vm2882 = vcmp.gt.s32.totalorder %v2881, 0
    %v2883 = vsel %vm2882, %v2881, 0
    %v2884 = vshrl.u32 %v2883, 5
    %v2885 = vand.u32 %v2883, 31
    %v2886 = vsub.s32 32, %v2885
    %v2887 = vshrl.u32 683565275, %v2886
    %v2888 = vshll.u32 683565275, %v2885
    %v2889 = vshrl.u32 2475754826, %v2886
    %v2890 = vor.u32 %v2888, %v2889
    %v2891 = vshll.u32 2475754826, %v2885
    %v2892 = vshrl.u32 2131351028, %v2886
    %v2893 = vor.u32 %v2891, %v2892
    %v2894 = vshll.u32 2131351028, %v2885
    %v2895 = vshrl.u32 2102212464, %v2886
    %v2896 = vor.u32 %v2894, %v2895
    %v2897 = vshll.u32 2102212464, %v2885
    %v2898 = vshrl.u32 920167782, %v2886
    %v2899 = vor.u32 %v2897, %v2898
    %v2900 = vshll.u32 920167782, %v2885
    %v2901 = vshrl.u32 1326507024, %v2886
    %v2902 = vor.u32 %v2900, %v2901
    %vm2903 = vcmp.lt.s32.totalorder %v2884, 1
    %vm2904 = vcmp.lt.s32.totalorder %v2884, 2
    %vm2905 = vcmp.lt.s32.totalorder %v2884, 3
    %vm2906 = vcmp.lt.s32.totalorder %v2884, 4
    %v2907 = vsel %vm2903, %v2887, %v2890
    %v2908 = vsel %vm2906, %v2896, 2102212464
    %v2909 = vsel %vm2905, %v2893, %v2908
    %v2910 = vsel %vm2904, %v2907, %v2909
    %v2911 = vsel %vm2903, %v2890, %v2893
    %v2912 = vsel %vm2906, %v2899, 920167782
    %v2913 = vsel %vm2905, %v2896, %v2912
    %v2914 = vsel %vm2904, %v2911, %v2913
    %v2915 = vsel %vm2903, %v2893, %v2896
    %v2916 = vsel %vm2906, %v2902, 1326507024
    %v2917 = vsel %vm2905, %v2899, %v2916
    %v2918 = vsel %vm2904, %v2915, %v2917
    %v2919 = vshll.u32 %v2879, 8
    %v2920 = vmul.u32.u64.compose %v2919, %v2918
    %v2921 = vextract.low.u32 %v2920
    %v2922 = vextract.high.u32 %v2920
    %v2923 = vmul.u32.u64.compose %v2919, %v2914
    %v2924 = vextract.low.u32 %v2923
    %v2925 = vextract.high.u32 %v2923
    %v2926 = vmul.u32 %v2919, %v2910
    %v2927 = vadd.s32 %v2922, %v2924
    %vm2928 = vc.u32 %v2922, %v2924
    %v2929 = vadd.s32 %v2925, 1
    %v2930 = vsel %vm2928, %v2929, %v2925
    %v2931 = vadd.s32 %v2926, %v2930
    %v2932 = vadd.s32 %v2931, 536870912
    %v2933 = vshrl.u32 %v2932, 30
    %v2934 = vshll.u32 %v2933, 30
    %v2935 = vsub.s32 %v2931, %v2934
    %vm2936 = vcmp.lt.s32.totalorder %v2935, 0
    %v2937 = vsub.s32 0, %v2935
    %v2938 = vsel %vm2936, %v2937, %v2935
    %v2939 = vclz %v2938
    %v2940 = vsub.s32 %v2939, 2
    %vm2941 = vcmp.gt.s32.totalorder 0, %v2940
    %v2942 = vsel %vm2941, 0, %v2940
    %v2943 = vsub.s32 32, %v2942
    %v2944 = vshll.u32 %v2935, %v2942
    %v2945 = vshrl.u32 %v2927, %v2943
    %v2946 = vor.u32 %v2944, %v2945
    %v2947 = vsub.s32 4294967266, %v2942
    %v2948 = vadd.s32 %v2947, 127
    %v2949 = vshll.u32 %v2948, 23
    %v2950 = vor.u32 4788187, %v2949
    %v2951 = vand.u32 2147483647, %v2950
    %v2953 = vcvt.s32.f32 %v2946
    %v2954 = vmul.f32 %v2953, %v2951
    %v2955 = vxor.u32 %v2954, 2147483648
    %v2956 = vsel %vm2873, %v2955, %v2954
    %v2957 = vsub.s32 4, %v2933
    %v2958 = vsel %vm2873, %v2957, %v2933
    %v2959 = vsel %vm2872, %v2314, %v2956
    %v2960 = vsel %vm2872, 0, %v2958
    %v2961 = vcosq.f32.pop %v2959
    %v2962 = vsinq.f32.pop %v2959
    %vm2963 = vweird.f32 %v2314
    %v2964 = vadd.s32 %v2960, 3
    %v2965 = vand.u32 %v2964, 3
    %vm2966 = vcmp.lt.s32.totalorder %v2965, 2
    %vm2967 = vcmp.eq.s32.totalorder %v2965, 0
    %v2968 = vxor.u32 %v2962, 2147483648
    %v2969 = vsel %vm2967, %v2961, %v2968
    %vm2970 = vcmp.eq.s32.totalorder %v2965, 2
    %v2971 = vxor.u32 %v2961, 2147483648
    %v2972 = vsel %vm2970, %v2971, %v2962
    %v2973 = vsel %vm2966, %v2969, %v2972
    %v2974 = vsel %vm2963, nan, %v2973
    %v2975 = vand.u32 2147483647, %v2316
    %vm2976 = vcmp.le.f32.partialorder %v2975, 0.7853982
    %vm2977 = vcmp.lt.s32.totalorder %v2316, 0
    %v2978 = vand.u32 %v2316, 2139095040
    %v2979 = vshrl.u32 %v2978, 23
    %v2980 = vsub.s32 %v2979, 127
    %v2981 = vand.u32 2147483647, %v2316
    %v2982 = vand.u32 %v2981, 8388607
    %v2983 = vor.u32 %v2982, 8388608
    %v2984 = vsub.s32 0, %v2983
    %v2985 = vadd.s32 %v2980, 1
    %vm2986 = vcmp.gt.s32.totalorder %v2985, 0
    %v2987 = vsel %vm2986, %v2985, 0
    %v2988 = vshrl.u32 %v2987, 5
    %v2989 = vand.u32 %v2987, 31
    %v2990 = vsub.s32 32, %v2989
    %v2991 = vshrl.u32 683565275, %v2990
    %v2992 = vshll.u32 683565275, %v2989
    %v2993 = vshrl.u32 2475754826, %v2990
    %v2994 = vor.u32 %v2992, %v2993
    %v2995 = vshll.u32 2475754826, %v2989
    %v2996 = vshrl.u32 2131351028, %v2990
    %v2997 = vor.u32 %v2995, %v2996
    %v2998 = vshll.u32 2131351028, %v2989
    %v2999 = vshrl.u32 2102212464, %v2990
    %v3000 = vor.u32 %v2998, %v2999
    %v3001 = vshll.u32 2102212464, %v2989
    %v3002 = vshrl.u32 920167782, %v2990
    %v3003 = vor.u32 %v3001, %v3002
    %v3004 = vshll.u32 920167782, %v2989
    %v3005 = vshrl.u32 1326507024, %v2990
    %v3006 = vor.u32 %v3004, %v3005
    %vm3007 = vcmp.lt.s32.totalorder %v2988, 1
    %vm3008 = vcmp.lt.s32.totalorder %v2988, 2
    %vm3009 = vcmp.lt.s32.totalorder %v2988, 3
    %vm3010 = vcmp.lt.s32.totalorder %v2988, 4
    %v3011 = vsel %vm3007, %v2991, %v2994
    %v3012 = vsel %vm3010, %v3000, 2102212464
    %v3013 = vsel %vm3009, %v2997, %v3012
    %v3014 = vsel %vm3008, %v3011, %v3013
    %v3015 = vsel %vm3007, %v2994, %v2997
    %v3016 = vsel %vm3010, %v3003, 920167782
    %v3017 = vsel %vm3009, %v3000, %v3016
    %v3018 = vsel %vm3008, %v3015, %v3017
    %v3019 = vsel %vm3007, %v2997, %v3000
    %v3020 = vsel %vm3010, %v3006, 1326507024
    %v3021 = vsel %vm3009, %v3003, %v3020
    %v3022 = vsel %vm3008, %v3019, %v3021
    %v3023 = vshll.u32 %v2983, 8
    %v3024 = vmul.u32.u64.compose %v3023, %v3022
    %v3025 = vextract.low.u32 %v3024
    %v3026 = vextract.high.u32 %v3024
    %v3027 = vmul.u32.u64.compose %v3023, %v3018
    %v3028 = vextract.low.u32 %v3027
    %v3029 = vextract.high.u32 %v3027
    %v3030 = vmul.u32 %v3023, %v3014
    %v3031 = vadd.s32 %v3026, %v3028
    %vm3032 = vc.u32 %v3026, %v3028
    %v3033 = vadd.s32 %v3029, 1
    %v3034 = vsel %vm3032, %v3033, %v3029
    %v3035 = vadd.s32 %v3030, %v3034
    %v3036 = vadd.s32 %v3035, 536870912
    %v3037 = vshrl.u32 %v3036, 30
    %v3038 = vshll.u32 %v3037, 30
    %v3039 = vsub.s32 %v3035, %v3038
    %vm3040 = vcmp.lt.s32.totalorder %v3039, 0
    %v3041 = vsub.s32 0, %v3039
    %v3042 = vsel %vm3040, %v3041, %v3039
    %v3043 = vclz %v3042
    %v3044 = vsub.s32 %v3043, 2
    %vm3045 = vcmp.gt.s32.totalorder 0, %v3044
    %v3046 = vsel %vm3045, 0, %v3044
    %v3047 = vsub.s32 32, %v3046
    %v3048 = vshll.u32 %v3039, %v3046
    %v3049 = vshrl.u32 %v3031, %v3047
    %v3050 = vor.u32 %v3048, %v3049
    %v3051 = vsub.s32 4294967266, %v3046
    %v3052 = vadd.s32 %v3051, 127
    %v3053 = vshll.u32 %v3052, 23
    %v3054 = vor.u32 4788187, %v3053
    %v3055 = vand.u32 2147483647, %v3054
    %v3057 = vcvt.s32.f32 %v3050
    %v3058 = vmul.f32 %v3057, %v3055
    %v3059 = vxor.u32 %v3058, 2147483648
    %v3060 = vsel %vm2977, %v3059, %v3058
    %v3061 = vsub.s32 4, %v3037
    %v3062 = vsel %vm2977, %v3061, %v3037
    %v3063 = vsel %vm2976, %v2316, %v3060
    %v3064 = vsel %vm2976, 0, %v3062
    %v3065 = vcosq.f32.pop %v3063
    %v3066 = vsinq.f32.pop %v3063
    %vm3067 = vweird.f32 %v2316
    %v3068 = vadd.s32 %v3064, 3
    %v3069 = vand.u32 %v3068, 3
    %vm3070 = vcmp.lt.s32.totalorder %v3069, 2
    %vm3071 = vcmp.eq.s32.totalorder %v3069, 0
    %v3072 = vxor.u32 %v3066, 2147483648
    %v3073 = vsel %vm3071, %v3065, %v3072
    %vm3074 = vcmp.eq.s32.totalorder %v3069, 2
    %v3075 = vxor.u32 %v3065, 2147483648
    %v3076 = vsel %vm3074, %v3075, %v3066
    %v3077 = vsel %vm3070, %v3073, %v3076
    %v3078 = vsel %vm3067, nan, %v3077
    %v3079 = vand.u32 2147483647, %v2320
    %vm3080 = vcmp.le.f32.partialorder %v3079, 0.7853982
    %vm3081 = vcmp.lt.s32.totalorder %v2320, 0
    %v3082 = vand.u32 %v2320, 2139095040
    %v3083 = vshrl.u32 %v3082, 23
    %v3084 = vsub.s32 %v3083, 127
    %v3085 = vand.u32 2147483647, %v2320
    %v3086 = vand.u32 %v3085, 8388607
    %v3087 = vor.u32 %v3086, 8388608
    %v3088 = vsub.s32 0, %v3087
    %v3089 = vadd.s32 %v3084, 1
    %vm3090 = vcmp.gt.s32.totalorder %v3089, 0
    %v3091 = vsel %vm3090, %v3089, 0
    %v3092 = vshrl.u32 %v3091, 5
    %v3093 = vand.u32 %v3091, 31
    %v3094 = vsub.s32 32, %v3093
    %v3095 = vshrl.u32 683565275, %v3094
    %v3096 = vshll.u32 683565275, %v3093
    %v3097 = vshrl.u32 2475754826, %v3094
    %v3098 = vor.u32 %v3096, %v3097
    %v3099 = vshll.u32 2475754826, %v3093
    %v3100 = vshrl.u32 2131351028, %v3094
    %v3101 = vor.u32 %v3099, %v3100
    %v3102 = vshll.u32 2131351028, %v3093
    %v3103 = vshrl.u32 2102212464, %v3094
    %v3104 = vor.u32 %v3102, %v3103
    %v3105 = vshll.u32 2102212464, %v3093
    %v3106 = vshrl.u32 920167782, %v3094
    %v3107 = vor.u32 %v3105, %v3106
    %v3108 = vshll.u32 920167782, %v3093
    %v3109 = vshrl.u32 1326507024, %v3094
    %v3110 = vor.u32 %v3108, %v3109
    %vm3111 = vcmp.lt.s32.totalorder %v3092, 1
    %vm3112 = vcmp.lt.s32.totalorder %v3092, 2
    %vm3113 = vcmp.lt.s32.totalorder %v3092, 3
    %vm3114 = vcmp.lt.s32.totalorder %v3092, 4
    %v3115 = vsel %vm3111, %v3095, %v3098
    %v3116 = vsel %vm3114, %v3104, 2102212464
    %v3117 = vsel %vm3113, %v3101, %v3116
    %v3118 = vsel %vm3112, %v3115, %v3117
    %v3119 = vsel %vm3111, %v3098, %v3101
    %v3120 = vsel %vm3114, %v3107, 920167782
    %v3121 = vsel %vm3113, %v3104, %v3120
    %v3122 = vsel %vm3112, %v3119, %v3121
    %v3123 = vsel %vm3111, %v3101, %v3104
    %v3124 = vsel %vm3114, %v3110, 1326507024
    %v3125 = vsel %vm3113, %v3107, %v3124
    %v3126 = vsel %vm3112, %v3123, %v3125
    %v3127 = vshll.u32 %v3087, 8
    %v3128 = vmul.u32.u64.compose %v3127, %v3126
    %v3129 = vextract.low.u32 %v3128
    %v3130 = vextract.high.u32 %v3128
    %v3131 = vmul.u32.u64.compose %v3127, %v3122
    %v3132 = vextract.low.u32 %v3131
    %v3133 = vextract.high.u32 %v3131
    %v3134 = vmul.u32 %v3127, %v3118
    %v3135 = vadd.s32 %v3130, %v3132
    %vm3136 = vc.u32 %v3130, %v3132
    %v3137 = vadd.s32 %v3133, 1
    %v3138 = vsel %vm3136, %v3137, %v3133
    %v3139 = vadd.s32 %v3134, %v3138
    %v3140 = vadd.s32 %v3139, 536870912
    %v3141 = vshrl.u32 %v3140, 30
    %v3142 = vshll.u32 %v3141, 30
    %v3143 = vsub.s32 %v3139, %v3142
    %vm3144 = vcmp.lt.s32.totalorder %v3143, 0
    %v3145 = vsub.s32 0, %v3143
    %v3146 = vsel %vm3144, %v3145, %v3143
    %v3147 = vclz %v3146
    %v3148 = vsub.s32 %v3147, 2
    %vm3149 = vcmp.gt.s32.totalorder 0, %v3148
    %v3150 = vsel %vm3149, 0, %v3148
    %v3151 = vsub.s32 32, %v3150
    %v3152 = vshll.u32 %v3143, %v3150
    %v3153 = vshrl.u32 %v3135, %v3151
    %v3154 = vor.u32 %v3152, %v3153
    %v3155 = vsub.s32 4294967266, %v3150
    %v3156 = vadd.s32 %v3155, 127
    %v3157 = vshll.u32 %v3156, 23
    %v3158 = vor.u32 4788187, %v3157
    %v3159 = vand.u32 2147483647, %v3158
    %v3161 = vcvt.s32.f32 %v3154
    %v3162 = vmul.f32 %v3161, %v3159
    %v3163 = vxor.u32 %v3162, 2147483648
    %v3164 = vsel %vm3081, %v3163, %v3162
    %v3165 = vsub.s32 4, %v3141
    %v3166 = vsel %vm3081, %v3165, %v3141
    %v3167 = vsel %vm3080, %v2320, %v3164
    %v3168 = vsel %vm3080, 0, %v3166
    %v3169 = vcosq.f32.pop %v3167
    %v3170 = vsinq.f32.pop %v3167
    %vm3171 = vweird.f32 %v2320
    %v3172 = vadd.s32 %v3168, 3
    %v3173 = vand.u32 %v3172, 3
    %vm3174 = vcmp.lt.s32.totalorder %v3173, 2
    %vm3175 = vcmp.eq.s32.totalorder %v3173, 0
    %v3176 = vxor.u32 %v3170, 2147483648
    %v3177 = vsel %vm3175, %v3169, %v3176
    %vm3178 = vcmp.eq.s32.totalorder %v3173, 2
    %v3179 = vxor.u32 %v3169, 2147483648
    %v3180 = vsel %vm3178, %v3179, %v3170
    %v3181 = vsel %vm3174, %v3177, %v3180
    %v3182 = vsel %vm3171, nan, %v3181
    %v3183 = vand.u32 2147483647, %v2322
    %vm3184 = vcmp.le.f32.partialorder %v3183, 0.7853982
    %vm3185 = vcmp.lt.s32.totalorder %v2322, 0
    %v3186 = vand.u32 %v2322, 2139095040
    %v3187 = vshrl.u32 %v3186, 23
    %v3188 = vsub.s32 %v3187, 127
    %v3189 = vand.u32 2147483647, %v2322
    %v3190 = vand.u32 %v3189, 8388607
    %v3191 = vor.u32 %v3190, 8388608
    %v3192 = vsub.s32 0, %v3191
    %v3193 = vadd.s32 %v3188, 1
    %vm3194 = vcmp.gt.s32.totalorder %v3193, 0
    %v3195 = vsel %vm3194, %v3193, 0
    %v3196 = vshrl.u32 %v3195, 5
    %v3197 = vand.u32 %v3195, 31
    %v3198 = vsub.s32 32, %v3197
    %v3199 = vshrl.u32 683565275, %v3198
    %v3200 = vshll.u32 683565275, %v3197
    %v3201 = vshrl.u32 2475754826, %v3198
    %v3202 = vor.u32 %v3200, %v3201
    %v3203 = vshll.u32 2475754826, %v3197
    %v3204 = vshrl.u32 2131351028, %v3198
    %v3205 = vor.u32 %v3203, %v3204
    %v3206 = vshll.u32 2131351028, %v3197
    %v3207 = vshrl.u32 2102212464, %v3198
    %v3208 = vor.u32 %v3206, %v3207
    %v3209 = vshll.u32 2102212464, %v3197
    %v3210 = vshrl.u32 920167782, %v3198
    %v3211 = vor.u32 %v3209, %v3210
    %v3212 = vshll.u32 920167782, %v3197
    %v3213 = vshrl.u32 1326507024, %v3198
    %v3214 = vor.u32 %v3212, %v3213
    %vm3215 = vcmp.lt.s32.totalorder %v3196, 1
    %vm3216 = vcmp.lt.s32.totalorder %v3196, 2
    %vm3217 = vcmp.lt.s32.totalorder %v3196, 3
    %vm3218 = vcmp.lt.s32.totalorder %v3196, 4
    %v3219 = vsel %vm3215, %v3199, %v3202
    %v3220 = vsel %vm3218, %v3208, 2102212464
    %v3221 = vsel %vm3217, %v3205, %v3220
    %v3222 = vsel %vm3216, %v3219, %v3221
    %v3223 = vsel %vm3215, %v3202, %v3205
    %v3224 = vsel %vm3218, %v3211, 920167782
    %v3225 = vsel %vm3217, %v3208, %v3224
    %v3226 = vsel %vm3216, %v3223, %v3225
    %v3227 = vsel %vm3215, %v3205, %v3208
    %v3228 = vsel %vm3218, %v3214, 1326507024
    %v3229 = vsel %vm3217, %v3211, %v3228
    %v3230 = vsel %vm3216, %v3227, %v3229
    %v3231 = vshll.u32 %v3191, 8
    %v3232 = vmul.u32.u64.compose %v3231, %v3230
    %v3233 = vextract.low.u32 %v3232
    %v3234 = vextract.high.u32 %v3232
    %v3235 = vmul.u32.u64.compose %v3231, %v3226
    %v3236 = vextract.low.u32 %v3235
    %v3237 = vextract.high.u32 %v3235
    %v3238 = vmul.u32 %v3231, %v3222
    %v3239 = vadd.s32 %v3234, %v3236
    %vm3240 = vc.u32 %v3234, %v3236
    %v3241 = vadd.s32 %v3237, 1
    %v3242 = vsel %vm3240, %v3241, %v3237
    %v3243 = vadd.s32 %v3238, %v3242
    %v3244 = vadd.s32 %v3243, 536870912
    %v3245 = vshrl.u32 %v3244, 30
    %v3246 = vshll.u32 %v3245, 30
    %v3247 = vsub.s32 %v3243, %v3246
    %vm3248 = vcmp.lt.s32.totalorder %v3247, 0
    %v3249 = vsub.s32 0, %v3247
    %v3250 = vsel %vm3248, %v3249, %v3247
    %v3251 = vclz %v3250
    %v3252 = vsub.s32 %v3251, 2
    %vm3253 = vcmp.gt.s32.totalorder 0, %v3252
    %v3254 = vsel %vm3253, 0, %v3252
    %v3255 = vsub.s32 32, %v3254
    %v3256 = vshll.u32 %v3247, %v3254
    %v3257 = vshrl.u32 %v3239, %v3255
    %v3258 = vor.u32 %v3256, %v3257
    %v3259 = vsub.s32 4294967266, %v3254
    %v3260 = vadd.s32 %v3259, 127
    %v3261 = vshll.u32 %v3260, 23
    %v3262 = vor.u32 4788187, %v3261
    %v3263 = vand.u32 2147483647, %v3262
    %v3265 = vcvt.s32.f32 %v3258
    %v3266 = vmul.f32 %v3265, %v3263
    %v3267 = vxor.u32 %v3266, 2147483648
    %v3268 = vsel %vm3185, %v3267, %v3266
    %v3269 = vsub.s32 4, %v3245
    %v3270 = vsel %vm3185, %v3269, %v3245
    %v3271 = vsel %vm3184, %v2322, %v3268
    %v3272 = vsel %vm3184, 0, %v3270
    %v3273 = vcosq.f32.pop %v3271
    %v3274 = vsinq.f32.pop %v3271
    %vm3275 = vweird.f32 %v2322
    %v3276 = vadd.s32 %v3272, 3
    %v3277 = vand.u32 %v3276, 3
    %vm3278 = vcmp.lt.s32.totalorder %v3277, 2
    %vm3279 = vcmp.eq.s32.totalorder %v3277, 0
    %v3280 = vxor.u32 %v3274, 2147483648
    %v3281 = vsel %vm3279, %v3273, %v3280
    %vm3282 = vcmp.eq.s32.totalorder %v3277, 2
    %v3283 = vxor.u32 %v3273, 2147483648
    %v3284 = vsel %vm3282, %v3283, %v3274
    %v3285 = vsel %vm3278, %v3281, %v3284
    %v3286 = vsel %vm3275, nan, %v3285
    %v3287 = vmax.f32 %v2433, 0.0
    %v3288 = vmax.f32 %v2435, 0.0
    %v3289 = vmax.f32 %v2439, 0.0
    %v3290 = vmax.f32 %v2441, 0.0
    %v3291 = vmax.f32 %v2445, 0.0
    %v3292 = vmax.f32 %v2447, 0.0
    %v3293 = vmax.f32 %v2451, 0.0
    %v3294 = vmax.f32 %v2453, 0.0
    %v3295 = vadd.f32 %v3287, %v1070
    %v3296 = vadd.f32 %v3288, %v1071
    %v3297 = vadd.f32 %v3289, %v1072
    %v3298 = vadd.f32 %v3290, %v1073
    %v3299 = vadd.f32 %v3291, %v1074
    %v3300 = vadd.f32 %v3292, %v1075
    %v3301 = vadd.f32 %v3293, %v1076
    %v3302 = vadd.f32 %v3294, %v1077
    %v3303 = vmul.f32 %v3295, %v2558
    %v3304 = vmul.f32 %v3296, %v2662
    %v3305 = vmul.f32 %v3297, %v2766
    %v3306 = vmul.f32 %v3298, %v2870
    %v3307 = vmul.f32 %v3299, %v2974
    %v3308 = vmul.f32 %v3300, %v3078
    %v3309 = vmul.f32 %v3301, %v3182
    %v3310 = vmul.f32 %v3302, %v3286
    %v3311 = vld [vmem:[%s7] sm:$0x7]
    %v3312 = vld [vmem:[%s8] sm:$0x7]
    %3314 = vset.pattern.permute.xlu0 0
    %3315 = vperm.xlu0 %3314, %v3312
    %v3316 = vpop.permute.xlu0 %3315
    %v3319 = vsel %vm1106, %v3311, 0
    %3321 = vmatprep.subr.mxu0 0.0
    %3322 = vmatpush1.msra.mxu0 0.0
    %3323 = vmatprep.subr.mxu0 0.0
    %3324 = vmatpush1.msra.mxu0 0.0
    %3325 = vmatprep.subr.mxu0 0.0
    %3326 = vmatpush1.msra.mxu0 0.0
    %3327 = vmatprep.subr.mxu0 0.0
    %3328 = vmatpush1.msra.mxu0 0.0
    %3329 = vmatprep.subr.mxu0 0.0
    %3330 = vmatpush1.msra.mxu0 0.0
    %3331 = vmatprep.subr.mxu0 0.0
    %3332 = vmatpush1.msra.mxu0 0.0
    %3333 = vmatprep.subr.mxu0 0.0
    %3334 = vmatpush1.msra.mxu0 0.0
    %3335 = vmatprep.subr.mxu0 0.0
    %3336 = vmatpush1.msra.mxu0 0.0
    %3337 = vmatprep.subr.mxu0 0.0
    %3338 = vmatpush1.msra.mxu0 0.0
    %3339 = vmatprep.subr.mxu0 0.0
    %3340 = vmatpush1.msra.mxu0 0.0
    %3341 = vmatprep.subr.mxu0 0.0
    %3342 = vmatpush1.msra.mxu0 0.0
    %3343 = vmatprep.subr.mxu0 0.0
    %3344 = vmatpush1.msra.mxu0 0.0
    %3345 = vmatprep.subr.mxu0 %v3310
    %3346 = vmatpush1.msra.mxu0 %v3309
    %3347 = vmatprep.subr.mxu0 %v3308
    %3348 = vmatpush1.msra.mxu0 %v3307
    %3349 = vmatprep.subr.mxu0 %v3306
    %3350 = vmatpush1.msra.mxu0 %v3305
    %3351 = vmatprep.subr.mxu0 %v3304
    %3352 = vmatpush1.msra.mxu0 %v3303
    %3353 = vmatprep.subr.mxu0 0.0
    %3354 = vmatpush2.msra.mxu0 0.0
    %3355 = vmatprep.subr.mxu0 0.0
    %3356 = vmatpush2.msra.mxu0 0.0
    %3357 = vmatprep.subr.mxu0 0.0
    %3358 = vmatpush2.msra.mxu0 0.0
    %3359 = vmatprep.subr.mxu0 0.0
    %3360 = vmatpush2.msra.mxu0 0.0
    %3361 = vmatprep.subr.mxu0 0.0
    %3362 = vmatpush2.msra.mxu0 0.0
    %3363 = vmatprep.subr.mxu0 0.0
    %3364 = vmatpush2.msra.mxu0 0.0
    %3365 = vmatprep.subr.mxu0 0.0
    %3366 = vmatpush2.msra.mxu0 0.0
    %3367 = vmatprep.subr.mxu0 0.0
    %3368 = vmatpush2.msra.mxu0 0.0
    %3369 = vmatprep.subr.mxu0 0.0
    %3370 = vmatpush2.msra.mxu0 0.0
    %3371 = vmatprep.subr.mxu0 0.0
    %3372 = vmatpush2.msra.mxu0 0.0
    %3373 = vmatprep.subr.mxu0 0.0
    %3374 = vmatpush2.msra.mxu0 0.0
    %3375 = vmatprep.subr.mxu0 0.0
    %3376 = vmatpush2.msra.mxu0 0.0
    %3377 = vmatprep.subr.mxu0 0.0
    %3378 = vmatpush2.msra.mxu0 0.0
    %3379 = vmatprep.subr.mxu0 0.0
    %3380 = vmatpush2.msra.mxu0 0.0
    %3381 = vmatprep.subr.mxu0 0.0
    %3382 = vmatpush2.msra.mxu0 0.0
    %3383 = vmatprep.subr.mxu0 0.0
    %3384 = vmatpush2.msra.mxu0 0.0
    %3385 = vmatprep.mubr.f32.mxu0 0.0
    %3386 = vmatmul.mubr.f32.gmra.mxu0 %v3319
    %v3387 = vpop.f32.mrf.mxu0
    %v3388 = vadd.f32 %v3316, %v3387
    %v3389 = vpop.f32.mrf.mxu0
    %v3390 = vadd.f32 %v3316, %v3389
    %3391 = vdwg.mxu0
    %v3392 = vand.u32 2147483647, %v3388
    %vm3393 = vcmp.le.f32.partialorder %v3392, 0.7853982
    %vm3394 = vcmp.lt.s32.totalorder %v3388, 0
    %v3395 = vand.u32 %v3388, 2139095040
    %v3396 = vshrl.u32 %v3395, 23
    %v3397 = vsub.s32 %v3396, 127
    %v3398 = vand.u32 2147483647, %v3388
    %v3399 = vand.u32 %v3398, 8388607
    %v3400 = vor.u32 %v3399, 8388608
    %v3401 = vsub.s32 0, %v3400
    %v3402 = vadd.s32 %v3397, 1
    %vm3403 = vcmp.gt.s32.totalorder %v3402, 0
    %v3404 = vsel %vm3403, %v3402, 0
    %v3405 = vshrl.u32 %v3404, 5
    %v3406 = vand.u32 %v3404, 31
    %v3407 = vsub.s32 32, %v3406
    %v3408 = vshrl.u32 683565275, %v3407
    %v3409 = vshll.u32 683565275, %v3406
    %v3410 = vshrl.u32 2475754826, %v3407
    %v3411 = vor.u32 %v3409, %v3410
    %v3412 = vshll.u32 2475754826, %v3406
    %v3413 = vshrl.u32 2131351028, %v3407
    %v3414 = vor.u32 %v3412, %v3413
    %v3415 = vshll.u32 2131351028, %v3406
    %v3416 = vshrl.u32 2102212464, %v3407
    %v3417 = vor.u32 %v3415, %v3416
    %v3418 = vshll.u32 2102212464, %v3406
    %v3419 = vshrl.u32 920167782, %v3407
    %v3420 = vor.u32 %v3418, %v3419
    %v3421 = vshll.u32 920167782, %v3406
    %v3422 = vshrl.u32 1326507024, %v3407
    %v3423 = vor.u32 %v3421, %v3422
    %vm3424 = vcmp.lt.s32.totalorder %v3405, 1
    %vm3425 = vcmp.lt.s32.totalorder %v3405, 2
    %vm3426 = vcmp.lt.s32.totalorder %v3405, 3
    %vm3427 = vcmp.lt.s32.totalorder %v3405, 4
    %v3428 = vsel %vm3424, %v3408, %v3411
    %v3429 = vsel %vm3427, %v3417, 2102212464
    %v3430 = vsel %vm3426, %v3414, %v3429
    %v3431 = vsel %vm3425, %v3428, %v3430
    %v3432 = vsel %vm3424, %v3411, %v3414
    %v3433 = vsel %vm3427, %v3420, 920167782
    %v3434 = vsel %vm3426, %v3417, %v3433
    %v3435 = vsel %vm3425, %v3432, %v3434
    %v3436 = vsel %vm3424, %v3414, %v3417
    %v3437 = vsel %vm3427, %v3423, 1326507024
    %v3438 = vsel %vm3426, %v3420, %v3437
    %v3439 = vsel %vm3425, %v3436, %v3438
    %v3440 = vshll.u32 %v3400, 8
    %v3441 = vmul.u32.u64.compose %v3440, %v3439
    %v3442 = vextract.low.u32 %v3441
    %v3443 = vextract.high.u32 %v3441
    %v3444 = vmul.u32.u64.compose %v3440, %v3435
    %v3445 = vextract.low.u32 %v3444
    %v3446 = vextract.high.u32 %v3444
    %v3447 = vmul.u32 %v3440, %v3431
    %v3448 = vadd.s32 %v3443, %v3445
    %vm3449 = vc.u32 %v3443, %v3445
    %v3450 = vadd.s32 %v3446, 1
    %v3451 = vsel %vm3449, %v3450, %v3446
    %v3452 = vadd.s32 %v3447, %v3451
    %v3453 = vadd.s32 %v3452, 536870912
    %v3454 = vshrl.u32 %v3453, 30
    %v3455 = vshll.u32 %v3454, 30
    %v3456 = vsub.s32 %v3452, %v3455
    %vm3457 = vcmp.lt.s32.totalorder %v3456, 0
    %v3458 = vsub.s32 0, %v3456
    %v3459 = vsel %vm3457, %v3458, %v3456
    %v3460 = vclz %v3459
    %v3461 = vsub.s32 %v3460, 2
    %vm3462 = vcmp.gt.s32.totalorder 0, %v3461
    %v3463 = vsel %vm3462, 0, %v3461
    %v3464 = vsub.s32 32, %v3463
    %v3465 = vshll.u32 %v3456, %v3463
    %v3466 = vshrl.u32 %v3448, %v3464
    %v3467 = vor.u32 %v3465, %v3466
    %v3468 = vsub.s32 4294967266, %v3463
    %v3469 = vadd.s32 %v3468, 127
    %v3470 = vshll.u32 %v3469, 23
    %v3471 = vor.u32 4788187, %v3470
    %v3472 = vand.u32 2147483647, %v3471
    %v3474 = vcvt.s32.f32 %v3467
    %v3475 = vmul.f32 %v3474, %v3472
    %v3476 = vxor.u32 %v3475, 2147483648
    %v3477 = vsel %vm3394, %v3476, %v3475
    %v3478 = vsub.s32 4, %v3454
    %v3479 = vsel %vm3394, %v3478, %v3454
    %v3480 = vsel %vm3393, %v3388, %v3477
    %v3481 = vsel %vm3393, 0, %v3479
    %v3482 = vcosq.f32.pop %v3480
    %v3483 = vsinq.f32.pop %v3480
    %vm3484 = vweird.f32 %v3388
    %v3485 = vadd.s32 %v3481, 3
    %v3486 = vand.u32 %v3485, 3
    %vm3487 = vcmp.lt.s32.totalorder %v3486, 2
    %vm3488 = vcmp.eq.s32.totalorder %v3486, 0
    %v3489 = vxor.u32 %v3483, 2147483648
    %v3490 = vsel %vm3488, %v3482, %v3489
    %vm3491 = vcmp.eq.s32.totalorder %v3486, 2
    %v3492 = vxor.u32 %v3482, 2147483648
    %v3493 = vsel %vm3491, %v3492, %v3483
    %v3494 = vsel %vm3487, %v3490, %v3493
    %v3495 = vsel %vm3484, nan, %v3494
    %v3496 = vand.u32 2147483647, %v3390
    %vm3497 = vcmp.le.f32.partialorder %v3496, 0.7853982
    %vm3498 = vcmp.lt.s32.totalorder %v3390, 0
    %v3499 = vand.u32 %v3390, 2139095040
    %v3500 = vshrl.u32 %v3499, 23
    %v3501 = vsub.s32 %v3500, 127
    %v3502 = vand.u32 2147483647, %v3390
    %v3503 = vand.u32 %v3502, 8388607
    %v3504 = vor.u32 %v3503, 8388608
    %v3505 = vsub.s32 0, %v3504
    %v3506 = vadd.s32 %v3501, 1
    %vm3507 = vcmp.gt.s32.totalorder %v3506, 0
    %v3508 = vsel %vm3507, %v3506, 0
    %v3509 = vshrl.u32 %v3508, 5
    %v3510 = vand.u32 %v3508, 31
    %v3511 = vsub.s32 32, %v3510
    %v3512 = vshrl.u32 683565275, %v3511
    %v3513 = vshll.u32 683565275, %v3510
    %v3514 = vshrl.u32 2475754826, %v3511
    %v3515 = vor.u32 %v3513, %v3514
    %v3516 = vshll.u32 2475754826, %v3510
    %v3517 = vshrl.u32 2131351028, %v3511
    %v3518 = vor.u32 %v3516, %v3517
    %v3519 = vshll.u32 2131351028, %v3510
    %v3520 = vshrl.u32 2102212464, %v3511
    %v3521 = vor.u32 %v3519, %v3520
    %v3522 = vshll.u32 2102212464, %v3510
    %v3523 = vshrl.u32 920167782, %v3511
    %v3524 = vor.u32 %v3522, %v3523
    %v3525 = vshll.u32 920167782, %v3510
    %v3526 = vshrl.u32 1326507024, %v3511
    %v3527 = vor.u32 %v3525, %v3526
    %vm3528 = vcmp.lt.s32.totalorder %v3509, 1
    %vm3529 = vcmp.lt.s32.totalorder %v3509, 2
    %vm3530 = vcmp.lt.s32.totalorder %v3509, 3
    %vm3531 = vcmp.lt.s32.totalorder %v3509, 4
    %v3532 = vsel %vm3528, %v3512, %v3515
    %v3533 = vsel %vm3531, %v3521, 2102212464
    %v3534 = vsel %vm3530, %v3518, %v3533
    %v3535 = vsel %vm3529, %v3532, %v3534
    %v3536 = vsel %vm3528, %v3515, %v3518
    %v3537 = vsel %vm3531, %v3524, 920167782
    %v3538 = vsel %vm3530, %v3521, %v3537
    %v3539 = vsel %vm3529, %v3536, %v3538
    %v3540 = vsel %vm3528, %v3518, %v3521
    %v3541 = vsel %vm3531, %v3527, 1326507024
    %v3542 = vsel %vm3530, %v3524, %v3541
    %v3543 = vsel %vm3529, %v3540, %v3542
    %v3544 = vshll.u32 %v3504, 8
    %v3545 = vmul.u32.u64.compose %v3544, %v3543
    %v3546 = vextract.low.u32 %v3545
    %v3547 = vextract.high.u32 %v3545
    %v3548 = vmul.u32.u64.compose %v3544, %v3539
    %v3549 = vextract.low.u32 %v3548
    %v3550 = vextract.high.u32 %v3548
    %v3551 = vmul.u32 %v3544, %v3535
    %v3552 = vadd.s32 %v3547, %v3549
    %vm3553 = vc.u32 %v3547, %v3549
    %v3554 = vadd.s32 %v3550, 1
    %v3555 = vsel %vm3553, %v3554, %v3550
    %v3556 = vadd.s32 %v3551, %v3555
    %v3557 = vadd.s32 %v3556, 536870912
    %v3558 = vshrl.u32 %v3557, 30
    %v3559 = vshll.u32 %v3558, 30
    %v3560 = vsub.s32 %v3556, %v3559
    %vm3561 = vcmp.lt.s32.totalorder %v3560, 0
    %v3562 = vsub.s32 0, %v3560
    %v3563 = vsel %vm3561, %v3562, %v3560
    %v3564 = vclz %v3563
    %v3565 = vsub.s32 %v3564, 2
    %vm3566 = vcmp.gt.s32.totalorder 0, %v3565
    %v3567 = vsel %vm3566, 0, %v3565
    %v3568 = vsub.s32 32, %v3567
    %v3569 = vshll.u32 %v3560, %v3567
    %v3570 = vshrl.u32 %v3552, %v3568
    %v3571 = vor.u32 %v3569, %v3570
    %v3572 = vsub.s32 4294967266, %v3567
    %v3573 = vadd.s32 %v3572, 127
    %v3574 = vshll.u32 %v3573, 23
    %v3575 = vor.u32 4788187, %v3574
    %v3576 = vand.u32 2147483647, %v3575
    %v3578 = vcvt.s32.f32 %v3571
    %v3579 = vmul.f32 %v3578, %v3576
    %v3580 = vxor.u32 %v3579, 2147483648
    %v3581 = vsel %vm3498, %v3580, %v3579
    %v3582 = vsub.s32 4, %v3558
    %v3583 = vsel %vm3498, %v3582, %v3558
    %v3584 = vsel %vm3497, %v3390, %v3581
    %v3585 = vsel %vm3497, 0, %v3583
    %v3586 = vcosq.f32.pop %v3584
    %v3587 = vsinq.f32.pop %v3584
    %vm3588 = vweird.f32 %v3390
    %v3589 = vadd.s32 %v3585, 3
    %v3590 = vand.u32 %v3589, 3
    %vm3591 = vcmp.lt.s32.totalorder %v3590, 2
    %vm3592 = vcmp.eq.s32.totalorder %v3590, 0
    %v3593 = vxor.u32 %v3587, 2147483648
    %v3594 = vsel %vm3592, %v3586, %v3593
    %vm3595 = vcmp.eq.s32.totalorder %v3590, 2
    %v3596 = vxor.u32 %v3586, 2147483648
    %v3597 = vsel %vm3595, %v3596, %v3587
    %v3598 = vsel %vm3591, %v3594, %v3597
    %v3599 = vsel %vm3588, nan, %v3598
    %v3602 = vcombine.low %v3495, %v3599
    %3604 = vst [vmem:[#allocation2] sm:$0x77] %v3602
    // Predicated region
    $region38: #{modsiren_forward.1} parent=1 // pred_check
      _
    $region39: #{modsiren_forward.1} parent=1 // pred_check_branch
      %3606 = sbr.rel (0) target = $region41
    $region40: #{modsiren_forward.1} parent=1 // pred_region
      %s3608 = ssub.s32 128, 128
      %3609 = vsyncadd [#allocation3], %s3608
      %s3611 = sshll.u32 [#allocation2], 4
      %s3612 = int_to_ptr.vmem [resolvable:$true] %s3611
      %3614 = dma.vmem_to_hbm [thread:$0]  %s3612, 128, %s9, [#allocation3]
    $region41: #{modsiren_forward.1} parent=1 // pred_fallthru
      _
    // Predicated region
    $region42: #{modsiren_forward.1} parent=1 // pred_check
      _
    $region43: #{modsiren_forward.1} parent=1 // pred_check_branch
      %3616 = sbr.rel (0) target = $region45
    $region44: #{modsiren_forward.1} parent=1 // pred_region
      %3617 = dma.done [#allocation3], 128
    $region45: #{modsiren_forward.1} parent=1 // pred_fallthru
      _
    %3618 = vsyncpa [#allocation3], 1

</llo_original>
